<compile_context>
chip_gen: v5e
topology: v5e:2x2
jax: 0.10.0
libtpu: 0.0.40
codegen_flags: <defaults>
</compile_context>

<pallas_src>
import functools
import math

import jax
import jax.numpy as jnp
from jax.experimental import pallas as pl
from jax.experimental.pallas import tpu as pltpu


# Module configuration (fixed by the PyTorch spec).
CIN, COUT_A, KA, STRIDE_A, PAD_A, DIL_A = 3, 40, 33, 5, 1, 8
COUT_B, KB = 3, 14


def _round_up(x, m):
    return ((x + m - 1) // m) * m


def _conv_out_size(size):
    return (size + 2 * PAD_A - DIL_A * (KA - 1) - 1) // STRIDE_A + 1


# ----------------------------- fused Pallas kernel --------------------------

def _fused_kernel(a_ref, wa_ref, ba_ref, w2_ref, bout_ref, o_ref, *,
                  n_batch, n_slots):
    """tanh(A @ Wa + ba), then per-slot matmuls with col2im baked into W2."""
    # Stage 1: conv_a as a matmul (bf16 MXU, f32 accumulate) + bias + tanh.
    acc_a = jnp.dot(a_ref[...], wa_ref[...],
                    preferred_element_type=jnp.float32)      # (Mp, 128) f32
    acc_a = jnp.tanh(acc_a + ba_ref[...])                    # f32 epilogue
    a2 = acc_a.astype(jnp.bfloat16)

    # Stage 2: ConvTranspose2d + col2im + bias.  Rows of `a2` are ordered
    # (spatial-slot, batch); W2[s] already places each 14x14 patch at its
    # output pixels, so the sum over slots performs the scatter-add.
    n_out = o_ref.shape[1]
    out = jnp.zeros((n_batch, n_out), jnp.float32)
    for s in range(n_slots):                                  # unrolled (6)
        lhs = a2[s * n_batch:(s + 1) * n_batch, :]            # (n_batch, 128)
        out = out + jnp.dot(lhs, w2_ref[s],
                            preferred_element_type=jnp.float32)
    o_ref[...] = out + bout_ref[...]          # ConvTranspose bias, once/pixel


def fused_forward_matmuls(a_p, wa_p, ba_p, w2_p, bout_p, *, n_batch, n_slots):
    mp, kp = a_p.shape
    np_a = wa_p.shape[1]
    n_out = w2_p.shape[2]
    kernel = functools.partial(_fused_kernel, n_batch=n_batch, n_slots=n_slots)
    return pl.pallas_call(
        kernel,
        out_shape=jax.ShapeDtypeStruct((n_batch, n_out), jnp.float32),
        grid_spec=pltpu.PrefetchScalarGridSpec(
            num_scalar_prefetch=0,
            grid=(1,),
            in_specs=[
                pl.BlockSpec((mp, kp), lambda i: (0, 0)),
                pl.BlockSpec((kp, np_a), lambda i: (0, 0)),
                pl.BlockSpec((1, np_a), lambda i: (0, 0)),
                pl.BlockSpec((n_slots, np_a, n_out), lambda i: (0, 0, 0)),
                pl.BlockSpec((1, n_out), lambda i: (0, 0)),
            ],
            out_specs=pl.BlockSpec((n_batch, n_out), lambda i: (0, 0)),
        ),
        compiler_params=pltpu.CompilerParams(
            dimension_semantics=("arbitrary",)),
    )(a_p, wa_p, ba_p, w2_p, bout_p)


# ------------------------------ JAX glue ------------------------------------

def _im2col_slot_major(x, kh, kw, stride, padding, dilation):
    """x: (N,C,H,W) -> padded bf16 patches (Mp, Kp), rows ordered (i, j, n)."""
    n, c, h, w = x.shape
    xp = jnp.pad(x, ((0, 0), (0, 0), (padding, padding), (padding, padding)))
    hp, wp = h + 2 * padding, w + 2 * padding
    oh = (hp - dilation * (kh - 1) - 1) // stride + 1
    ow = (wp - dilation * (kw - 1) - 1) // stride + 1
    rows = (jnp.arange(oh) * stride)[:, None] + (jnp.arange(kh) * dilation)[None, :]
    cols = (jnp.arange(ow) * stride)[:, None] + (jnp.arange(kw) * dilation)[None, :]
    p = xp[:, :, rows, :]                       # (N, C, OH, KH, WP)
    p = p[:, :, :, :, cols]                     # (N, C, OH, KH, OW, KW)
    p = jnp.transpose(p, (2, 4, 0, 1, 3, 5))    # (OH, OW, N, C, KH, KW)
    k = c * kh * kw
    m = n * oh * ow
    mp = _round_up(m, 16)                       # bf16 sublane tile
    kp = _round_up(k, 128)
    p = p.reshape(m, k).astype(jnp.bfloat16)
    p = jnp.pad(p, ((0, mp - m), (0, kp - k)))
    return p, (n, oh, ow)


def prepare_params(w_a, b_a, w_b, b_b, oh, ow):
    """One-time weight reshape / pad / bf16 cast, col2im baked into W2."""
    # conv_a weight (Cout, Cin, KA, KA) -> (Cin*KA*KA -> 3328, 40 -> 128).
    k_a = CIN * KA * KA
    kp_a = _round_up(k_a, 128)
    np_a = _round_up(COUT_A, 128)
    wa_p = jnp.pad(w_a.reshape(COUT_A, k_a).T,
                   ((0, kp_a - k_a), (0, np_a - COUT_A))).astype(jnp.bfloat16)
    ba_p = jnp.pad(b_a.astype(jnp.float32),
                   (0, np_a - COUT_A)).reshape(1, np_a)

    # conv_b (ConvTranspose2d) weight (Cin=40, Cout=3, KB, KB): bake the
    # col2im placement for the fixed (oh, ow) grid into one weight per slot.
    ohb, owb = oh + KB - 1, ow + KB - 1
    n_out = COUT_B * ohb * owb
    np_out = _round_up(n_out, 128)
    w2 = jnp.zeros((oh * ow, COUT_A, COUT_B, ohb, owb), jnp.float32)
    for i in range(oh):
        for j in range(ow):
            w2 = w2.at[i * ow + j, :, :, i:i + KB, j:j + KB].set(w_b)
    w2 = w2.reshape(oh * ow, COUT_A, n_out)
    w2_p = jnp.pad(w2, ((0, 0), (0, np_a - COUT_A), (0, np_out - n_out))
                   ).astype(jnp.bfloat16)

    # ConvTranspose bias broadcast to the flattened (co, y, x) output layout.
    bout = jnp.repeat(b_b.astype(jnp.float32), ohb * owb)
    bout_p = jnp.pad(bout, (0, np_out - n_out)).reshape(1, np_out)
    return wa_p, ba_p, w2_p, bout_p


@jax.jit
def model_tanh_forward(x, wa_p, ba_p, w2_p, bout_p):
    """Equivalent of ModelTanh.forward on NCHW input x."""
    a_p, (n, oh, ow) = _im2col_slot_major(x, KA, KA, STRIDE_A, PAD_A, DIL_A)
    out_flat = fused_forward_matmuls(a_p, wa_p, ba_p, w2_p, bout_p,
                                     n_batch=n, n_slots=oh * ow)
    ohb, owb = oh + KB - 1, ow + KB - 1
    return out_flat[:, :COUT_B * ohb * owb].reshape(n, COUT_B, ohb, owb)


def _reference_forward(x, w_a, b_a, w_b, b_b):
    """Pure-XLA f32 reference for correctness checking."""
    v1 = jax.lax.conv_general_dilated(
        x, w_a, window_strides=(STRIDE_A, STRIDE_A),
        padding=((PAD_A, PAD_A), (PAD_A, PAD_A)),
        rhs_dilation=(DIL_A, DIL_A),
        dimension_numbers=('NCHW', 'OIHW', 'NCHW'))
    v2 = jnp.tanh(v1 + b_a[None, :, None, None])
    # ConvTranspose2d(stride=1, pad=0) == full conv with flipped/swapped W.
    w_flip = jnp.transpose(jnp.flip(w_b, axis=(2, 3)), (1, 0, 2, 3))
    v3 = jax.lax.conv_general_dilated(
        v2, w_flip, window_strides=(1, 1),
        padding=((KB - 1, KB - 1), (KB - 1, KB - 1)),
        dimension_numbers=('NCHW', 'OIHW', 'NCHW'))
    return v3 + b_b[None, :, None, None]


# ------------------------------- main ---------------------------------------

if __name__ == "__main__":
    key = jax.random.PRNGKey(0)
    k1, k2, k3, k4, kx = jax.random.split(key, 5)

    # Deterministic parameter init (PyTorch-like uniform scaling).
    fan_a = CIN * KA * KA
    w_a = jax.random.uniform(k1, (COUT_A, CIN, KA, KA), jnp.float32, -1.0, 1.0) / math.sqrt(fan_a)
    b_a = jax.random.uniform(k2, (COUT_A,), jnp.float32, -1.0, 1.0) / math.sqrt(fan_a)
    fan_b = COUT_A * KB * KB
    w_b = jax.random.uniform(k3, (COUT_A, COUT_B, KB, KB), jnp.float32, -1.0, 1.0) / math.sqrt(fan_b)
    b_b = jax.random.uniform(k4, (COUT_B,), jnp.float32, -1.0, 1.0) / math.sqrt(fan_b)

    # Input spatial size must cover the dilated 33x33 (effective 257) kernel.
    # (The 57x50 input in the original PyTorch file is invalid for this layer
    # configuration, so we use the smallest workable non-square shape.)
    x = jax.random.normal(kx, (2, 3, 265, 260), jnp.float32)

    # One-time weight prep (reshape / pad / bf16 / col2im bake), outside jit.
    oh, ow = _conv_out_size(x.shape[2]), _conv_out_size(x.shape[3])
    wa_p, ba_p, w2_p, bout_p = prepare_params(w_a, b_a, w_b, b_b, oh, ow)

    out = jax.block_until_ready(model_tanh_forward(x, wa_p, ba_p, w2_p, bout_p))

    ref = jax.block_until_ready(_reference_forward(x, w_a, b_a, w_b, b_b))
    assert out.shape == ref.shape, (out.shape, ref.shape)
    max_err = float(jnp.max(jnp.abs(out - ref)))
    # bf16 matmul inputs (f32 accumulate / bias / tanh) vs pure-f32 reference.
    assert max_err < 5e-3, f"max abs error {max_err}"

    print("KERNEL_OK")
</pallas_src>

<mosaic_0001>
module attributes {stable_mosaic.version = 11 : i64} {
  func.func @_fused_kernel(%arg0: i32, %arg1: memref<16x3328xbf16, #tpu.memory_space<vmem>>, %arg2: memref<3328x128xbf16, #tpu.memory_space<vmem>>, %arg3: memref<1x128xf32, #tpu.memory_space<vmem>>, %arg4: memref<6x128x768xbf16, #tpu.memory_space<vmem>>, %arg5: memref<1x768xf32, #tpu.memory_space<vmem>>, %arg6: memref<2x768xf32, #tpu.memory_space<vmem>>) attributes {dimension_semantics = [#tpu.dimension_semantics<arbitrary>], iteration_bounds = array<i64: 1>, scalar_prefetch = 0 : i64, scratch_operands = 0 : i64, tpu.core_type = #tpu.core_type<tc>, window_params = [{pipeline_mode = #tpu.pipeline_mode<synchronous>, transform_indices = @transform_0, window_bounds = array<i64: 16, 3328>}, {pipeline_mode = #tpu.pipeline_mode<synchronous>, transform_indices = @transform_1, window_bounds = array<i64: 3328, 128>}, {pipeline_mode = #tpu.pipeline_mode<synchronous>, transform_indices = @transform_2, window_bounds = array<i64: 1, 128>}, {pipeline_mode = #tpu.pipeline_mode<synchronous>, transform_indices = @transform_3, window_bounds = array<i64: 6, 128, 768>}, {pipeline_mode = #tpu.pipeline_mode<synchronous>, transform_indices = @transform_4, window_bounds = array<i64: 1, 768>}, {pipeline_mode = #tpu.pipeline_mode<synchronous>, transform_indices = @transform_5, window_bounds = array<i64: 2, 768>}]} {
    %c0 = arith.constant 0 : index
    %c0_0 = arith.constant 0 : index
    %0 = vector.load %arg1[%c0, %c0_0] : memref<16x3328xbf16, #tpu.memory_space<vmem>>, vector<16x3328xbf16>
    %c0_1 = arith.constant 0 : index
    %c0_2 = arith.constant 0 : index
    %1 = vector.load %arg2[%c0_1, %c0_2] : memref<3328x128xbf16, #tpu.memory_space<vmem>>, vector<3328x128xbf16>
    %cst = arith.constant dense<0.000000e+00> : vector<16x128xf32>
    %2 = tpu.matmul %0, %1, %cst {dimension_numbers = #tpu.dot_dimension_numbers<[1], [0], [0], [1], [0, 0, 1, 1], [], []>} : vector<16x3328xbf16>, vector<3328x128xbf16>, vector<16x128xf32> -> vector<16x128xf32>
    %c0_3 = arith.constant 0 : index
    %c0_4 = arith.constant 0 : index
    %3 = vector.load %arg3[%c0_3, %c0_4] : memref<1x128xf32, #tpu.memory_space<vmem>>, vector<1x128xf32>
    %4 = vector.broadcast %3 : vector<1x128xf32> to vector<16x128xf32>
    %5 = arith.addf %2, %4 : vector<16x128xf32>
    %6 = math.tanh %5 : vector<16x128xf32>
    %7 = arith.truncf %6 : vector<16x128xf32> to vector<16x128xbf16>
    %cst_5 = arith.constant 0.000000e+00 : f32
    %8 = vector.broadcast %cst_5 : f32 to vector<2x768xf32>
    %9 = vector.extract_strided_slice %7 {offsets = [0, 0], sizes = [2, 128], strides = [1, 1]} : vector<16x128xbf16> to vector<2x128xbf16>
    %c0_6 = arith.constant 0 : index
    %c0_7 = arith.constant 0 : index
    %c0_8 = arith.constant 0 : index
    %10 = vector.load %arg4[%c0_6, %c0_7, %c0_8] : memref<6x128x768xbf16, #tpu.memory_space<vmem>>, vector<1x128x768xbf16>
    %11 = vector.shape_cast %10 : vector<1x128x768xbf16> to vector<128x768xbf16>
    %cst_9 = arith.constant dense<0.000000e+00> : vector<2x768xf32>
    %12 = tpu.matmul %9, %11, %cst_9 {dimension_numbers = #tpu.dot_dimension_numbers<[1], [0], [0], [1], [0, 0, 1, 1], [], []>} : vector<2x128xbf16>, vector<128x768xbf16>, vector<2x768xf32> -> vector<2x768xf32>
    %13 = arith.addf %8, %12 : vector<2x768xf32>
    %14 = vector.extract_strided_slice %7 {offsets = [2, 0], sizes = [2, 128], strides = [1, 1]} : vector<16x128xbf16> to vector<2x128xbf16>
    %c1 = arith.constant 1 : index
    %c0_10 = arith.constant 0 : index
    %c0_11 = arith.constant 0 : index
    %15 = vector.load %arg4[%c1, %c0_10, %c0_11] : memref<6x128x768xbf16, #tpu.memory_space<vmem>>, vector<1x128x768xbf16>
    %16 = vector.shape_cast %15 : vector<1x128x768xbf16> to vector<128x768xbf16>
    %cst_12 = arith.constant dense<0.000000e+00> : vector<2x768xf32>
    %17 = tpu.matmul %14, %16, %cst_12 {dimension_numbers = #tpu.dot_dimension_numbers<[1], [0], [0], [1], [0, 0, 1, 1], [], []>} : vector<2x128xbf16>, vector<128x768xbf16>, vector<2x768xf32> -> vector<2x768xf32>
    %18 = arith.addf %13, %17 : vector<2x768xf32>
    %19 = vector.extract_strided_slice %7 {offsets = [4, 0], sizes = [2, 128], strides = [1, 1]} : vector<16x128xbf16> to vector<2x128xbf16>
    %c2 = arith.constant 2 : index
    %c0_13 = arith.constant 0 : index
    %c0_14 = arith.constant 0 : index
    %20 = vector.load %arg4[%c2, %c0_13, %c0_14] : memref<6x128x768xbf16, #tpu.memory_space<vmem>>, vector<1x128x768xbf16>
    %21 = vector.shape_cast %20 : vector<1x128x768xbf16> to vector<128x768xbf16>
    %cst_15 = arith.constant dense<0.000000e+00> : vector<2x768xf32>
    %22 = tpu.matmul %19, %21, %cst_15 {dimension_numbers = #tpu.dot_dimension_numbers<[1], [0], [0], [1], [0, 0, 1, 1], [], []>} : vector<2x128xbf16>, vector<128x768xbf16>, vector<2x768xf32> -> vector<2x768xf32>
    %23 = arith.addf %18, %22 : vector<2x768xf32>
    %24 = vector.extract_strided_slice %7 {offsets = [6, 0], sizes = [2, 128], strides = [1, 1]} : vector<16x128xbf16> to vector<2x128xbf16>
    %c3 = arith.constant 3 : index
    %c0_16 = arith.constant 0 : index
    %c0_17 = arith.constant 0 : index
    %25 = vector.load %arg4[%c3, %c0_16, %c0_17] : memref<6x128x768xbf16, #tpu.memory_space<vmem>>, vector<1x128x768xbf16>
    %26 = vector.shape_cast %25 : vector<1x128x768xbf16> to vector<128x768xbf16>
    %cst_18 = arith.constant dense<0.000000e+00> : vector<2x768xf32>
    %27 = tpu.matmul %24, %26, %cst_18 {dimension_numbers = #tpu.dot_dimension_numbers<[1], [0], [0], [1], [0, 0, 1, 1], [], []>} : vector<2x128xbf16>, vector<128x768xbf16>, vector<2x768xf32> -> vector<2x768xf32>
    %28 = arith.addf %23, %27 : vector<2x768xf32>
    %29 = vector.extract_strided_slice %7 {offsets = [8, 0], sizes = [2, 128], strides = [1, 1]} : vector<16x128xbf16> to vector<2x128xbf16>
    %c4 = arith.constant 4 : index
    %c0_19 = arith.constant 0 : index
    %c0_20 = arith.constant 0 : index
    %30 = vector.load %arg4[%c4, %c0_19, %c0_20] : memref<6x128x768xbf16, #tpu.memory_space<vmem>>, vector<1x128x768xbf16>
    %31 = vector.shape_cast %30 : vector<1x128x768xbf16> to vector<128x768xbf16>
    %cst_21 = arith.constant dense<0.000000e+00> : vector<2x768xf32>
    %32 = tpu.matmul %29, %31, %cst_21 {dimension_numbers = #tpu.dot_dimension_numbers<[1], [0], [0], [1], [0, 0, 1, 1], [], []>} : vector<2x128xbf16>, vector<128x768xbf16>, vector<2x768xf32> -> vector<2x768xf32>
    %33 = arith.addf %28, %32 : vector<2x768xf32>
    %34 = vector.extract_strided_slice %7 {offsets = [10, 0], sizes = [2, 128], strides = [1, 1]} : vector<16x128xbf16> to vector<2x128xbf16>
    %c5 = arith.constant 5 : index
    %c0_22 = arith.constant 0 : index
    %c0_23 = arith.constant 0 : index
    %35 = vector.load %arg4[%c5, %c0_22, %c0_23] : memref<6x128x768xbf16, #tpu.memory_space<vmem>>, vector<1x128x768xbf16>
    %36 = vector.shape_cast %35 : vector<1x128x768xbf16> to vector<128x768xbf16>
    %cst_24 = arith.constant dense<0.000000e+00> : vector<2x768xf32>
    %37 = tpu.matmul %34, %36, %cst_24 {dimension_numbers = #tpu.dot_dimension_numbers<[1], [0], [0], [1], [0, 0, 1, 1], [], []>} : vector<2x128xbf16>, vector<128x768xbf16>, vector<2x768xf32> -> vector<2x768xf32>
    %38 = arith.addf %33, %37 : vector<2x768xf32>
    %c0_25 = arith.constant 0 : index
    %c0_26 = arith.constant 0 : index
    %39 = vector.load %arg5[%c0_25, %c0_26] : memref<1x768xf32, #tpu.memory_space<vmem>>, vector<1x768xf32>
    %40 = vector.broadcast %39 : vector<1x768xf32> to vector<2x768xf32>
    %41 = arith.addf %38, %40 : vector<2x768xf32>
    %c0_27 = arith.constant 0 : index
    %c0_28 = arith.constant 0 : index
    %42 = vector.load %arg6[%c0_27, %c0_28] : memref<2x768xf32, #tpu.memory_space<vmem>>, vector<2x768xf32>
    tpu.vector_store %arg6[%c0_27, %c0_28], %41 {strides = array<i32>} : memref<2x768xf32, #tpu.memory_space<vmem>>, vector<2x768xf32>,
    return
  }
  func.func @transform_0(%arg0: i32) -> (i32, i32) {
    %c0_i32 = arith.constant 0 : i32
    %c0_i32_0 = arith.constant 0 : i32
    %c0_i32_1 = arith.constant 0 : i32
    return %c0_i32, %c0_i32_0 : i32, i32
  }
  func.func @transform_1(%arg0: i32) -> (i32, i32) {
    %c0_i32 = arith.constant 0 : i32
    %c0_i32_0 = arith.constant 0 : i32
    %c0_i32_1 = arith.constant 0 : i32
    return %c0_i32, %c0_i32_0 : i32, i32
  }
  func.func @transform_2(%arg0: i32) -> (i32, i32) {
    %c0_i32 = arith.constant 0 : i32
    %c0_i32_0 = arith.constant 0 : i32
    %c0_i32_1 = arith.constant 0 : i32
    return %c0_i32, %c0_i32_0 : i32, i32
  }
  func.func @transform_3(%arg0: i32) -> (i32, i32, i32) {
    %c0_i32 = arith.constant 0 : i32
    %c0_i32_0 = arith.constant 0 : i32
    %c0_i32_1 = arith.constant 0 : i32
    %c0_i32_2 = arith.constant 0 : i32
    return %c0_i32, %c0_i32_0, %c0_i32_1 : i32, i32, i32
  }
  func.func @transform_4(%arg0: i32) -> (i32, i32) {
    %c0_i32 = arith.constant 0 : i32
    %c0_i32_0 = arith.constant 0 : i32
    %c0_i32_1 = arith.constant 0 : i32
    return %c0_i32, %c0_i32_0 : i32, i32
  }
  func.func @transform_5(%arg0: i32) -> (i32, i32) {
    %c0_i32 = arith.constant 0 : i32
    %c0_i32_0 = arith.constant 0 : i32
    %c0_i32_1 = arith.constant 0 : i32
    return %c0_i32, %c0_i32_0 : i32, i32
  }
}

</mosaic_0001>

<llo_original>
// kernel: model_tanh_forward.1
$region0: #{model_tanh_forward.1}
  #allocation0 [shape = 'u32[]', space=smem, size = 0x4, offset = 0x4, fixed_abs, tag = 'smem constant byte address 0x4 - core index']
  #allocation1 [shape = 'u32[72,128]{1,0:T(1,128)}', space=vmem, size = 0x9000, scoped, tag = 'internal scratch']
  %s0 = inlined_call_operand.vmem [shape: bf16[16,3328], index: 0, kind: input, shape index: {}]
  %s1 = inlined_call_operand.vmem [shape: bf16[3328,128], index: 1, kind: input, shape index: {}]
  %s2 = inlined_call_operand.vmem [shape: f32[1,128], index: 2, kind: input, shape index: {}]
  %s3 = inlined_call_operand.vmem [shape: bf16[6,128,768], index: 3, kind: input, shape index: {}]
  %s4 = inlined_call_operand.vmem [shape: f32[1,768], index: 4, kind: input, shape index: {}]
  %s5 = inlined_call_operand.vmem [shape: f32[2,768], index: 5, kind: output, shape index: {}]
  %s6 = sld [smem:[#allocation0]]
  $region30: #{model_tanh_forward.1} parent=0
    _
  %s8 = ssub.s32 1, %s6
  %s9 = scalar_select 0, %s8, %s6
  // Predicated region
  $region2: #{model_tanh_forward.1} parent=0 // pred_check
    _
  $region3: #{model_tanh_forward.1} parent=0 // pred_check_branch
    %11 = sbr.rel (0) target = $region5
  $region4: #{model_tanh_forward.1} parent=0 // pred_region
    _
  $region5: #{model_tanh_forward.1} parent=0 // pred_fallthru
    _
  // Predicated region
  $region6: #{model_tanh_forward.1} parent=0 // pred_check
    _
  $region7: #{model_tanh_forward.1} parent=0 // pred_check_branch
    %13 = sbr.rel (0) target = $region9
  $region8: #{model_tanh_forward.1} parent=0 // pred_region
    _
  $region9: #{model_tanh_forward.1} parent=0 // pred_fallthru
    _
  // Predicated region
  $region10: #{model_tanh_forward.1} parent=0 // pred_check
    _
  $region11: #{model_tanh_forward.1} parent=0 // pred_check_branch
    %15 = sbr.rel (0) target = $region13
  $region12: #{model_tanh_forward.1} parent=0 // pred_region
    _
  $region13: #{model_tanh_forward.1} parent=0 // pred_fallthru
    _
  // Predicated region
  $region14: #{model_tanh_forward.1} parent=0 // pred_check
    _
  $region15: #{model_tanh_forward.1} parent=0 // pred_check_branch
    %17 = sbr.rel (0) target = $region17
  $region16: #{model_tanh_forward.1} parent=0 // pred_region
    _
  $region17: #{model_tanh_forward.1} parent=0 // pred_fallthru
    _
  // Predicated region
  $region18: #{model_tanh_forward.1} parent=0 // pred_check
    _
  $region19: #{model_tanh_forward.1} parent=0 // pred_check_branch
    %19 = sbr.rel (0) target = $region21
  $region20: #{model_tanh_forward.1} parent=0 // pred_region
    _
  $region21: #{model_tanh_forward.1} parent=0 // pred_fallthru
    _
  %v20 = vld [vmem:[%s0] sm:$0xff]
  %v21 = vld [vmem:[%s0 + $0x8] sm:$0xff]
  %v22 = vld [vmem:[%s0 + $0x10] sm:$0xff]
  %v23 = vld [vmem:[%s0 + $0x18] sm:$0xff]
  %v24 = vld [vmem:[%s0 + $0x20] sm:$0xff]
  %v25 = vld [vmem:[%s0 + $0x28] sm:$0xff]
  %v26 = vld [vmem:[%s0 + $0x30] sm:$0xff]
  %v27 = vld [vmem:[%s0 + $0x38] sm:$0xff]
  %v28 = vld [vmem:[%s0 + $0x40] sm:$0xff]
  %v29 = vld [vmem:[%s0 + $0x48] sm:$0xff]
  %v30 = vld [vmem:[%s0 + $0x50] sm:$0xff]
  %v31 = vld [vmem:[%s0 + $0x58] sm:$0xff]
  %v32 = vld [vmem:[%s0 + $0x60] sm:$0xff]
  %v33 = vld [vmem:[%s0 + $0x68] sm:$0xff]
  %v34 = vld [vmem:[%s0 + $0x70] sm:$0xff]
  %v35 = vld [vmem:[%s0 + $0x78] sm:$0xff]
  %v36 = vld [vmem:[%s0 + $0x80] sm:$0xff]
  %v37 = vld [vmem:[%s0 + $0x88] sm:$0xff]
  %v38 = vld [vmem:[%s0 + $0x90] sm:$0xff]
  %v39 = vld [vmem:[%s0 + $0x98] sm:$0xff]
  %v40 = vld [vmem:[%s0 + $0xa0] sm:$0xff]
  %v41 = vld [vmem:[%s0 + $0xa8] sm:$0xff]
  %v42 = vld [vmem:[%s0 + $0xb0] sm:$0xff]
  %v43 = vld [vmem:[%s0 + $0xb8] sm:$0xff]
  %v44 = vld [vmem:[%s0 + $0xc0] sm:$0xff]
  %v45 = vld [vmem:[%s0 + $0xc8] sm:$0xff]
  %v46 = vld [vmem:[%s1] sm:$0xf]
  %v47 = vld [vmem:[%s1 + $0x4] sm:$0xf]
  %v48 = vld [vmem:[%s1 + $0x8] sm:$0xf]
  %v49 = vld [vmem:[%s1 + $0xc] sm:$0xf]
  %v50 = vld [vmem:[%s1 + $0x10] sm:$0xf]
  %v51 = vld [vmem:[%s1 + $0x14] sm:$0xf]
  %v52 = vld [vmem:[%s1 + $0x18] sm:$0xf]
  %v53 = vld [vmem:[%s1 + $0x1c] sm:$0xf]
  %v54 = vld [vmem:[%s1 + $0x20] sm:$0xf]
  %v55 = vld [vmem:[%s1 + $0x24] sm:$0xf]
  %v56 = vld [vmem:[%s1 + $0x28] sm:$0xf]
  %v57 = vld [vmem:[%s1 + $0x2c] sm:$0xf]
  %v58 = vld [vmem:[%s1 + $0x30] sm:$0xf]
  %v59 = vld [vmem:[%s1 + $0x34] sm:$0xf]
  %v60 = vld [vmem:[%s1 + $0x38] sm:$0xf]
  %v61 = vld [vmem:[%s1 + $0x3c] sm:$0xf]
  %v62 = vld [vmem:[%s1 + $0x40] sm:$0xf]
  %v63 = vld [vmem:[%s1 + $0x44] sm:$0xf]
  %v64 = vld [vmem:[%s1 + $0x48] sm:$0xf]
  %v65 = vld [vmem:[%s1 + $0x4c] sm:$0xf]
  %v66 = vld [vmem:[%s1 + $0x50] sm:$0xf]
  %v67 = vld [vmem:[%s1 + $0x54] sm:$0xf]
  %v68 = vld [vmem:[%s1 + $0x58] sm:$0xf]
  %v69 = vld [vmem:[%s1 + $0x5c] sm:$0xf]
  %v70 = vld [vmem:[%s1 + $0x60] sm:$0xf]
  %v71 = vld [vmem:[%s1 + $0x64] sm:$0xf]
  %v72 = vld [vmem:[%s1 + $0x68] sm:$0xf]
  %v73 = vld [vmem:[%s1 + $0x6c] sm:$0xf]
  %v74 = vld [vmem:[%s1 + $0x70] sm:$0xf]
  %v75 = vld [vmem:[%s1 + $0x74] sm:$0xf]
  %v76 = vld [vmem:[%s1 + $0x78] sm:$0xf]
  %v77 = vld [vmem:[%s1 + $0x7c] sm:$0xf]
  %v78 = vld [vmem:[%s1 + $0x80] sm:$0xf]
  %v79 = vld [vmem:[%s1 + $0x84] sm:$0xf]
  %v80 = vld [vmem:[%s1 + $0x88] sm:$0xf]
  %v81 = vld [vmem:[%s1 + $0x8c] sm:$0xf]
  %v82 = vld [vmem:[%s1 + $0x90] sm:$0xf]
  %v83 = vld [vmem:[%s1 + $0x94] sm:$0xf]
  %v84 = vld [vmem:[%s1 + $0x98] sm:$0xf]
  %v85 = vld [vmem:[%s1 + $0x9c] sm:$0xf]
  %v86 = vld [vmem:[%s1 + $0xa0] sm:$0xf]
  %v87 = vld [vmem:[%s1 + $0xa4] sm:$0xf]
  %v88 = vld [vmem:[%s1 + $0xa8] sm:$0xf]
  %v89 = vld [vmem:[%s1 + $0xac] sm:$0xf]
  %v90 = vld [vmem:[%s1 + $0xb0] sm:$0xf]
  %v91 = vld [vmem:[%s1 + $0xb4] sm:$0xf]
  %v92 = vld [vmem:[%s1 + $0xb8] sm:$0xf]
  %v93 = vld [vmem:[%s1 + $0xbc] sm:$0xf]
  %v94 = vld [vmem:[%s1 + $0xc0] sm:$0xf]
  %v95 = vld [vmem:[%s1 + $0xc4] sm:$0xf]
  %v96 = vld [vmem:[%s1 + $0xc8] sm:$0xf]
  %v97 = vld [vmem:[%s1 + $0xcc] sm:$0xf]
  %v98 = vld [vmem:[%s1 + $0xd0] sm:$0xf]
  %v99 = vld [vmem:[%s1 + $0xd4] sm:$0xf]
  %v100 = vld [vmem:[%s1 + $0xd8] sm:$0xf]
  %v101 = vld [vmem:[%s1 + $0xdc] sm:$0xf]
  %v102 = vld [vmem:[%s1 + $0xe0] sm:$0xf]
  %v103 = vld [vmem:[%s1 + $0xe4] sm:$0xf]
  %v104 = vld [vmem:[%s1 + $0xe8] sm:$0xf]
  %v105 = vld [vmem:[%s1 + $0xec] sm:$0xf]
  %v106 = vld [vmem:[%s1 + $0xf0] sm:$0xf]
  %v107 = vld [vmem:[%s1 + $0xf4] sm:$0xf]
  %v108 = vld [vmem:[%s1 + $0xf8] sm:$0xf]
  %v109 = vld [vmem:[%s1 + $0xfc] sm:$0xf]
  %v110 = vld [vmem:[%s1 + $0x100] sm:$0xf]
  %v111 = vld [vmem:[%s1 + $0x104] sm:$0xf]
  %v112 = vld [vmem:[%s1 + $0x108] sm:$0xf]
  %v113 = vld [vmem:[%s1 + $0x10c] sm:$0xf]
  %v114 = vld [vmem:[%s1 + $0x110] sm:$0xf]
  %v115 = vld [vmem:[%s1 + $0x114] sm:$0xf]
  %v116 = vld [vmem:[%s1 + $0x118] sm:$0xf]
  %v117 = vld [vmem:[%s1 + $0x11c] sm:$0xf]
  %v118 = vld [vmem:[%s1 + $0x120] sm:$0xf]
  %v119 = vld [vmem:[%s1 + $0x124] sm:$0xf]
  %v120 = vld [vmem:[%s1 + $0x128] sm:$0xf]
  %v121 = vld [vmem:[%s1 + $0x12c] sm:$0xf]
  %v122 = vld [vmem:[%s1 + $0x130] sm:$0xf]
  %v123 = vld [vmem:[%s1 + $0x134] sm:$0xf]
  %v124 = vld [vmem:[%s1 + $0x138] sm:$0xf]
  %v125 = vld [vmem:[%s1 + $0x13c] sm:$0xf]
  %v126 = vld [vmem:[%s1 + $0x140] sm:$0xf]
  %v127 = vld [vmem:[%s1 + $0x144] sm:$0xf]
  %v128 = vld [vmem:[%s1 + $0x148] sm:$0xf]
  %v129 = vld [vmem:[%s1 + $0x14c] sm:$0xf]
  %v130 = vld [vmem:[%s1 + $0x150] sm:$0xf]
  %v131 = vld [vmem:[%s1 + $0x154] sm:$0xf]
  %v132 = vld [vmem:[%s1 + $0x158] sm:$0xf]
  %v133 = vld [vmem:[%s1 + $0x15c] sm:$0xf]
  %v134 = vld [vmem:[%s1 + $0x160] sm:$0xf]
  %v135 = vld [vmem:[%s1 + $0x164] sm:$0xf]
  %v136 = vld [vmem:[%s1 + $0x168] sm:$0xf]
  %v137 = vld [vmem:[%s1 + $0x16c] sm:$0xf]
  %v138 = vld [vmem:[%s1 + $0x170] sm:$0xf]
  %v139 = vld [vmem:[%s1 + $0x174] sm:$0xf]
  %v140 = vld [vmem:[%s1 + $0x178] sm:$0xf]
  %v141 = vld [vmem:[%s1 + $0x17c] sm:$0xf]
  %v142 = vld [vmem:[%s1 + $0x180] sm:$0xf]
  %v143 = vld [vmem:[%s1 + $0x184] sm:$0xf]
  %v144 = vld [vmem:[%s1 + $0x188] sm:$0xf]
  %v145 = vld [vmem:[%s1 + $0x18c] sm:$0xf]
  %v146 = vld [vmem:[%s1 + $0x190] sm:$0xf]
  %v147 = vld [vmem:[%s1 + $0x194] sm:$0xf]
  %v148 = vld [vmem:[%s1 + $0x198] sm:$0xf]
  %v149 = vld [vmem:[%s1 + $0x19c] sm:$0xf]
  %v150 = vld [vmem:[%s1 + $0x1a0] sm:$0xf]
  %v151 = vld [vmem:[%s1 + $0x1a4] sm:$0xf]
  %v152 = vld [vmem:[%s1 + $0x1a8] sm:$0xf]
  %v153 = vld [vmem:[%s1 + $0x1ac] sm:$0xf]
  %v154 = vld [vmem:[%s1 + $0x1b0] sm:$0xf]
  %v155 = vld [vmem:[%s1 + $0x1b4] sm:$0xf]
  %v156 = vld [vmem:[%s1 + $0x1b8] sm:$0xf]
  %v157 = vld [vmem:[%s1 + $0x1bc] sm:$0xf]
  %v158 = vld [vmem:[%s1 + $0x1c0] sm:$0xf]
  %v159 = vld [vmem:[%s1 + $0x1c4] sm:$0xf]
  %v160 = vld [vmem:[%s1 + $0x1c8] sm:$0xf]
  %v161 = vld [vmem:[%s1 + $0x1cc] sm:$0xf]
  %v162 = vld [vmem:[%s1 + $0x1d0] sm:$0xf]
  %v163 = vld [vmem:[%s1 + $0x1d4] sm:$0xf]
  %v164 = vld [vmem:[%s1 + $0x1d8] sm:$0xf]
  %v165 = vld [vmem:[%s1 + $0x1dc] sm:$0xf]
  %v166 = vld [vmem:[%s1 + $0x1e0] sm:$0xf]
  %v167 = vld [vmem:[%s1 + $0x1e4] sm:$0xf]
  %v168 = vld [vmem:[%s1 + $0x1e8] sm:$0xf]
  %v169 = vld [vmem:[%s1 + $0x1ec] sm:$0xf]
  %v170 = vld [vmem:[%s1 + $0x1f0] sm:$0xf]
  %v171 = vld [vmem:[%s1 + $0x1f4] sm:$0xf]
  %v172 = vld [vmem:[%s1 + $0x1f8] sm:$0xf]
  %v173 = vld [vmem:[%s1 + $0x1fc] sm:$0xf]
  %v174 = vld [vmem:[%s1 + $0x200] sm:$0xf]
  %v175 = vld [vmem:[%s1 + $0x204] sm:$0xf]
  %v176 = vld [vmem:[%s1 + $0x208] sm:$0xf]
  %v177 = vld [vmem:[%s1 + $0x20c] sm:$0xf]
  %v178 = vld [vmem:[%s1 + $0x210] sm:$0xf]
  %v179 = vld [vmem:[%s1 + $0x214] sm:$0xf]
  %v180 = vld [vmem:[%s1 + $0x218] sm:$0xf]
  %v181 = vld [vmem:[%s1 + $0x21c] sm:$0xf]
  %v182 = vld [vmem:[%s1 + $0x220] sm:$0xf]
  %v183 = vld [vmem:[%s1 + $0x224] sm:$0xf]
  %v184 = vld [vmem:[%s1 + $0x228] sm:$0xf]
  %v185 = vld [vmem:[%s1 + $0x22c] sm:$0xf]
  %v186 = vld [vmem:[%s1 + $0x230] sm:$0xf]
  %v187 = vld [vmem:[%s1 + $0x234] sm:$0xf]
  %v188 = vld [vmem:[%s1 + $0x238] sm:$0xf]
  %v189 = vld [vmem:[%s1 + $0x23c] sm:$0xf]
  %v190 = vld [vmem:[%s1 + $0x240] sm:$0xf]
  %v191 = vld [vmem:[%s1 + $0x244] sm:$0xf]
  %v192 = vld [vmem:[%s1 + $0x248] sm:$0xf]
  %v193 = vld [vmem:[%s1 + $0x24c] sm:$0xf]
  %v194 = vld [vmem:[%s1 + $0x250] sm:$0xf]
  %v195 = vld [vmem:[%s1 + $0x254] sm:$0xf]
  %v196 = vld [vmem:[%s1 + $0x258] sm:$0xf]
  %v197 = vld [vmem:[%s1 + $0x25c] sm:$0xf]
  %v198 = vld [vmem:[%s1 + $0x260] sm:$0xf]
  %v199 = vld [vmem:[%s1 + $0x264] sm:$0xf]
  %v200 = vld [vmem:[%s1 + $0x268] sm:$0xf]
  %v201 = vld [vmem:[%s1 + $0x26c] sm:$0xf]
  %v202 = vld [vmem:[%s1 + $0x270] sm:$0xf]
  %v203 = vld [vmem:[%s1 + $0x274] sm:$0xf]
  %v204 = vld [vmem:[%s1 + $0x278] sm:$0xf]
  %v205 = vld [vmem:[%s1 + $0x27c] sm:$0xf]
  %v206 = vld [vmem:[%s1 + $0x280] sm:$0xf]
  %v207 = vld [vmem:[%s1 + $0x284] sm:$0xf]
  %v208 = vld [vmem:[%s1 + $0x288] sm:$0xf]
  %v209 = vld [vmem:[%s1 + $0x28c] sm:$0xf]
  %v210 = vld [vmem:[%s1 + $0x290] sm:$0xf]
  %v211 = vld [vmem:[%s1 + $0x294] sm:$0xf]
  %v212 = vld [vmem:[%s1 + $0x298] sm:$0xf]
  %v213 = vld [vmem:[%s1 + $0x29c] sm:$0xf]
  %v214 = vld [vmem:[%s1 + $0x2a0] sm:$0xf]
  %v215 = vld [vmem:[%s1 + $0x2a4] sm:$0xf]
  %v216 = vld [vmem:[%s1 + $0x2a8] sm:$0xf]
  %v217 = vld [vmem:[%s1 + $0x2ac] sm:$0xf]
  %v218 = vld [vmem:[%s1 + $0x2b0] sm:$0xf]
  %v219 = vld [vmem:[%s1 + $0x2b4] sm:$0xf]
  %v220 = vld [vmem:[%s1 + $0x2b8] sm:$0xf]
  %v221 = vld [vmem:[%s1 + $0x2bc] sm:$0xf]
  %v222 = vld [vmem:[%s1 + $0x2c0] sm:$0xf]
  %v223 = vld [vmem:[%s1 + $0x2c4] sm:$0xf]
  %v224 = vld [vmem:[%s1 + $0x2c8] sm:$0xf]
  %v225 = vld [vmem:[%s1 + $0x2cc] sm:$0xf]
  %v226 = vld [vmem:[%s1 + $0x2d0] sm:$0xf]
  %v227 = vld [vmem:[%s1 + $0x2d4] sm:$0xf]
  %v228 = vld [vmem:[%s1 + $0x2d8] sm:$0xf]
  %v229 = vld [vmem:[%s1 + $0x2dc] sm:$0xf]
  %v230 = vld [vmem:[%s1 + $0x2e0] sm:$0xf]
  %v231 = vld [vmem:[%s1 + $0x2e4] sm:$0xf]
  %v232 = vld [vmem:[%s1 + $0x2e8] sm:$0xf]
  %v233 = vld [vmem:[%s1 + $0x2ec] sm:$0xf]
  %v234 = vld [vmem:[%s1 + $0x2f0] sm:$0xf]
  %v235 = vld [vmem:[%s1 + $0x2f4] sm:$0xf]
  %v236 = vld [vmem:[%s1 + $0x2f8] sm:$0xf]
  %v237 = vld [vmem:[%s1 + $0x2fc] sm:$0xf]
  %v238 = vld [vmem:[%s1 + $0x300] sm:$0xf]
  %v239 = vld [vmem:[%s1 + $0x304] sm:$0xf]
  %v240 = vld [vmem:[%s1 + $0x308] sm:$0xf]
  %v241 = vld [vmem:[%s1 + $0x30c] sm:$0xf]
  %v242 = vld [vmem:[%s1 + $0x310] sm:$0xf]
  %v243 = vld [vmem:[%s1 + $0x314] sm:$0xf]
  %v244 = vld [vmem:[%s1 + $0x318] sm:$0xf]
  %v245 = vld [vmem:[%s1 + $0x31c] sm:$0xf]
  %v246 = vld [vmem:[%s1 + $0x320] sm:$0xf]
  %v247 = vld [vmem:[%s1 + $0x324] sm:$0xf]
  %v248 = vld [vmem:[%s1 + $0x328] sm:$0xf]
  %v249 = vld [vmem:[%s1 + $0x32c] sm:$0xf]
  %v250 = vld [vmem:[%s1 + $0x330] sm:$0xf]
  %v251 = vld [vmem:[%s1 + $0x334] sm:$0xf]
  %v252 = vld [vmem:[%s1 + $0x338] sm:$0xf]
  %v253 = vld [vmem:[%s1 + $0x33c] sm:$0xf]
  %v254 = vld [vmem:[%s1 + $0x340] sm:$0xf]
  %v255 = vld [vmem:[%s1 + $0x344] sm:$0xf]
  %v256 = vld [vmem:[%s1 + $0x348] sm:$0xf]
  %v257 = vld [vmem:[%s1 + $0x34c] sm:$0xf]
  %v258 = vld [vmem:[%s1 + $0x350] sm:$0xf]
  %v259 = vld [vmem:[%s1 + $0x354] sm:$0xf]
  %v260 = vld [vmem:[%s1 + $0x358] sm:$0xf]
  %v261 = vld [vmem:[%s1 + $0x35c] sm:$0xf]
  %v262 = vld [vmem:[%s1 + $0x360] sm:$0xf]
  %v263 = vld [vmem:[%s1 + $0x364] sm:$0xf]
  %v264 = vld [vmem:[%s1 + $0x368] sm:$0xf]
  %v265 = vld [vmem:[%s1 + $0x36c] sm:$0xf]
  %v266 = vld [vmem:[%s1 + $0x370] sm:$0xf]
  %v267 = vld [vmem:[%s1 + $0x374] sm:$0xf]
  %v268 = vld [vmem:[%s1 + $0x378] sm:$0xf]
  %v269 = vld [vmem:[%s1 + $0x37c] sm:$0xf]
  %v270 = vld [vmem:[%s1 + $0x380] sm:$0xf]
  %v271 = vld [vmem:[%s1 + $0x384] sm:$0xf]
  %v272 = vld [vmem:[%s1 + $0x388] sm:$0xf]
  %v273 = vld [vmem:[%s1 + $0x38c] sm:$0xf]
  %v274 = vld [vmem:[%s1 + $0x390] sm:$0xf]
  %v275 = vld [vmem:[%s1 + $0x394] sm:$0xf]
  %v276 = vld [vmem:[%s1 + $0x398] sm:$0xf]
  %v277 = vld [vmem:[%s1 + $0x39c] sm:$0xf]
  %v278 = vld [vmem:[%s1 + $0x3a0] sm:$0xf]
  %v279 = vld [vmem:[%s1 + $0x3a4] sm:$0xf]
  %v280 = vld [vmem:[%s1 + $0x3a8] sm:$0xf]
  %v281 = vld [vmem:[%s1 + $0x3ac] sm:$0xf]
  %v282 = vld [vmem:[%s1 + $0x3b0] sm:$0xf]
  %v283 = vld [vmem:[%s1 + $0x3b4] sm:$0xf]
  %v284 = vld [vmem:[%s1 + $0x3b8] sm:$0xf]
  %v285 = vld [vmem:[%s1 + $0x3bc] sm:$0xf]
  %v286 = vld [vmem:[%s1 + $0x3c0] sm:$0xf]
  %v287 = vld [vmem:[%s1 + $0x3c4] sm:$0xf]
  %v288 = vld [vmem:[%s1 + $0x3c8] sm:$0xf]
  %v289 = vld [vmem:[%s1 + $0x3cc] sm:$0xf]
  %v290 = vld [vmem:[%s1 + $0x3d0] sm:$0xf]
  %v291 = vld [vmem:[%s1 + $0x3d4] sm:$0xf]
  %v292 = vld [vmem:[%s1 + $0x3d8] sm:$0xf]
  %v293 = vld [vmem:[%s1 + $0x3dc] sm:$0xf]
  %v294 = vld [vmem:[%s1 + $0x3e0] sm:$0xf]
  %v295 = vld [vmem:[%s1 + $0x3e4] sm:$0xf]
  %v296 = vld [vmem:[%s1 + $0x3e8] sm:$0xf]
  %v297 = vld [vmem:[%s1 + $0x3ec] sm:$0xf]
  %v298 = vld [vmem:[%s1 + $0x3f0] sm:$0xf]
  %v299 = vld [vmem:[%s1 + $0x3f4] sm:$0xf]
  %v300 = vld [vmem:[%s1 + $0x3f8] sm:$0xf]
  %v301 = vld [vmem:[%s1 + $0x3fc] sm:$0xf]
  %v302 = vld [vmem:[%s1 + $0x400] sm:$0xf]
  %v303 = vld [vmem:[%s1 + $0x404] sm:$0xf]
  %v304 = vld [vmem:[%s1 + $0x408] sm:$0xf]
  %v305 = vld [vmem:[%s1 + $0x40c] sm:$0xf]
  %v306 = vld [vmem:[%s1 + $0x410] sm:$0xf]
  %v307 = vld [vmem:[%s1 + $0x414] sm:$0xf]
  %v308 = vld [vmem:[%s1 + $0x418] sm:$0xf]
  %v309 = vld [vmem:[%s1 + $0x41c] sm:$0xf]
  %v310 = vld [vmem:[%s1 + $0x420] sm:$0xf]
  %v311 = vld [vmem:[%s1 + $0x424] sm:$0xf]
  %v312 = vld [vmem:[%s1 + $0x428] sm:$0xf]
  %v313 = vld [vmem:[%s1 + $0x42c] sm:$0xf]
  %v314 = vld [vmem:[%s1 + $0x430] sm:$0xf]
  %v315 = vld [vmem:[%s1 + $0x434] sm:$0xf]
  %v316 = vld [vmem:[%s1 + $0x438] sm:$0xf]
  %v317 = vld [vmem:[%s1 + $0x43c] sm:$0xf]
  %v318 = vld [vmem:[%s1 + $0x440] sm:$0xf]
  %v319 = vld [vmem:[%s1 + $0x444] sm:$0xf]
  %v320 = vld [vmem:[%s1 + $0x448] sm:$0xf]
  %v321 = vld [vmem:[%s1 + $0x44c] sm:$0xf]
  %v322 = vld [vmem:[%s1 + $0x450] sm:$0xf]
  %v323 = vld [vmem:[%s1 + $0x454] sm:$0xf]
  %v324 = vld [vmem:[%s1 + $0x458] sm:$0xf]
  %v325 = vld [vmem:[%s1 + $0x45c] sm:$0xf]
  %v326 = vld [vmem:[%s1 + $0x460] sm:$0xf]
  %v327 = vld [vmem:[%s1 + $0x464] sm:$0xf]
  %v328 = vld [vmem:[%s1 + $0x468] sm:$0xf]
  %v329 = vld [vmem:[%s1 + $0x46c] sm:$0xf]
  %v330 = vld [vmem:[%s1 + $0x470] sm:$0xf]
  %v331 = vld [vmem:[%s1 + $0x474] sm:$0xf]
  %v332 = vld [vmem:[%s1 + $0x478] sm:$0xf]
  %v333 = vld [vmem:[%s1 + $0x47c] sm:$0xf]
  %v334 = vld [vmem:[%s1 + $0x480] sm:$0xf]
  %v335 = vld [vmem:[%s1 + $0x484] sm:$0xf]
  %v336 = vld [vmem:[%s1 + $0x488] sm:$0xf]
  %v337 = vld [vmem:[%s1 + $0x48c] sm:$0xf]
  %v338 = vld [vmem:[%s1 + $0x490] sm:$0xf]
  %v339 = vld [vmem:[%s1 + $0x494] sm:$0xf]
  %v340 = vld [vmem:[%s1 + $0x498] sm:$0xf]
  %v341 = vld [vmem:[%s1 + $0x49c] sm:$0xf]
  %v342 = vld [vmem:[%s1 + $0x4a0] sm:$0xf]
  %v343 = vld [vmem:[%s1 + $0x4a4] sm:$0xf]
  %v344 = vld [vmem:[%s1 + $0x4a8] sm:$0xf]
  %v345 = vld [vmem:[%s1 + $0x4ac] sm:$0xf]
  %v346 = vld [vmem:[%s1 + $0x4b0] sm:$0xf]
  %v347 = vld [vmem:[%s1 + $0x4b4] sm:$0xf]
  %v348 = vld [vmem:[%s1 + $0x4b8] sm:$0xf]
  %v349 = vld [vmem:[%s1 + $0x4bc] sm:$0xf]
  %v350 = vld [vmem:[%s1 + $0x4c0] sm:$0xf]
  %v351 = vld [vmem:[%s1 + $0x4c4] sm:$0xf]
  %v352 = vld [vmem:[%s1 + $0x4c8] sm:$0xf]
  %v353 = vld [vmem:[%s1 + $0x4cc] sm:$0xf]
  %v354 = vld [vmem:[%s1 + $0x4d0] sm:$0xf]
  %v355 = vld [vmem:[%s1 + $0x4d4] sm:$0xf]
  %v356 = vld [vmem:[%s1 + $0x4d8] sm:$0xf]
  %v357 = vld [vmem:[%s1 + $0x4dc] sm:$0xf]
  %v358 = vld [vmem:[%s1 + $0x4e0] sm:$0xf]
  %v359 = vld [vmem:[%s1 + $0x4e4] sm:$0xf]
  %v360 = vld [vmem:[%s1 + $0x4e8] sm:$0xf]
  %v361 = vld [vmem:[%s1 + $0x4ec] sm:$0xf]
  %v362 = vld [vmem:[%s1 + $0x4f0] sm:$0xf]
  %v363 = vld [vmem:[%s1 + $0x4f4] sm:$0xf]
  %v364 = vld [vmem:[%s1 + $0x4f8] sm:$0xf]
  %v365 = vld [vmem:[%s1 + $0x4fc] sm:$0xf]
  %v366 = vld [vmem:[%s1 + $0x500] sm:$0xf]
  %v367 = vld [vmem:[%s1 + $0x504] sm:$0xf]
  %v368 = vld [vmem:[%s1 + $0x508] sm:$0xf]
  %v369 = vld [vmem:[%s1 + $0x50c] sm:$0xf]
  %v370 = vld [vmem:[%s1 + $0x510] sm:$0xf]
  %v371 = vld [vmem:[%s1 + $0x514] sm:$0xf]
  %v372 = vld [vmem:[%s1 + $0x518] sm:$0xf]
  %v373 = vld [vmem:[%s1 + $0x51c] sm:$0xf]
  %v374 = vld [vmem:[%s1 + $0x520] sm:$0xf]
  %v375 = vld [vmem:[%s1 + $0x524] sm:$0xf]
  %v376 = vld [vmem:[%s1 + $0x528] sm:$0xf]
  %v377 = vld [vmem:[%s1 + $0x52c] sm:$0xf]
  %v378 = vld [vmem:[%s1 + $0x530] sm:$0xf]
  %v379 = vld [vmem:[%s1 + $0x534] sm:$0xf]
  %v380 = vld [vmem:[%s1 + $0x538] sm:$0xf]
  %v381 = vld [vmem:[%s1 + $0x53c] sm:$0xf]
  %v382 = vld [vmem:[%s1 + $0x540] sm:$0xf]
  %v383 = vld [vmem:[%s1 + $0x544] sm:$0xf]
  %v384 = vld [vmem:[%s1 + $0x548] sm:$0xf]
  %v385 = vld [vmem:[%s1 + $0x54c] sm:$0xf]
  %v386 = vld [vmem:[%s1 + $0x550] sm:$0xf]
  %v387 = vld [vmem:[%s1 + $0x554] sm:$0xf]
  %v388 = vld [vmem:[%s1 + $0x558] sm:$0xf]
  %v389 = vld [vmem:[%s1 + $0x55c] sm:$0xf]
  %v390 = vld [vmem:[%s1 + $0x560] sm:$0xf]
  %v391 = vld [vmem:[%s1 + $0x564] sm:$0xf]
  %v392 = vld [vmem:[%s1 + $0x568] sm:$0xf]
  %v393 = vld [vmem:[%s1 + $0x56c] sm:$0xf]
  %v394 = vld [vmem:[%s1 + $0x570] sm:$0xf]
  %v395 = vld [vmem:[%s1 + $0x574] sm:$0xf]
  %v396 = vld [vmem:[%s1 + $0x578] sm:$0xf]
  %v397 = vld [vmem:[%s1 + $0x57c] sm:$0xf]
  %v398 = vld [vmem:[%s1 + $0x580] sm:$0xf]
  %v399 = vld [vmem:[%s1 + $0x584] sm:$0xf]
  %v400 = vld [vmem:[%s1 + $0x588] sm:$0xf]
  %v401 = vld [vmem:[%s1 + $0x58c] sm:$0xf]
  %v402 = vld [vmem:[%s1 + $0x590] sm:$0xf]
  %v403 = vld [vmem:[%s1 + $0x594] sm:$0xf]
  %v404 = vld [vmem:[%s1 + $0x598] sm:$0xf]
  %v405 = vld [vmem:[%s1 + $0x59c] sm:$0xf]
  %v406 = vld [vmem:[%s1 + $0x5a0] sm:$0xf]
  %v407 = vld [vmem:[%s1 + $0x5a4] sm:$0xf]
  %v408 = vld [vmem:[%s1 + $0x5a8] sm:$0xf]
  %v409 = vld [vmem:[%s1 + $0x5ac] sm:$0xf]
  %v410 = vld [vmem:[%s1 + $0x5b0] sm:$0xf]
  %v411 = vld [vmem:[%s1 + $0x5b4] sm:$0xf]
  %v412 = vld [vmem:[%s1 + $0x5b8] sm:$0xf]
  %v413 = vld [vmem:[%s1 + $0x5bc] sm:$0xf]
  %v414 = vld [vmem:[%s1 + $0x5c0] sm:$0xf]
  %v415 = vld [vmem:[%s1 + $0x5c4] sm:$0xf]
  %v416 = vld [vmem:[%s1 + $0x5c8] sm:$0xf]
  %v417 = vld [vmem:[%s1 + $0x5cc] sm:$0xf]
  %v418 = vld [vmem:[%s1 + $0x5d0] sm:$0xf]
  %v419 = vld [vmem:[%s1 + $0x5d4] sm:$0xf]
  %v420 = vld [vmem:[%s1 + $0x5d8] sm:$0xf]
  %v421 = vld [vmem:[%s1 + $0x5dc] sm:$0xf]
  %v422 = vld [vmem:[%s1 + $0x5e0] sm:$0xf]
  %v423 = vld [vmem:[%s1 + $0x5e4] sm:$0xf]
  %v424 = vld [vmem:[%s1 + $0x5e8] sm:$0xf]
  %v425 = vld [vmem:[%s1 + $0x5ec] sm:$0xf]
  %v426 = vld [vmem:[%s1 + $0x5f0] sm:$0xf]
  %v427 = vld [vmem:[%s1 + $0x5f4] sm:$0xf]
  %v428 = vld [vmem:[%s1 + $0x5f8] sm:$0xf]
  %v429 = vld [vmem:[%s1 + $0x5fc] sm:$0xf]
  %v430 = vld [vmem:[%s1 + $0x600] sm:$0xf]
  %v431 = vld [vmem:[%s1 + $0x604] sm:$0xf]
  %v432 = vld [vmem:[%s1 + $0x608] sm:$0xf]
  %v433 = vld [vmem:[%s1 + $0x60c] sm:$0xf]
  %v434 = vld [vmem:[%s1 + $0x610] sm:$0xf]
  %v435 = vld [vmem:[%s1 + $0x614] sm:$0xf]
  %v436 = vld [vmem:[%s1 + $0x618] sm:$0xf]
  %v437 = vld [vmem:[%s1 + $0x61c] sm:$0xf]
  %v438 = vld [vmem:[%s1 + $0x620] sm:$0xf]
  %v439 = vld [vmem:[%s1 + $0x624] sm:$0xf]
  %v440 = vld [vmem:[%s1 + $0x628] sm:$0xf]
  %v441 = vld [vmem:[%s1 + $0x62c] sm:$0xf]
  %v442 = vld [vmem:[%s1 + $0x630] sm:$0xf]
  %v443 = vld [vmem:[%s1 + $0x634] sm:$0xf]
  %v444 = vld [vmem:[%s1 + $0x638] sm:$0xf]
  %v445 = vld [vmem:[%s1 + $0x63c] sm:$0xf]
  %v446 = vld [vmem:[%s1 + $0x640] sm:$0xf]
  %v447 = vld [vmem:[%s1 + $0x644] sm:$0xf]
  %v448 = vld [vmem:[%s1 + $0x648] sm:$0xf]
  %v449 = vld [vmem:[%s1 + $0x64c] sm:$0xf]
  %v450 = vld [vmem:[%s1 + $0x650] sm:$0xf]
  %v451 = vld [vmem:[%s1 + $0x654] sm:$0xf]
  %v452 = vld [vmem:[%s1 + $0x658] sm:$0xf]
  %v453 = vld [vmem:[%s1 + $0x65c] sm:$0xf]
  %v454 = vld [vmem:[%s1 + $0x660] sm:$0xf]
  %v455 = vld [vmem:[%s1 + $0x664] sm:$0xf]
  %v456 = vld [vmem:[%s1 + $0x668] sm:$0xf]
  %v457 = vld [vmem:[%s1 + $0x66c] sm:$0xf]
  %v458 = vld [vmem:[%s1 + $0x670] sm:$0xf]
  %v459 = vld [vmem:[%s1 + $0x674] sm:$0xf]
  %v460 = vld [vmem:[%s1 + $0x678] sm:$0xf]
  %v461 = vld [vmem:[%s1 + $0x67c] sm:$0xf]
  %v462 = vld [vmem:[%s2] sm:$0x1]
  %v464 = vperm.slane %v462, 0
  %v492 = vunpack.c.l.b16 %v20
  %v493 = vunpack.c.h.b16 %v20
  %v494 = vunpack.c.l.b16 %v21
  %v495 = vunpack.c.h.b16 %v21
  %v496 = vunpack.c.l.b16 %v22
  %v497 = vunpack.c.h.b16 %v22
  %v498 = vunpack.c.l.b16 %v23
  %v499 = vunpack.c.h.b16 %v23
  %v500 = vunpack.c.l.b16 %v24
  %v501 = vunpack.c.h.b16 %v24
  %v502 = vunpack.c.l.b16 %v25
  %v503 = vunpack.c.h.b16 %v25
  %v504 = vunpack.c.l.b16 %v26
  %v505 = vunpack.c.h.b16 %v26
  %v506 = vunpack.c.l.b16 %v27
  %v507 = vunpack.c.h.b16 %v27
  %v508 = vunpack.c.l.b16 %v28
  %v509 = vunpack.c.h.b16 %v28
  %v510 = vunpack.c.l.b16 %v29
  %v511 = vunpack.c.h.b16 %v29
  %v512 = vunpack.c.l.b16 %v30
  %v513 = vunpack.c.h.b16 %v30
  %v514 = vunpack.c.l.b16 %v31
  %v515 = vunpack.c.h.b16 %v31
  %v516 = vunpack.c.l.b16 %v32
  %v517 = vunpack.c.h.b16 %v32
  %v518 = vunpack.c.l.b16 %v33
  %v519 = vunpack.c.h.b16 %v33
  %v520 = vunpack.c.l.b16 %v34
  %v521 = vunpack.c.h.b16 %v34
  %v522 = vunpack.c.l.b16 %v35
  %v523 = vunpack.c.h.b16 %v35
  %v524 = vunpack.c.l.b16 %v36
  %v525 = vunpack.c.h.b16 %v36
  %v526 = vunpack.c.l.b16 %v37
  %v527 = vunpack.c.h.b16 %v37
  %v528 = vunpack.c.l.b16 %v38
  %v529 = vunpack.c.h.b16 %v38
  %v530 = vunpack.c.l.b16 %v39
  %v531 = vunpack.c.h.b16 %v39
  %v532 = vunpack.c.l.b16 %v40
  %v533 = vunpack.c.h.b16 %v40
  %v534 = vunpack.c.l.b16 %v41
  %v535 = vunpack.c.h.b16 %v41
  %v536 = vunpack.c.l.b16 %v42
  %v537 = vunpack.c.h.b16 %v42
  %v538 = vunpack.c.l.b16 %v43
  %v539 = vunpack.c.h.b16 %v43
  %v540 = vunpack.c.l.b16 %v44
  %v541 = vunpack.c.h.b16 %v44
  %v542 = vunpack.c.l.b16 %v45
  %v543 = vunpack.c.h.b16 %v45
  %v544 = vpack.c.b16 %v518, %v492
  %v545 = vpack.c.b16 %v519, %v493
  %v546 = vpack.c.b16 %v520, %v494
  %v547 = vpack.c.b16 %v521, %v495
  %v548 = vpack.c.b16 %v522, %v496
  %v549 = vpack.c.b16 %v523, %v497
  %v550 = vpack.c.b16 %v524, %v498
  %v551 = vpack.c.b16 %v525, %v499
  %v552 = vpack.c.b16 %v526, %v500
  %v553 = vpack.c.b16 %v527, %v501
  %v554 = vpack.c.b16 %v528, %v502
  %v555 = vpack.c.b16 %v529, %v503
  %v556 = vpack.c.b16 %v530, %v504
  %v557 = vpack.c.b16 %v531, %v505
  %v558 = vpack.c.b16 %v532, %v506
  %v559 = vpack.c.b16 %v533, %v507
  %v560 = vpack.c.b16 %v534, %v508
  %v561 = vpack.c.b16 %v535, %v509
  %v562 = vpack.c.b16 %v536, %v510
  %v563 = vpack.c.b16 %v537, %v511
  %v564 = vpack.c.b16 %v538, %v512
  %v565 = vpack.c.b16 %v539, %v513
  %v566 = vpack.c.b16 %v540, %v514
  %v567 = vpack.c.b16 %v541, %v515
  %v568 = vpack.c.b16 %v542, %v516
  %v569 = vpack.c.b16 %v543, %v517
  %v1012 = vunpack.c.l.b16 %v46
  %v1013 = vunpack.c.l.b16 %v47
  %v1014 = vunpack.c.l.b16 %v48
  %v1015 = vunpack.c.l.b16 %v49
  %v1016 = vunpack.c.l.b16 %v50
  %v1017 = vunpack.c.l.b16 %v51
  %v1018 = vunpack.c.l.b16 %v52
  %v1019 = vunpack.c.l.b16 %v53
  %v1020 = vunpack.c.l.b16 %v54
  %v1021 = vunpack.c.l.b16 %v55
  %v1022 = vunpack.c.l.b16 %v56
  %v1023 = vunpack.c.l.b16 %v57
  %v1024 = vunpack.c.l.b16 %v58
  %v1025 = vunpack.c.l.b16 %v59
  %v1026 = vunpack.c.l.b16 %v60
  %v1027 = vunpack.c.l.b16 %v61
  %v1028 = vunpack.c.l.b16 %v62
  %v1029 = vunpack.c.l.b16 %v63
  %v1030 = vunpack.c.l.b16 %v64
  %v1031 = vunpack.c.l.b16 %v65
  %v1032 = vunpack.c.l.b16 %v66
  %v1033 = vunpack.c.l.b16 %v67
  %v1034 = vunpack.c.l.b16 %v68
  %v1035 = vunpack.c.l.b16 %v69
  %v1036 = vunpack.c.l.b16 %v70
  %v1037 = vunpack.c.l.b16 %v71
  %v1038 = vunpack.c.l.b16 %v72
  %v1039 = vunpack.c.l.b16 %v73
  %v1040 = vunpack.c.l.b16 %v74
  %v1041 = vunpack.c.l.b16 %v75
  %v1042 = vunpack.c.l.b16 %v76
  %v1043 = vunpack.c.l.b16 %v77
  %v1044 = vunpack.c.l.b16 %v78
  %v1045 = vunpack.c.l.b16 %v79
  %v1046 = vunpack.c.l.b16 %v80
  %v1047 = vunpack.c.l.b16 %v81
  %v1048 = vunpack.c.l.b16 %v82
  %v1049 = vunpack.c.l.b16 %v83
  %v1050 = vunpack.c.l.b16 %v84
  %v1051 = vunpack.c.l.b16 %v85
  %v1052 = vunpack.c.l.b16 %v86
  %v1053 = vunpack.c.l.b16 %v87
  %v1054 = vunpack.c.l.b16 %v88
  %v1055 = vunpack.c.l.b16 %v89
  %v1056 = vunpack.c.l.b16 %v90
  %v1057 = vunpack.c.l.b16 %v91
  %v1058 = vunpack.c.l.b16 %v92
  %v1059 = vunpack.c.l.b16 %v93
  %v1060 = vunpack.c.l.b16 %v94
  %v1061 = vunpack.c.l.b16 %v95
  %v1062 = vunpack.c.l.b16 %v96
  %v1063 = vunpack.c.l.b16 %v97
  %v1064 = vunpack.c.l.b16 %v98
  %v1065 = vunpack.c.l.b16 %v99
  %v1066 = vunpack.c.l.b16 %v100
  %v1067 = vunpack.c.l.b16 %v101
  %v1068 = vunpack.c.l.b16 %v102
  %v1069 = vunpack.c.l.b16 %v103
  %v1070 = vunpack.c.l.b16 %v104
  %v1071 = vunpack.c.l.b16 %v105
  %v1072 = vunpack.c.l.b16 %v106
  %v1073 = vunpack.c.l.b16 %v107
  %v1074 = vunpack.c.l.b16 %v108
  %v1075 = vunpack.c.l.b16 %v109
  %v1076 = vunpack.c.l.b16 %v110
  %v1077 = vunpack.c.l.b16 %v111
  %v1078 = vunpack.c.l.b16 %v112
  %v1079 = vunpack.c.l.b16 %v113
  %v1080 = vunpack.c.l.b16 %v114
  %v1081 = vunpack.c.l.b16 %v115
  %v1082 = vunpack.c.l.b16 %v116
  %v1083 = vunpack.c.l.b16 %v117
  %v1084 = vunpack.c.l.b16 %v118
  %v1085 = vunpack.c.l.b16 %v119
  %v1086 = vunpack.c.l.b16 %v120
  %v1087 = vunpack.c.l.b16 %v121
  %v1088 = vunpack.c.l.b16 %v122
  %v1089 = vunpack.c.l.b16 %v123
  %v1090 = vunpack.c.l.b16 %v124
  %v1091 = vunpack.c.l.b16 %v125
  %v1092 = vunpack.c.l.b16 %v126
  %v1093 = vunpack.c.l.b16 %v127
  %v1094 = vunpack.c.l.b16 %v128
  %v1095 = vunpack.c.l.b16 %v129
  %v1096 = vunpack.c.l.b16 %v130
  %v1097 = vunpack.c.l.b16 %v131
  %v1098 = vunpack.c.l.b16 %v132
  %v1099 = vunpack.c.l.b16 %v133
  %v1100 = vunpack.c.l.b16 %v134
  %v1101 = vunpack.c.l.b16 %v135
  %v1102 = vunpack.c.l.b16 %v136
  %v1103 = vunpack.c.l.b16 %v137
  %v1104 = vunpack.c.l.b16 %v138
  %v1105 = vunpack.c.l.b16 %v139
  %v1106 = vunpack.c.l.b16 %v140
  %v1107 = vunpack.c.l.b16 %v141
  %v1108 = vunpack.c.l.b16 %v142
  %v1109 = vunpack.c.l.b16 %v143
  %v1110 = vunpack.c.l.b16 %v144
  %v1111 = vunpack.c.l.b16 %v145
  %v1112 = vunpack.c.l.b16 %v146
  %v1113 = vunpack.c.l.b16 %v147
  %v1114 = vunpack.c.l.b16 %v148
  %v1115 = vunpack.c.l.b16 %v149
  %v1116 = vunpack.c.l.b16 %v150
  %v1117 = vunpack.c.l.b16 %v151
  %v1118 = vunpack.c.l.b16 %v152
  %v1119 = vunpack.c.l.b16 %v153
  %v1120 = vunpack.c.l.b16 %v154
  %v1121 = vunpack.c.l.b16 %v155
  %v1122 = vunpack.c.l.b16 %v156
  %v1123 = vunpack.c.l.b16 %v157
  %v1124 = vunpack.c.l.b16 %v158
  %v1125 = vunpack.c.l.b16 %v159
  %v1126 = vunpack.c.l.b16 %v160
  %v1127 = vunpack.c.l.b16 %v161
  %v1128 = vunpack.c.l.b16 %v162
  %v1129 = vunpack.c.l.b16 %v163
  %v1130 = vunpack.c.l.b16 %v164
  %v1131 = vunpack.c.l.b16 %v165
  %v1132 = vunpack.c.l.b16 %v166
  %v1133 = vunpack.c.l.b16 %v167
  %v1134 = vunpack.c.l.b16 %v168
  %v1135 = vunpack.c.l.b16 %v169
  %v1136 = vunpack.c.l.b16 %v170
  %v1137 = vunpack.c.l.b16 %v171
  %v1138 = vunpack.c.l.b16 %v172
  %v1139 = vunpack.c.l.b16 %v173
  %v1140 = vunpack.c.l.b16 %v174
  %v1141 = vunpack.c.l.b16 %v175
  %v1142 = vunpack.c.l.b16 %v176
  %v1143 = vunpack.c.l.b16 %v177
  %v1144 = vunpack.c.l.b16 %v178
  %v1145 = vunpack.c.l.b16 %v179
  %v1146 = vunpack.c.l.b16 %v180
  %v1147 = vunpack.c.l.b16 %v181
  %v1148 = vunpack.c.l.b16 %v182
  %v1149 = vunpack.c.l.b16 %v183
  %v1150 = vunpack.c.l.b16 %v184
  %v1151 = vunpack.c.l.b16 %v185
  %v1152 = vunpack.c.l.b16 %v186
  %v1153 = vunpack.c.l.b16 %v187
  %v1154 = vunpack.c.l.b16 %v188
  %v1155 = vunpack.c.l.b16 %v189
  %v1156 = vunpack.c.l.b16 %v190
  %v1157 = vunpack.c.l.b16 %v191
  %v1158 = vunpack.c.l.b16 %v192
  %v1159 = vunpack.c.l.b16 %v193
  %v1160 = vunpack.c.l.b16 %v194
  %v1161 = vunpack.c.l.b16 %v195
  %v1162 = vunpack.c.l.b16 %v196
  %v1163 = vunpack.c.l.b16 %v197
  %v1164 = vunpack.c.l.b16 %v198
  %v1165 = vunpack.c.l.b16 %v199
  %v1166 = vunpack.c.l.b16 %v200
  %v1167 = vunpack.c.l.b16 %v201
  %v1168 = vunpack.c.l.b16 %v202
  %v1169 = vunpack.c.l.b16 %v203
  %v1170 = vunpack.c.l.b16 %v204
  %v1171 = vunpack.c.l.b16 %v205
  %v1172 = vunpack.c.l.b16 %v206
  %v1173 = vunpack.c.l.b16 %v207
  %v1174 = vunpack.c.l.b16 %v208
  %v1175 = vunpack.c.l.b16 %v209
  %v1176 = vunpack.c.l.b16 %v210
  %v1177 = vunpack.c.l.b16 %v211
  %v1178 = vunpack.c.l.b16 %v212
  %v1179 = vunpack.c.l.b16 %v213
  %v1180 = vunpack.c.l.b16 %v214
  %v1181 = vunpack.c.l.b16 %v215
  %v1182 = vunpack.c.l.b16 %v216
  %v1183 = vunpack.c.l.b16 %v217
  %v1184 = vunpack.c.l.b16 %v218
  %v1185 = vunpack.c.l.b16 %v219
  %v1186 = vunpack.c.l.b16 %v220
  %v1187 = vunpack.c.l.b16 %v221
  %v1188 = vunpack.c.l.b16 %v222
  %v1189 = vunpack.c.l.b16 %v223
  %v1190 = vunpack.c.l.b16 %v224
  %v1191 = vunpack.c.l.b16 %v225
  %v1192 = vunpack.c.l.b16 %v226
  %v1193 = vunpack.c.l.b16 %v227
  %v1194 = vunpack.c.l.b16 %v228
  %v1195 = vunpack.c.l.b16 %v229
  %v1196 = vunpack.c.l.b16 %v230
  %v1197 = vunpack.c.l.b16 %v231
  %v1198 = vunpack.c.l.b16 %v232
  %v1199 = vunpack.c.l.b16 %v233
  %v1200 = vunpack.c.l.b16 %v234
  %v1201 = vunpack.c.l.b16 %v235
  %v1202 = vunpack.c.l.b16 %v236
  %v1203 = vunpack.c.l.b16 %v237
  %v1204 = vunpack.c.l.b16 %v238
  %v1205 = vunpack.c.l.b16 %v239
  %v1206 = vunpack.c.l.b16 %v240
  %v1207 = vunpack.c.l.b16 %v241
  %v1208 = vunpack.c.l.b16 %v242
  %v1209 = vunpack.c.l.b16 %v243
  %v1210 = vunpack.c.l.b16 %v244
  %v1211 = vunpack.c.l.b16 %v245
  %v1212 = vunpack.c.l.b16 %v246
  %v1213 = vunpack.c.l.b16 %v247
  %v1214 = vunpack.c.l.b16 %v248
  %v1215 = vunpack.c.l.b16 %v249
  %v1216 = vunpack.c.l.b16 %v250
  %v1217 = vunpack.c.l.b16 %v251
  %v1218 = vunpack.c.l.b16 %v252
  %v1219 = vunpack.c.l.b16 %v253
  %v1220 = vunpack.c.l.b16 %v254
  %v1221 = vunpack.c.l.b16 %v255
  %v1222 = vunpack.c.l.b16 %v256
  %v1223 = vunpack.c.l.b16 %v257
  %v1224 = vunpack.c.l.b16 %v258
  %v1225 = vunpack.c.l.b16 %v259
  %v1226 = vunpack.c.l.b16 %v260
  %v1227 = vunpack.c.l.b16 %v261
  %v1228 = vunpack.c.l.b16 %v262
  %v1229 = vunpack.c.l.b16 %v263
  %v1230 = vunpack.c.l.b16 %v264
  %v1231 = vunpack.c.l.b16 %v265
  %v1232 = vunpack.c.l.b16 %v266
  %v1233 = vunpack.c.l.b16 %v267
  %v1234 = vunpack.c.l.b16 %v268
  %v1235 = vunpack.c.l.b16 %v269
  %v1236 = vunpack.c.l.b16 %v270
  %v1237 = vunpack.c.l.b16 %v271
  %v1238 = vunpack.c.l.b16 %v272
  %v1239 = vunpack.c.l.b16 %v273
  %v1240 = vunpack.c.l.b16 %v274
  %v1241 = vunpack.c.l.b16 %v275
  %v1242 = vunpack.c.l.b16 %v276
  %v1243 = vunpack.c.l.b16 %v277
  %v1244 = vunpack.c.l.b16 %v278
  %v1245 = vunpack.c.l.b16 %v279
  %v1246 = vunpack.c.l.b16 %v280
  %v1247 = vunpack.c.l.b16 %v281
  %v1248 = vunpack.c.l.b16 %v282
  %v1249 = vunpack.c.l.b16 %v283
  %v1250 = vunpack.c.l.b16 %v284
  %v1251 = vunpack.c.l.b16 %v285
  %v1252 = vunpack.c.l.b16 %v286
  %v1253 = vunpack.c.l.b16 %v287
  %v1254 = vunpack.c.l.b16 %v288
  %v1255 = vunpack.c.l.b16 %v289
  %v1256 = vunpack.c.l.b16 %v290
  %v1257 = vunpack.c.l.b16 %v291
  %v1258 = vunpack.c.l.b16 %v292
  %v1259 = vunpack.c.l.b16 %v293
  %v1260 = vunpack.c.l.b16 %v294
  %v1261 = vunpack.c.l.b16 %v295
  %v1262 = vunpack.c.l.b16 %v296
  %v1263 = vunpack.c.l.b16 %v297
  %v1264 = vunpack.c.l.b16 %v298
  %v1265 = vunpack.c.l.b16 %v299
  %v1266 = vunpack.c.l.b16 %v300
  %v1267 = vunpack.c.l.b16 %v301
  %v1268 = vunpack.c.l.b16 %v302
  %v1269 = vunpack.c.l.b16 %v303
  %v1270 = vunpack.c.l.b16 %v304
  %v1271 = vunpack.c.l.b16 %v305
  %v1272 = vunpack.c.l.b16 %v306
  %v1273 = vunpack.c.l.b16 %v307
  %v1274 = vunpack.c.l.b16 %v308
  %v1275 = vunpack.c.l.b16 %v309
  %v1276 = vunpack.c.l.b16 %v310
  %v1277 = vunpack.c.l.b16 %v311
  %v1278 = vunpack.c.l.b16 %v312
  %v1279 = vunpack.c.l.b16 %v313
  %v1280 = vunpack.c.l.b16 %v314
  %v1281 = vunpack.c.l.b16 %v315
  %v1282 = vunpack.c.l.b16 %v316
  %v1283 = vunpack.c.l.b16 %v317
  %v1284 = vunpack.c.l.b16 %v318
  %v1285 = vunpack.c.l.b16 %v319
  %v1286 = vunpack.c.l.b16 %v320
  %v1287 = vunpack.c.l.b16 %v321
  %v1288 = vunpack.c.l.b16 %v322
  %v1289 = vunpack.c.l.b16 %v323
  %v1290 = vunpack.c.l.b16 %v324
  %v1291 = vunpack.c.l.b16 %v325
  %v1292 = vunpack.c.l.b16 %v326
  %v1293 = vunpack.c.l.b16 %v327
  %v1294 = vunpack.c.l.b16 %v328
  %v1295 = vunpack.c.l.b16 %v329
  %v1296 = vunpack.c.l.b16 %v330
  %v1297 = vunpack.c.l.b16 %v331
  %v1298 = vunpack.c.l.b16 %v332
  %v1299 = vunpack.c.l.b16 %v333
  %v1300 = vunpack.c.l.b16 %v334
  %v1301 = vunpack.c.l.b16 %v335
  %v1302 = vunpack.c.l.b16 %v336
  %v1303 = vunpack.c.l.b16 %v337
  %v1304 = vunpack.c.l.b16 %v338
  %v1305 = vunpack.c.l.b16 %v339
  %v1306 = vunpack.c.l.b16 %v340
  %v1307 = vunpack.c.l.b16 %v341
  %v1308 = vunpack.c.l.b16 %v342
  %v1309 = vunpack.c.l.b16 %v343
  %v1310 = vunpack.c.l.b16 %v344
  %v1311 = vunpack.c.l.b16 %v345
  %v1312 = vunpack.c.l.b16 %v346
  %v1313 = vunpack.c.l.b16 %v347
  %v1314 = vunpack.c.l.b16 %v348
  %v1315 = vunpack.c.l.b16 %v349
  %v1316 = vunpack.c.l.b16 %v350
  %v1317 = vunpack.c.l.b16 %v351
  %v1318 = vunpack.c.l.b16 %v352
  %v1319 = vunpack.c.l.b16 %v353
  %v1320 = vunpack.c.l.b16 %v354
  %v1321 = vunpack.c.l.b16 %v355
  %v1322 = vunpack.c.l.b16 %v356
  %v1323 = vunpack.c.l.b16 %v357
  %v1324 = vunpack.c.l.b16 %v358
  %v1325 = vunpack.c.l.b16 %v359
  %v1326 = vunpack.c.l.b16 %v360
  %v1327 = vunpack.c.l.b16 %v361
  %v1328 = vunpack.c.l.b16 %v362
  %v1329 = vunpack.c.l.b16 %v363
  %v1330 = vunpack.c.l.b16 %v364
  %v1331 = vunpack.c.l.b16 %v365
  %v1332 = vunpack.c.l.b16 %v366
  %v1333 = vunpack.c.l.b16 %v367
  %v1334 = vunpack.c.l.b16 %v368
  %v1335 = vunpack.c.l.b16 %v369
  %v1336 = vunpack.c.l.b16 %v370
  %v1337 = vunpack.c.l.b16 %v371
  %v1338 = vunpack.c.l.b16 %v372
  %v1339 = vunpack.c.l.b16 %v373
  %v1340 = vunpack.c.l.b16 %v374
  %v1341 = vunpack.c.l.b16 %v375
  %v1342 = vunpack.c.l.b16 %v376
  %v1343 = vunpack.c.l.b16 %v377
  %v1344 = vunpack.c.l.b16 %v378
  %v1345 = vunpack.c.l.b16 %v379
  %v1346 = vunpack.c.l.b16 %v380
  %v1347 = vunpack.c.l.b16 %v381
  %v1348 = vunpack.c.l.b16 %v382
  %v1349 = vunpack.c.l.b16 %v383
  %v1350 = vunpack.c.l.b16 %v384
  %v1351 = vunpack.c.l.b16 %v385
  %v1352 = vunpack.c.l.b16 %v386
  %v1353 = vunpack.c.l.b16 %v387
  %v1354 = vunpack.c.l.b16 %v388
  %v1355 = vunpack.c.l.b16 %v389
  %v1356 = vunpack.c.l.b16 %v390
  %v1357 = vunpack.c.l.b16 %v391
  %v1358 = vunpack.c.l.b16 %v392
  %v1359 = vunpack.c.l.b16 %v393
  %v1360 = vunpack.c.l.b16 %v394
  %v1361 = vunpack.c.l.b16 %v395
  %v1362 = vunpack.c.l.b16 %v396
  %v1363 = vunpack.c.l.b16 %v397
  %v1364 = vunpack.c.l.b16 %v398
  %v1365 = vunpack.c.l.b16 %v399
  %v1366 = vunpack.c.l.b16 %v400
  %v1367 = vunpack.c.l.b16 %v401
  %v1368 = vunpack.c.l.b16 %v402
  %v1369 = vunpack.c.l.b16 %v403
  %v1370 = vunpack.c.l.b16 %v404
  %v1371 = vunpack.c.l.b16 %v405
  %v1372 = vunpack.c.l.b16 %v406
  %v1373 = vunpack.c.l.b16 %v407
  %v1374 = vunpack.c.l.b16 %v408
  %v1375 = vunpack.c.l.b16 %v409
  %v1376 = vunpack.c.l.b16 %v410
  %v1377 = vunpack.c.l.b16 %v411
  %v1378 = vunpack.c.l.b16 %v412
  %v1379 = vunpack.c.l.b16 %v413
  %v1380 = vunpack.c.l.b16 %v414
  %v1381 = vunpack.c.l.b16 %v415
  %v1382 = vunpack.c.l.b16 %v416
  %v1383 = vunpack.c.l.b16 %v417
  %v1384 = vunpack.c.l.b16 %v418
  %v1385 = vunpack.c.l.b16 %v419
  %v1386 = vunpack.c.l.b16 %v420
  %v1387 = vunpack.c.l.b16 %v421
  %v1388 = vunpack.c.l.b16 %v422
  %v1389 = vunpack.c.l.b16 %v423
  %v1390 = vunpack.c.l.b16 %v424
  %v1391 = vunpack.c.l.b16 %v425
  %v1392 = vunpack.c.l.b16 %v426
  %v1393 = vunpack.c.l.b16 %v427
  %v1394 = vunpack.c.l.b16 %v428
  %v1395 = vunpack.c.l.b16 %v429
  %v1396 = vunpack.c.l.b16 %v430
  %v1397 = vunpack.c.l.b16 %v431
  %v1398 = vunpack.c.l.b16 %v432
  %v1399 = vunpack.c.l.b16 %v433
  %v1400 = vunpack.c.l.b16 %v434
  %v1401 = vunpack.c.l.b16 %v435
  %v1402 = vunpack.c.l.b16 %v436
  %v1403 = vunpack.c.l.b16 %v437
  %v1404 = vunpack.c.l.b16 %v438
  %v1405 = vunpack.c.l.b16 %v439
  %v1406 = vunpack.c.l.b16 %v440
  %v1407 = vunpack.c.l.b16 %v441
  %v1408 = vunpack.c.l.b16 %v442
  %v1409 = vunpack.c.l.b16 %v443
  %v1410 = vunpack.c.l.b16 %v444
  %v1411 = vunpack.c.l.b16 %v445
  %v1412 = vunpack.c.l.b16 %v446
  %v1413 = vunpack.c.l.b16 %v447
  %v1414 = vunpack.c.l.b16 %v448
  %v1415 = vunpack.c.l.b16 %v449
  %v1416 = vunpack.c.l.b16 %v450
  %v1417 = vunpack.c.l.b16 %v451
  %v1418 = vunpack.c.l.b16 %v452
  %v1419 = vunpack.c.l.b16 %v453
  %v1420 = vunpack.c.l.b16 %v454
  %v1421 = vunpack.c.l.b16 %v455
  %v1422 = vunpack.c.l.b16 %v456
  %v1423 = vunpack.c.l.b16 %v457
  %v1424 = vunpack.c.l.b16 %v458
  %v1425 = vunpack.c.l.b16 %v459
  %v1426 = vunpack.c.l.b16 %v460
  %v1427 = vunpack.c.l.b16 %v461
  %v1428 = vpack.c.b16 %v1013, %v1012
  %v1429 = vpack.c.b16 %v1015, %v1014
  %v1430 = vpack.c.b16 %v1017, %v1016
  %v1431 = vpack.c.b16 %v1019, %v1018
  %v1432 = vpack.c.b16 %v1021, %v1020
  %v1433 = vpack.c.b16 %v1023, %v1022
  %v1434 = vpack.c.b16 %v1025, %v1024
  %v1435 = vpack.c.b16 %v1027, %v1026
  %v1436 = vpack.c.b16 %v1029, %v1028
  %v1437 = vpack.c.b16 %v1031, %v1030
  %v1438 = vpack.c.b16 %v1033, %v1032
  %v1439 = vpack.c.b16 %v1035, %v1034
  %v1440 = vpack.c.b16 %v1037, %v1036
  %v1441 = vpack.c.b16 %v1039, %v1038
  %v1442 = vpack.c.b16 %v1041, %v1040
  %v1443 = vpack.c.b16 %v1043, %v1042
  %v1444 = vpack.c.b16 %v1045, %v1044
  %v1445 = vpack.c.b16 %v1047, %v1046
  %v1446 = vpack.c.b16 %v1049, %v1048
  %v1447 = vpack.c.b16 %v1051, %v1050
  %v1448 = vpack.c.b16 %v1053, %v1052
  %v1449 = vpack.c.b16 %v1055, %v1054
  %v1450 = vpack.c.b16 %v1057, %v1056
  %v1451 = vpack.c.b16 %v1059, %v1058
  %v1452 = vpack.c.b16 %v1061, %v1060
  %v1453 = vpack.c.b16 %v1063, %v1062
  %v1454 = vpack.c.b16 %v1065, %v1064
  %v1455 = vpack.c.b16 %v1067, %v1066
  %v1456 = vpack.c.b16 %v1069, %v1068
  %v1457 = vpack.c.b16 %v1071, %v1070
  %v1458 = vpack.c.b16 %v1073, %v1072
  %v1459 = vpack.c.b16 %v1075, %v1074
  %v1460 = vpack.c.b16 %v1077, %v1076
  %v1461 = vpack.c.b16 %v1079, %v1078
  %v1462 = vpack.c.b16 %v1081, %v1080
  %v1463 = vpack.c.b16 %v1083, %v1082
  %v1464 = vpack.c.b16 %v1085, %v1084
  %v1465 = vpack.c.b16 %v1087, %v1086
  %v1466 = vpack.c.b16 %v1089, %v1088
  %v1467 = vpack.c.b16 %v1091, %v1090
  %v1468 = vpack.c.b16 %v1093, %v1092
  %v1469 = vpack.c.b16 %v1095, %v1094
  %v1470 = vpack.c.b16 %v1097, %v1096
  %v1471 = vpack.c.b16 %v1099, %v1098
  %v1472 = vpack.c.b16 %v1101, %v1100
  %v1473 = vpack.c.b16 %v1103, %v1102
  %v1474 = vpack.c.b16 %v1105, %v1104
  %v1475 = vpack.c.b16 %v1107, %v1106
  %v1476 = vpack.c.b16 %v1109, %v1108
  %v1477 = vpack.c.b16 %v1111, %v1110
  %v1478 = vpack.c.b16 %v1113, %v1112
  %v1479 = vpack.c.b16 %v1115, %v1114
  %v1480 = vpack.c.b16 %v1117, %v1116
  %v1481 = vpack.c.b16 %v1119, %v1118
  %v1482 = vpack.c.b16 %v1121, %v1120
  %v1483 = vpack.c.b16 %v1123, %v1122
  %v1484 = vpack.c.b16 %v1125, %v1124
  %v1485 = vpack.c.b16 %v1127, %v1126
  %v1486 = vpack.c.b16 %v1129, %v1128
  %v1487 = vpack.c.b16 %v1131, %v1130
  %v1488 = vpack.c.b16 %v1133, %v1132
  %v1489 = vpack.c.b16 %v1135, %v1134
  %v1490 = vpack.c.b16 %v1137, %v1136
  %v1491 = vpack.c.b16 %v1139, %v1138
  %v1492 = vpack.c.b16 %v1141, %v1140
  %v1493 = vpack.c.b16 %v1143, %v1142
  %v1494 = vpack.c.b16 %v1145, %v1144
  %v1495 = vpack.c.b16 %v1147, %v1146
  %v1496 = vpack.c.b16 %v1149, %v1148
  %v1497 = vpack.c.b16 %v1151, %v1150
  %v1498 = vpack.c.b16 %v1153, %v1152
  %v1499 = vpack.c.b16 %v1155, %v1154
  %v1500 = vpack.c.b16 %v1157, %v1156
  %v1501 = vpack.c.b16 %v1159, %v1158
  %v1502 = vpack.c.b16 %v1161, %v1160
  %v1503 = vpack.c.b16 %v1163, %v1162
  %v1504 = vpack.c.b16 %v1165, %v1164
  %v1505 = vpack.c.b16 %v1167, %v1166
  %v1506 = vpack.c.b16 %v1169, %v1168
  %v1507 = vpack.c.b16 %v1171, %v1170
  %v1508 = vpack.c.b16 %v1173, %v1172
  %v1509 = vpack.c.b16 %v1175, %v1174
  %v1510 = vpack.c.b16 %v1177, %v1176
  %v1511 = vpack.c.b16 %v1179, %v1178
  %v1512 = vpack.c.b16 %v1181, %v1180
  %v1513 = vpack.c.b16 %v1183, %v1182
  %v1514 = vpack.c.b16 %v1185, %v1184
  %v1515 = vpack.c.b16 %v1187, %v1186
  %v1516 = vpack.c.b16 %v1189, %v1188
  %v1517 = vpack.c.b16 %v1191, %v1190
  %v1518 = vpack.c.b16 %v1193, %v1192
  %v1519 = vpack.c.b16 %v1195, %v1194
  %v1520 = vpack.c.b16 %v1197, %v1196
  %v1521 = vpack.c.b16 %v1199, %v1198
  %v1522 = vpack.c.b16 %v1201, %v1200
  %v1523 = vpack.c.b16 %v1203, %v1202
  %v1524 = vpack.c.b16 %v1205, %v1204
  %v1525 = vpack.c.b16 %v1207, %v1206
  %v1526 = vpack.c.b16 %v1209, %v1208
  %v1527 = vpack.c.b16 %v1211, %v1210
  %v1528 = vpack.c.b16 %v1213, %v1212
  %v1529 = vpack.c.b16 %v1215, %v1214
  %v1530 = vpack.c.b16 %v1217, %v1216
  %v1531 = vpack.c.b16 %v1219, %v1218
  %v1532 = vpack.c.b16 %v1221, %v1220
  %v1533 = vpack.c.b16 %v1223, %v1222
  %v1534 = vpack.c.b16 %v1225, %v1224
  %v1535 = vpack.c.b16 %v1227, %v1226
  %v1536 = vpack.c.b16 %v1229, %v1228
  %v1537 = vpack.c.b16 %v1231, %v1230
  %v1538 = vpack.c.b16 %v1233, %v1232
  %v1539 = vpack.c.b16 %v1235, %v1234
  %v1540 = vpack.c.b16 %v1237, %v1236
  %v1541 = vpack.c.b16 %v1239, %v1238
  %v1542 = vpack.c.b16 %v1241, %v1240
  %v1543 = vpack.c.b16 %v1243, %v1242
  %v1544 = vpack.c.b16 %v1245, %v1244
  %v1545 = vpack.c.b16 %v1247, %v1246
  %v1546 = vpack.c.b16 %v1249, %v1248
  %v1547 = vpack.c.b16 %v1251, %v1250
  %v1548 = vpack.c.b16 %v1253, %v1252
  %v1549 = vpack.c.b16 %v1255, %v1254
  %v1550 = vpack.c.b16 %v1257, %v1256
  %v1551 = vpack.c.b16 %v1259, %v1258
  %v1552 = vpack.c.b16 %v1261, %v1260
  %v1553 = vpack.c.b16 %v1263, %v1262
  %v1554 = vpack.c.b16 %v1265, %v1264
  %v1555 = vpack.c.b16 %v1267, %v1266
  %v1556 = vpack.c.b16 %v1269, %v1268
  %v1557 = vpack.c.b16 %v1271, %v1270
  %v1558 = vpack.c.b16 %v1273, %v1272
  %v1559 = vpack.c.b16 %v1275, %v1274
  %v1560 = vpack.c.b16 %v1277, %v1276
  %v1561 = vpack.c.b16 %v1279, %v1278
  %v1562 = vpack.c.b16 %v1281, %v1280
  %v1563 = vpack.c.b16 %v1283, %v1282
  %v1564 = vpack.c.b16 %v1285, %v1284
  %v1565 = vpack.c.b16 %v1287, %v1286
  %v1566 = vpack.c.b16 %v1289, %v1288
  %v1567 = vpack.c.b16 %v1291, %v1290
  %v1568 = vpack.c.b16 %v1293, %v1292
  %v1569 = vpack.c.b16 %v1295, %v1294
  %v1570 = vpack.c.b16 %v1297, %v1296
  %v1571 = vpack.c.b16 %v1299, %v1298
  %v1572 = vpack.c.b16 %v1301, %v1300
  %v1573 = vpack.c.b16 %v1303, %v1302
  %v1574 = vpack.c.b16 %v1305, %v1304
  %v1575 = vpack.c.b16 %v1307, %v1306
  %v1576 = vpack.c.b16 %v1309, %v1308
  %v1577 = vpack.c.b16 %v1311, %v1310
  %v1578 = vpack.c.b16 %v1313, %v1312
  %v1579 = vpack.c.b16 %v1315, %v1314
  %v1580 = vpack.c.b16 %v1317, %v1316
  %v1581 = vpack.c.b16 %v1319, %v1318
  %v1582 = vpack.c.b16 %v1321, %v1320
  %v1583 = vpack.c.b16 %v1323, %v1322
  %v1584 = vpack.c.b16 %v1325, %v1324
  %v1585 = vpack.c.b16 %v1327, %v1326
  %v1586 = vpack.c.b16 %v1329, %v1328
  %v1587 = vpack.c.b16 %v1331, %v1330
  %v1588 = vpack.c.b16 %v1333, %v1332
  %v1589 = vpack.c.b16 %v1335, %v1334
  %v1590 = vpack.c.b16 %v1337, %v1336
  %v1591 = vpack.c.b16 %v1339, %v1338
  %v1592 = vpack.c.b16 %v1341, %v1340
  %v1593 = vpack.c.b16 %v1343, %v1342
  %v1594 = vpack.c.b16 %v1345, %v1344
  %v1595 = vpack.c.b16 %v1347, %v1346
  %v1596 = vpack.c.b16 %v1349, %v1348
  %v1597 = vpack.c.b16 %v1351, %v1350
  %v1598 = vpack.c.b16 %v1353, %v1352
  %v1599 = vpack.c.b16 %v1355, %v1354
  %v1600 = vpack.c.b16 %v1357, %v1356
  %v1601 = vpack.c.b16 %v1359, %v1358
  %v1602 = vpack.c.b16 %v1361, %v1360
  %v1603 = vpack.c.b16 %v1363, %v1362
  %v1604 = vpack.c.b16 %v1365, %v1364
  %v1605 = vpack.c.b16 %v1367, %v1366
  %v1606 = vpack.c.b16 %v1369, %v1368
  %v1607 = vpack.c.b16 %v1371, %v1370
  %v1608 = vpack.c.b16 %v1373, %v1372
  %v1609 = vpack.c.b16 %v1375, %v1374
  %v1610 = vpack.c.b16 %v1377, %v1376
  %v1611 = vpack.c.b16 %v1379, %v1378
  %v1612 = vpack.c.b16 %v1381, %v1380
  %v1613 = vpack.c.b16 %v1383, %v1382
  %v1614 = vpack.c.b16 %v1385, %v1384
  %v1615 = vpack.c.b16 %v1387, %v1386
  %v1616 = vpack.c.b16 %v1389, %v1388
  %v1617 = vpack.c.b16 %v1391, %v1390
  %v1618 = vpack.c.b16 %v1393, %v1392
  %v1619 = vpack.c.b16 %v1395, %v1394
  %v1620 = vpack.c.b16 %v1397, %v1396
  %v1621 = vpack.c.b16 %v1399, %v1398
  %v1622 = vpack.c.b16 %v1401, %v1400
  %v1623 = vpack.c.b16 %v1403, %v1402
  %v1624 = vpack.c.b16 %v1405, %v1404
  %v1625 = vpack.c.b16 %v1407, %v1406
  %v1626 = vpack.c.b16 %v1409, %v1408
  %v1627 = vpack.c.b16 %v1411, %v1410
  %v1628 = vpack.c.b16 %v1413, %v1412
  %v1629 = vpack.c.b16 %v1415, %v1414
  %v1630 = vpack.c.b16 %v1417, %v1416
  %v1631 = vpack.c.b16 %v1419, %v1418
  %v1632 = vpack.c.b16 %v1421, %v1420
  %v1633 = vpack.c.b16 %v1423, %v1422
  %v1634 = vpack.c.b16 %v1425, %v1424
  %v1635 = vpack.c.b16 %v1427, %v1426
  %1844 = vmatpush.bf16.msra.mxu0 %v1435
  %1845 = vmatpush.bf16.msra.mxu0 %v1434
  %1846 = vmatpush.bf16.msra.mxu0 %v1433
  %1847 = vmatpush.bf16.msra.mxu0 %v1432
  %1848 = vmatpush.bf16.msra.mxu0 %v1431
  %1849 = vmatpush.bf16.msra.mxu0 %v1430
  %1850 = vmatpush.bf16.msra.mxu0 %v1429
  %1851 = vmatpush.bf16.msra.mxu0 %v1428
  %1852 = vmatmul.bf16.gmra.mxu0 %v544
  %v1853 = vpop.f32.mrf.mxu0
  %v1854 = vadd.f32 %v464, %v1853
  %v1855 = vpop.f32.mrf.mxu0
  %v1856 = vadd.f32 %v464, %v1855
  %1857 = vdwg.mxu0
  %1858 = vmatpush.bf16.msra.mxu0 %v1443
  %1859 = vmatpush.bf16.msra.mxu0 %v1442
  %1860 = vmatpush.bf16.msra.mxu0 %v1441
  %1861 = vmatpush.bf16.msra.mxu0 %v1440
  %1862 = vmatpush.bf16.msra.mxu0 %v1439
  %1863 = vmatpush.bf16.msra.mxu0 %v1438
  %1864 = vmatpush.bf16.msra.mxu0 %v1437
  %1865 = vmatpush.bf16.msra.mxu0 %v1436
  %1866 = vmatmul.bf16.gmra.mxu0 %v545
  %v1867 = vpop.f32.mrf.mxu0
  %v1868 = vadd.f32 %v1854, %v1867
  %v1869 = vpop.f32.mrf.mxu0
  %v1870 = vadd.f32 %v1856, %v1869
  %1871 = vdwg.mxu0
  %1872 = vmatpush.bf16.msra.mxu0 %v1451
  %1873 = vmatpush.bf16.msra.mxu0 %v1450
  %1874 = vmatpush.bf16.msra.mxu0 %v1449
  %1875 = vmatpush.bf16.msra.mxu0 %v1448
  %1876 = vmatpush.bf16.msra.mxu0 %v1447
  %1877 = vmatpush.bf16.msra.mxu0 %v1446
  %1878 = vmatpush.bf16.msra.mxu0 %v1445
  %1879 = vmatpush.bf16.msra.mxu0 %v1444
  %1880 = vmatmul.bf16.gmra.mxu0 %v546
  %v1881 = vpop.f32.mrf.mxu0
  %v1882 = vadd.f32 %v1868, %v1881
  %v1883 = vpop.f32.mrf.mxu0
  %v1884 = vadd.f32 %v1870, %v1883
  %1885 = vdwg.mxu0
  %1886 = vmatpush.bf16.msra.mxu0 %v1459
  %1887 = vmatpush.bf16.msra.mxu0 %v1458
  %1888 = vmatpush.bf16.msra.mxu0 %v1457
  %1889 = vmatpush.bf16.msra.mxu0 %v1456
  %1890 = vmatpush.bf16.msra.mxu0 %v1455
  %1891 = vmatpush.bf16.msra.mxu0 %v1454
  %1892 = vmatpush.bf16.msra.mxu0 %v1453
  %1893 = vmatpush.bf16.msra.mxu0 %v1452
  %1894 = vmatmul.bf16.gmra.mxu0 %v547
  %v1895 = vpop.f32.mrf.mxu0
  %v1896 = vadd.f32 %v1882, %v1895
  %v1897 = vpop.f32.mrf.mxu0
  %v1898 = vadd.f32 %v1884, %v1897
  %1899 = vdwg.mxu0
  %1900 = vmatpush.bf16.msra.mxu0 %v1467
  %1901 = vmatpush.bf16.msra.mxu0 %v1466
  %1902 = vmatpush.bf16.msra.mxu0 %v1465
  %1903 = vmatpush.bf16.msra.mxu0 %v1464
  %1904 = vmatpush.bf16.msra.mxu0 %v1463
  %1905 = vmatpush.bf16.msra.mxu0 %v1462
  %1906 = vmatpush.bf16.msra.mxu0 %v1461
  %1907 = vmatpush.bf16.msra.mxu0 %v1460
  %1908 = vmatmul.bf16.gmra.mxu0 %v548
  %v1909 = vpop.f32.mrf.mxu0
  %v1910 = vadd.f32 %v1896, %v1909
  %v1911 = vpop.f32.mrf.mxu0
  %v1912 = vadd.f32 %v1898, %v1911
  %1913 = vdwg.mxu0
  %1914 = vmatpush.bf16.msra.mxu0 %v1475
  %1915 = vmatpush.bf16.msra.mxu0 %v1474
  %1916 = vmatpush.bf16.msra.mxu0 %v1473
  %1917 = vmatpush.bf16.msra.mxu0 %v1472
  %1918 = vmatpush.bf16.msra.mxu0 %v1471
  %1919 = vmatpush.bf16.msra.mxu0 %v1470
  %1920 = vmatpush.bf16.msra.mxu0 %v1469
  %1921 = vmatpush.bf16.msra.mxu0 %v1468
  %1922 = vmatmul.bf16.gmra.mxu0 %v549
  %v1923 = vpop.f32.mrf.mxu0
  %v1924 = vadd.f32 %v1910, %v1923
  %v1925 = vpop.f32.mrf.mxu0
  %v1926 = vadd.f32 %v1912, %v1925
  %1927 = vdwg.mxu0
  %1928 = vmatpush.bf16.msra.mxu0 %v1483
  %1929 = vmatpush.bf16.msra.mxu0 %v1482
  %1930 = vmatpush.bf16.msra.mxu0 %v1481
  %1931 = vmatpush.bf16.msra.mxu0 %v1480
  %1932 = vmatpush.bf16.msra.mxu0 %v1479
  %1933 = vmatpush.bf16.msra.mxu0 %v1478
  %1934 = vmatpush.bf16.msra.mxu0 %v1477
  %1935 = vmatpush.bf16.msra.mxu0 %v1476
  %1936 = vmatmul.bf16.gmra.mxu0 %v550
  %v1937 = vpop.f32.mrf.mxu0
  %v1938 = vadd.f32 %v1924, %v1937
  %v1939 = vpop.f32.mrf.mxu0
  %v1940 = vadd.f32 %v1926, %v1939
  %1941 = vdwg.mxu0
  %1942 = vmatpush.bf16.msra.mxu0 %v1491
  %1943 = vmatpush.bf16.msra.mxu0 %v1490
  %1944 = vmatpush.bf16.msra.mxu0 %v1489
  %1945 = vmatpush.bf16.msra.mxu0 %v1488
  %1946 = vmatpush.bf16.msra.mxu0 %v1487
  %1947 = vmatpush.bf16.msra.mxu0 %v1486
  %1948 = vmatpush.bf16.msra.mxu0 %v1485
  %1949 = vmatpush.bf16.msra.mxu0 %v1484
  %1950 = vmatmul.bf16.gmra.mxu0 %v551
  %v1951 = vpop.f32.mrf.mxu0
  %v1952 = vadd.f32 %v1938, %v1951
  %v1953 = vpop.f32.mrf.mxu0
  %v1954 = vadd.f32 %v1940, %v1953
  %1955 = vdwg.mxu0
  %1956 = vmatpush.bf16.msra.mxu0 %v1499
  %1957 = vmatpush.bf16.msra.mxu0 %v1498
  %1958 = vmatpush.bf16.msra.mxu0 %v1497
  %1959 = vmatpush.bf16.msra.mxu0 %v1496
  %1960 = vmatpush.bf16.msra.mxu0 %v1495
  %1961 = vmatpush.bf16.msra.mxu0 %v1494
  %1962 = vmatpush.bf16.msra.mxu0 %v1493
  %1963 = vmatpush.bf16.msra.mxu0 %v1492
  %1964 = vmatmul.bf16.gmra.mxu0 %v552
  %v1965 = vpop.f32.mrf.mxu0
  %v1966 = vadd.f32 %v1952, %v1965
  %v1967 = vpop.f32.mrf.mxu0
  %v1968 = vadd.f32 %v1954, %v1967
  %1969 = vdwg.mxu0
  %1970 = vmatpush.bf16.msra.mxu0 %v1507
  %1971 = vmatpush.bf16.msra.mxu0 %v1506
  %1972 = vmatpush.bf16.msra.mxu0 %v1505
  %1973 = vmatpush.bf16.msra.mxu0 %v1504
  %1974 = vmatpush.bf16.msra.mxu0 %v1503
  %1975 = vmatpush.bf16.msra.mxu0 %v1502
  %1976 = vmatpush.bf16.msra.mxu0 %v1501
  %1977 = vmatpush.bf16.msra.mxu0 %v1500
  %1978 = vmatmul.bf16.gmra.mxu0 %v553
  %v1979 = vpop.f32.mrf.mxu0
  %v1980 = vadd.f32 %v1966, %v1979
  %v1981 = vpop.f32.mrf.mxu0
  %v1982 = vadd.f32 %v1968, %v1981
  %1983 = vdwg.mxu0
  %1984 = vmatpush.bf16.msra.mxu0 %v1515
  %1985 = vmatpush.bf16.msra.mxu0 %v1514
  %1986 = vmatpush.bf16.msra.mxu0 %v1513
  %1987 = vmatpush.bf16.msra.mxu0 %v1512
  %1988 = vmatpush.bf16.msra.mxu0 %v1511
  %1989 = vmatpush.bf16.msra.mxu0 %v1510
  %1990 = vmatpush.bf16.msra.mxu0 %v1509
  %1991 = vmatpush.bf16.msra.mxu0 %v1508
  %1992 = vmatmul.bf16.gmra.mxu0 %v554
  %v1993 = vpop.f32.mrf.mxu0
  %v1994 = vadd.f32 %v1980, %v1993
  %v1995 = vpop.f32.mrf.mxu0
  %v1996 = vadd.f32 %v1982, %v1995
  %1997 = vdwg.mxu0
  %1998 = vmatpush.bf16.msra.mxu0 %v1523
  %1999 = vmatpush.bf16.msra.mxu0 %v1522
  %2000 = vmatpush.bf16.msra.mxu0 %v1521
  %2001 = vmatpush.bf16.msra.mxu0 %v1520
  %2002 = vmatpush.bf16.msra.mxu0 %v1519
  %2003 = vmatpush.bf16.msra.mxu0 %v1518
  %2004 = vmatpush.bf16.msra.mxu0 %v1517
  %2005 = vmatpush.bf16.msra.mxu0 %v1516
  %2006 = vmatmul.bf16.gmra.mxu0 %v555
  %v2007 = vpop.f32.mrf.mxu0
  %v2008 = vadd.f32 %v1994, %v2007
  %v2009 = vpop.f32.mrf.mxu0
  %v2010 = vadd.f32 %v1996, %v2009
  %2011 = vdwg.mxu0
  %2012 = vmatpush.bf16.msra.mxu0 %v1531
  %2013 = vmatpush.bf16.msra.mxu0 %v1530
  %2014 = vmatpush.bf16.msra.mxu0 %v1529
  %2015 = vmatpush.bf16.msra.mxu0 %v1528
  %2016 = vmatpush.bf16.msra.mxu0 %v1527
  %2017 = vmatpush.bf16.msra.mxu0 %v1526
  %2018 = vmatpush.bf16.msra.mxu0 %v1525
  %2019 = vmatpush.bf16.msra.mxu0 %v1524
  %2020 = vmatmul.bf16.gmra.mxu0 %v556
  %v2021 = vpop.f32.mrf.mxu0
  %v2022 = vadd.f32 %v2008, %v2021
  %v2023 = vpop.f32.mrf.mxu0
  %v2024 = vadd.f32 %v2010, %v2023
  %2025 = vdwg.mxu0
  %2026 = vmatpush.bf16.msra.mxu0 %v1539
  %2027 = vmatpush.bf16.msra.mxu0 %v1538
  %2028 = vmatpush.bf16.msra.mxu0 %v1537
  %2029 = vmatpush.bf16.msra.mxu0 %v1536
  %2030 = vmatpush.bf16.msra.mxu0 %v1535
  %2031 = vmatpush.bf16.msra.mxu0 %v1534
  %2032 = vmatpush.bf16.msra.mxu0 %v1533
  %2033 = vmatpush.bf16.msra.mxu0 %v1532
  %2034 = vmatmul.bf16.gmra.mxu0 %v557
  %v2035 = vpop.f32.mrf.mxu0
  %v2036 = vadd.f32 %v2022, %v2035
  %v2037 = vpop.f32.mrf.mxu0
  %v2038 = vadd.f32 %v2024, %v2037
  %2039 = vdwg.mxu0
  %2040 = vmatpush.bf16.msra.mxu0 %v1547
  %2041 = vmatpush.bf16.msra.mxu0 %v1546
  %2042 = vmatpush.bf16.msra.mxu0 %v1545
  %2043 = vmatpush.bf16.msra.mxu0 %v1544
  %2044 = vmatpush.bf16.msra.mxu0 %v1543
  %2045 = vmatpush.bf16.msra.mxu0 %v1542
  %2046 = vmatpush.bf16.msra.mxu0 %v1541
  %2047 = vmatpush.bf16.msra.mxu0 %v1540
  %2048 = vmatmul.bf16.gmra.mxu0 %v558
  %v2049 = vpop.f32.mrf.mxu0
  %v2050 = vadd.f32 %v2036, %v2049
  %v2051 = vpop.f32.mrf.mxu0
  %v2052 = vadd.f32 %v2038, %v2051
  %2053 = vdwg.mxu0
  %2054 = vmatpush.bf16.msra.mxu0 %v1555
  %2055 = vmatpush.bf16.msra.mxu0 %v1554
  %2056 = vmatpush.bf16.msra.mxu0 %v1553
  %2057 = vmatpush.bf16.msra.mxu0 %v1552
  %2058 = vmatpush.bf16.msra.mxu0 %v1551
  %2059 = vmatpush.bf16.msra.mxu0 %v1550
  %2060 = vmatpush.bf16.msra.mxu0 %v1549
  %2061 = vmatpush.bf16.msra.mxu0 %v1548
  %2062 = vmatmul.bf16.gmra.mxu0 %v559
  %v2063 = vpop.f32.mrf.mxu0
  %v2064 = vadd.f32 %v2050, %v2063
  %v2065 = vpop.f32.mrf.mxu0
  %v2066 = vadd.f32 %v2052, %v2065
  %2067 = vdwg.mxu0
  %2068 = vmatpush.bf16.msra.mxu0 %v1563
  %2069 = vmatpush.bf16.msra.mxu0 %v1562
  %2070 = vmatpush.bf16.msra.mxu0 %v1561
  %2071 = vmatpush.bf16.msra.mxu0 %v1560
  %2072 = vmatpush.bf16.msra.mxu0 %v1559
  %2073 = vmatpush.bf16.msra.mxu0 %v1558
  %2074 = vmatpush.bf16.msra.mxu0 %v1557
  %2075 = vmatpush.bf16.msra.mxu0 %v1556
  %2076 = vmatmul.bf16.gmra.mxu0 %v560
  %v2077 = vpop.f32.mrf.mxu0
  %v2078 = vadd.f32 %v2064, %v2077
  %v2079 = vpop.f32.mrf.mxu0
  %v2080 = vadd.f32 %v2066, %v2079
  %2081 = vdwg.mxu0
  %2082 = vmatpush.bf16.msra.mxu0 %v1571
  %2083 = vmatpush.bf16.msra.mxu0 %v1570
  %2084 = vmatpush.bf16.msra.mxu0 %v1569
  %2085 = vmatpush.bf16.msra.mxu0 %v1568
  %2086 = vmatpush.bf16.msra.mxu0 %v1567
  %2087 = vmatpush.bf16.msra.mxu0 %v1566
  %2088 = vmatpush.bf16.msra.mxu0 %v1565
  %2089 = vmatpush.bf16.msra.mxu0 %v1564
  %2090 = vmatmul.bf16.gmra.mxu0 %v561
  %v2091 = vpop.f32.mrf.mxu0
  %v2092 = vadd.f32 %v2078, %v2091
  %v2093 = vpop.f32.mrf.mxu0
  %v2094 = vadd.f32 %v2080, %v2093
  %2095 = vdwg.mxu0
  %2096 = vmatpush.bf16.msra.mxu0 %v1579
  %2097 = vmatpush.bf16.msra.mxu0 %v1578
  %2098 = vmatpush.bf16.msra.mxu0 %v1577
  %2099 = vmatpush.bf16.msra.mxu0 %v1576
  %2100 = vmatpush.bf16.msra.mxu0 %v1575
  %2101 = vmatpush.bf16.msra.mxu0 %v1574
  %2102 = vmatpush.bf16.msra.mxu0 %v1573
  %2103 = vmatpush.bf16.msra.mxu0 %v1572
  %2104 = vmatmul.bf16.gmra.mxu0 %v562
  %v2105 = vpop.f32.mrf.mxu0
  %v2106 = vadd.f32 %v2092, %v2105
  %v2107 = vpop.f32.mrf.mxu0
  %v2108 = vadd.f32 %v2094, %v2107
  %2109 = vdwg.mxu0
  %2110 = vmatpush.bf16.msra.mxu0 %v1587
  %2111 = vmatpush.bf16.msra.mxu0 %v1586
  %2112 = vmatpush.bf16.msra.mxu0 %v1585
  %2113 = vmatpush.bf16.msra.mxu0 %v1584
  %2114 = vmatpush.bf16.msra.mxu0 %v1583
  %2115 = vmatpush.bf16.msra.mxu0 %v1582
  %2116 = vmatpush.bf16.msra.mxu0 %v1581
  %2117 = vmatpush.bf16.msra.mxu0 %v1580
  %2118 = vmatmul.bf16.gmra.mxu0 %v563
  %v2119 = vpop.f32.mrf.mxu0
  %v2120 = vadd.f32 %v2106, %v2119
  %v2121 = vpop.f32.mrf.mxu0
  %v2122 = vadd.f32 %v2108, %v2121
  %2123 = vdwg.mxu0
  %2124 = vmatpush.bf16.msra.mxu0 %v1595
  %2125 = vmatpush.bf16.msra.mxu0 %v1594
  %2126 = vmatpush.bf16.msra.mxu0 %v1593
  %2127 = vmatpush.bf16.msra.mxu0 %v1592
  %2128 = vmatpush.bf16.msra.mxu0 %v1591
  %2129 = vmatpush.bf16.msra.mxu0 %v1590
  %2130 = vmatpush.bf16.msra.mxu0 %v1589
  %2131 = vmatpush.bf16.msra.mxu0 %v1588
  %2132 = vmatmul.bf16.gmra.mxu0 %v564
  %v2133 = vpop.f32.mrf.mxu0
  %v2134 = vadd.f32 %v2120, %v2133
  %v2135 = vpop.f32.mrf.mxu0
  %v2136 = vadd.f32 %v2122, %v2135
  %2137 = vdwg.mxu0
  %2138 = vmatpush.bf16.msra.mxu0 %v1603
  %2139 = vmatpush.bf16.msra.mxu0 %v1602
  %2140 = vmatpush.bf16.msra.mxu0 %v1601
  %2141 = vmatpush.bf16.msra.mxu0 %v1600
  %2142 = vmatpush.bf16.msra.mxu0 %v1599
  %2143 = vmatpush.bf16.msra.mxu0 %v1598
  %2144 = vmatpush.bf16.msra.mxu0 %v1597
  %2145 = vmatpush.bf16.msra.mxu0 %v1596
  %2146 = vmatmul.bf16.gmra.mxu0 %v565
  %v2147 = vpop.f32.mrf.mxu0
  %v2148 = vadd.f32 %v2134, %v2147
  %v2149 = vpop.f32.mrf.mxu0
  %v2150 = vadd.f32 %v2136, %v2149
  %2151 = vdwg.mxu0
  %2152 = vmatpush.bf16.msra.mxu0 %v1611
  %2153 = vmatpush.bf16.msra.mxu0 %v1610
  %2154 = vmatpush.bf16.msra.mxu0 %v1609
  %2155 = vmatpush.bf16.msra.mxu0 %v1608
  %2156 = vmatpush.bf16.msra.mxu0 %v1607
  %2157 = vmatpush.bf16.msra.mxu0 %v1606
  %2158 = vmatpush.bf16.msra.mxu0 %v1605
  %2159 = vmatpush.bf16.msra.mxu0 %v1604
  %2160 = vmatmul.bf16.gmra.mxu0 %v566
  %v2161 = vpop.f32.mrf.mxu0
  %v2162 = vadd.f32 %v2148, %v2161
  %v2163 = vpop.f32.mrf.mxu0
  %v2164 = vadd.f32 %v2150, %v2163
  %2165 = vdwg.mxu0
  %2166 = vmatpush.bf16.msra.mxu0 %v1619
  %2167 = vmatpush.bf16.msra.mxu0 %v1618
  %2168 = vmatpush.bf16.msra.mxu0 %v1617
  %2169 = vmatpush.bf16.msra.mxu0 %v1616
  %2170 = vmatpush.bf16.msra.mxu0 %v1615
  %2171 = vmatpush.bf16.msra.mxu0 %v1614
  %2172 = vmatpush.bf16.msra.mxu0 %v1613
  %2173 = vmatpush.bf16.msra.mxu0 %v1612
  %2174 = vmatmul.bf16.gmra.mxu0 %v567
  %v2175 = vpop.f32.mrf.mxu0
  %v2176 = vadd.f32 %v2162, %v2175
  %v2177 = vpop.f32.mrf.mxu0
  %v2178 = vadd.f32 %v2164, %v2177
  %2179 = vdwg.mxu0
  %2180 = vmatpush.bf16.msra.mxu0 %v1627
  %2181 = vmatpush.bf16.msra.mxu0 %v1626
  %2182 = vmatpush.bf16.msra.mxu0 %v1625
  %2183 = vmatpush.bf16.msra.mxu0 %v1624
  %2184 = vmatpush.bf16.msra.mxu0 %v1623
  %2185 = vmatpush.bf16.msra.mxu0 %v1622
  %2186 = vmatpush.bf16.msra.mxu0 %v1621
  %2187 = vmatpush.bf16.msra.mxu0 %v1620
  %2188 = vmatmul.bf16.gmra.mxu0 %v568
  %v2189 = vpop.f32.mrf.mxu0
  %v2190 = vadd.f32 %v2176, %v2189
  %v2191 = vpop.f32.mrf.mxu0
  %v2192 = vadd.f32 %v2178, %v2191
  %2193 = vdwg.mxu0
  %2194 = vmatpush.bf16.msra.mxu0 %v1635
  %2195 = vmatpush.bf16.msra.mxu0 %v1634
  %2196 = vmatpush.bf16.msra.mxu0 %v1633
  %2197 = vmatpush.bf16.msra.mxu0 %v1632
  %2198 = vmatpush.bf16.msra.mxu0 %v1631
  %2199 = vmatpush.bf16.msra.mxu0 %v1630
  %2200 = vmatpush.bf16.msra.mxu0 %v1629
  %2201 = vmatpush.bf16.msra.mxu0 %v1628
  %2202 = vmatmul.bf16.gmra.mxu0 %v569
  %v2203 = vpop.f32.mrf.mxu0
  %v2204 = vadd.f32 %v2190, %v2203
  %v2205 = vpop.f32.mrf.mxu0
  %v2206 = vadd.f32 %v2192, %v2205
  %2207 = vdwg.mxu0
  %v2208 = vtanh.pop %v2204
  %v2209 = vtanh.pop %v2206
  %v2210 = vpack.c.bf16 %v2208, %v2208
  %v2211 = vpack.c.bf16 %v2209, %v2209
  %v2212 = vld [vmem:[%s3] sm:$0xff]
  %v2213 = vld [vmem:[%s3 + $0x8] sm:$0xff]
  %v2214 = vld [vmem:[%s3 + $0x10] sm:$0xff]
  %v2215 = vld [vmem:[%s3 + $0x18] sm:$0xff]
  %v2216 = vld [vmem:[%s3 + $0x20] sm:$0xff]
  %v2217 = vld [vmem:[%s3 + $0x28] sm:$0xff]
  %v2218 = vld [vmem:[%s3 + $0x30] sm:$0xff]
  %v2219 = vld [vmem:[%s3 + $0x38] sm:$0xff]
  %v2220 = vld [vmem:[%s3 + $0x40] sm:$0xff]
  %v2221 = vld [vmem:[%s3 + $0x48] sm:$0xff]
  %v2222 = vld [vmem:[%s3 + $0x50] sm:$0xff]
  %v2223 = vld [vmem:[%s3 + $0x58] sm:$0xff]
  %v2224 = vld [vmem:[%s3 + $0x60] sm:$0xff]
  %v2225 = vld [vmem:[%s3 + $0x68] sm:$0xff]
  %v2226 = vld [vmem:[%s3 + $0x70] sm:$0xff]
  %v2227 = vld [vmem:[%s3 + $0x78] sm:$0xff]
  %v2228 = vld [vmem:[%s3 + $0x80] sm:$0xff]
  %v2229 = vld [vmem:[%s3 + $0x88] sm:$0xff]
  %v2230 = vld [vmem:[%s3 + $0x90] sm:$0xff]
  %v2231 = vld [vmem:[%s3 + $0x98] sm:$0xff]
  %v2232 = vld [vmem:[%s3 + $0xa0] sm:$0xff]
  %v2233 = vld [vmem:[%s3 + $0xa8] sm:$0xff]
  %v2234 = vld [vmem:[%s3 + $0xb0] sm:$0xff]
  %v2235 = vld [vmem:[%s3 + $0xb8] sm:$0xff]
  %v2236 = vld [vmem:[%s3 + $0xc0] sm:$0xff]
  %v2237 = vld [vmem:[%s3 + $0xc8] sm:$0xff]
  %v2238 = vld [vmem:[%s3 + $0xd0] sm:$0xff]
  %v2239 = vld [vmem:[%s3 + $0xd8] sm:$0xff]
  %v2240 = vld [vmem:[%s3 + $0xe0] sm:$0xff]
  %v2241 = vld [vmem:[%s3 + $0xe8] sm:$0xff]
  %v2242 = vld [vmem:[%s3 + $0xf0] sm:$0xff]
  %v2243 = vld [vmem:[%s3 + $0xf8] sm:$0xff]
  %v2244 = vld [vmem:[%s3 + $0x100] sm:$0xff]
  %v2245 = vld [vmem:[%s3 + $0x108] sm:$0xff]
  %v2246 = vld [vmem:[%s3 + $0x110] sm:$0xff]
  %v2247 = vld [vmem:[%s3 + $0x118] sm:$0xff]
  %v2248 = vld [vmem:[%s3 + $0x120] sm:$0xff]
  %v2249 = vld [vmem:[%s3 + $0x128] sm:$0xff]
  %v2250 = vld [vmem:[%s3 + $0x130] sm:$0xff]
  %v2251 = vld [vmem:[%s3 + $0x138] sm:$0xff]
  %v2252 = vld [vmem:[%s3 + $0x140] sm:$0xff]
  %v2253 = vld [vmem:[%s3 + $0x148] sm:$0xff]
  %v2254 = vld [vmem:[%s3 + $0x150] sm:$0xff]
  %v2255 = vld [vmem:[%s3 + $0x158] sm:$0xff]
  %v2256 = vld [vmem:[%s3 + $0x160] sm:$0xff]
  %v2257 = vld [vmem:[%s3 + $0x168] sm:$0xff]
  %v2258 = vld [vmem:[%s3 + $0x170] sm:$0xff]
  %v2259 = vld [vmem:[%s3 + $0x178] sm:$0xff]
  %s2260 = scalar_lea.vmem %s3, 384
  %v2261 = vld [vmem:[%s2260] sm:$0xff]
  %v2262 = vld [vmem:[%s2260 + $0x8] sm:$0xff]
  %v2263 = vld [vmem:[%s2260 + $0x10] sm:$0xff]
  %v2264 = vld [vmem:[%s2260 + $0x18] sm:$0xff]
  %v2265 = vld [vmem:[%s2260 + $0x20] sm:$0xff]
  %v2266 = vld [vmem:[%s2260 + $0x28] sm:$0xff]
  %v2267 = vld [vmem:[%s2260 + $0x30] sm:$0xff]
  %v2268 = vld [vmem:[%s2260 + $0x38] sm:$0xff]
  %v2269 = vld [vmem:[%s2260 + $0x40] sm:$0xff]
  %v2270 = vld [vmem:[%s2260 + $0x48] sm:$0xff]
  %v2271 = vld [vmem:[%s2260 + $0x50] sm:$0xff]
  %v2272 = vld [vmem:[%s2260 + $0x58] sm:$0xff]
  %v2273 = vld [vmem:[%s2260 + $0x60] sm:$0xff]
  %v2274 = vld [vmem:[%s2260 + $0x68] sm:$0xff]
  %v2275 = vld [vmem:[%s2260 + $0x70] sm:$0xff]
  %v2276 = vld [vmem:[%s2260 + $0x78] sm:$0xff]
  %v2277 = vld [vmem:[%s2260 + $0x80] sm:$0xff]
  %v2278 = vld [vmem:[%s2260 + $0x88] sm:$0xff]
  %v2279 = vld [vmem:[%s2260 + $0x90] sm:$0xff]
  %v2280 = vld [vmem:[%s2260 + $0x98] sm:$0xff]
  %v2281 = vld [vmem:[%s2260 + $0xa0] sm:$0xff]
  %v2282 = vld [vmem:[%s2260 + $0xa8] sm:$0xff]
  %v2283 = vld [vmem:[%s2260 + $0xb0] sm:$0xff]
  %v2284 = vld [vmem:[%s2260 + $0xb8] sm:$0xff]
  %v2285 = vld [vmem:[%s2260 + $0xc0] sm:$0xff]
  %v2286 = vld [vmem:[%s2260 + $0xc8] sm:$0xff]
  %v2287 = vld [vmem:[%s2260 + $0xd0] sm:$0xff]
  %v2288 = vld [vmem:[%s2260 + $0xd8] sm:$0xff]
  %v2289 = vld [vmem:[%s2260 + $0xe0] sm:$0xff]
  %v2290 = vld [vmem:[%s2260 + $0xe8] sm:$0xff]
  %v2291 = vld [vmem:[%s2260 + $0xf0] sm:$0xff]
  %v2292 = vld [vmem:[%s2260 + $0xf8] sm:$0xff]
  %v2293 = vld [vmem:[%s2260 + $0x100] sm:$0xff]
  %v2294 = vld [vmem:[%s2260 + $0x108] sm:$0xff]
  %v2295 = vld [vmem:[%s2260 + $0x110] sm:$0xff]
  %v2296 = vld [vmem:[%s2260 + $0x118] sm:$0xff]
  %v2297 = vld [vmem:[%s2260 + $0x120] sm:$0xff]
  %v2298 = vld [vmem:[%s2260 + $0x128] sm:$0xff]
  %v2299 = vld [vmem:[%s2260 + $0x130] sm:$0xff]
  %v2300 = vld [vmem:[%s2260 + $0x138] sm:$0xff]
  %v2301 = vld [vmem:[%s2260 + $0x140] sm:$0xff]
  %v2302 = vld [vmem:[%s2260 + $0x148] sm:$0xff]
  %v2303 = vld [vmem:[%s2260 + $0x150] sm:$0xff]
  %v2304 = vld [vmem:[%s2260 + $0x158] sm:$0xff]
  %v2305 = vld [vmem:[%s2260 + $0x160] sm:$0xff]
  %v2306 = vld [vmem:[%s2260 + $0x168] sm:$0xff]
  %v2307 = vld [vmem:[%s2260 + $0x170] sm:$0xff]
  %v2308 = vld [vmem:[%s2260 + $0x178] sm:$0xff]
  %v2310 = vunpack.c.l.b16 %v2210
  %v2311 = vpack.c.b16 %v2310, %v2310
  %v2312 = vrot.slane %v2311, 1
  %v2362 = vunpack.c.l.b16 %v2261
  %v2363 = vunpack.c.h.b16 %v2261
  %v2364 = vunpack.c.l.b16 %v2262
  %v2365 = vunpack.c.h.b16 %v2262
  %v2366 = vunpack.c.l.b16 %v2263
  %v2367 = vunpack.c.h.b16 %v2263
  %v2368 = vunpack.c.l.b16 %v2264
  %v2369 = vunpack.c.h.b16 %v2264
  %v2370 = vunpack.c.l.b16 %v2265
  %v2371 = vunpack.c.h.b16 %v2265
  %v2372 = vunpack.c.l.b16 %v2266
  %v2373 = vunpack.c.h.b16 %v2266
  %v2374 = vunpack.c.l.b16 %v2267
  %v2375 = vunpack.c.h.b16 %v2267
  %v2376 = vunpack.c.l.b16 %v2268
  %v2377 = vunpack.c.h.b16 %v2268
  %v2378 = vunpack.c.l.b16 %v2269
  %v2379 = vunpack.c.h.b16 %v2269
  %v2380 = vunpack.c.l.b16 %v2270
  %v2381 = vunpack.c.h.b16 %v2270
  %v2382 = vunpack.c.l.b16 %v2271
  %v2383 = vunpack.c.h.b16 %v2271
  %v2384 = vunpack.c.l.b16 %v2272
  %v2385 = vunpack.c.h.b16 %v2272
  %v2386 = vunpack.c.l.b16 %v2273
  %v2387 = vunpack.c.h.b16 %v2273
  %v2388 = vunpack.c.l.b16 %v2274
  %v2389 = vunpack.c.h.b16 %v2274
  %v2390 = vunpack.c.l.b16 %v2275
  %v2391 = vunpack.c.h.b16 %v2275
  %v2392 = vunpack.c.l.b16 %v2276
  %v2393 = vunpack.c.h.b16 %v2276
  %v2394 = vunpack.c.l.b16 %v2277
  %v2395 = vunpack.c.h.b16 %v2277
  %v2396 = vunpack.c.l.b16 %v2278
  %v2397 = vunpack.c.h.b16 %v2278
  %v2398 = vunpack.c.l.b16 %v2279
  %v2399 = vunpack.c.h.b16 %v2279
  %v2400 = vunpack.c.l.b16 %v2280
  %v2401 = vunpack.c.h.b16 %v2280
  %v2402 = vunpack.c.l.b16 %v2281
  %v2403 = vunpack.c.h.b16 %v2281
  %v2404 = vunpack.c.l.b16 %v2282
  %v2405 = vunpack.c.h.b16 %v2282
  %v2406 = vunpack.c.l.b16 %v2283
  %v2407 = vunpack.c.h.b16 %v2283
  %v2408 = vunpack.c.l.b16 %v2284
  %v2409 = vunpack.c.h.b16 %v2284
  %v2410 = vunpack.c.l.b16 %v2285
  %v2411 = vunpack.c.h.b16 %v2285
  %v2412 = vunpack.c.l.b16 %v2286
  %v2413 = vunpack.c.h.b16 %v2286
  %v2414 = vunpack.c.l.b16 %v2287
  %v2415 = vunpack.c.h.b16 %v2287
  %v2416 = vunpack.c.l.b16 %v2288
  %v2417 = vunpack.c.h.b16 %v2288
  %v2418 = vunpack.c.l.b16 %v2289
  %v2419 = vunpack.c.h.b16 %v2289
  %v2420 = vunpack.c.l.b16 %v2290
  %v2421 = vunpack.c.h.b16 %v2290
  %v2422 = vunpack.c.l.b16 %v2291
  %v2423 = vunpack.c.h.b16 %v2291
  %v2424 = vunpack.c.l.b16 %v2292
  %v2425 = vunpack.c.h.b16 %v2292
  %v2426 = vunpack.c.l.b16 %v2293
  %v2427 = vunpack.c.h.b16 %v2293
  %v2428 = vunpack.c.l.b16 %v2294
  %v2429 = vunpack.c.h.b16 %v2294
  %v2430 = vunpack.c.l.b16 %v2295
  %v2431 = vunpack.c.h.b16 %v2295
  %v2432 = vunpack.c.l.b16 %v2296
  %v2433 = vunpack.c.h.b16 %v2296
  %v2434 = vunpack.c.l.b16 %v2297
  %v2435 = vunpack.c.h.b16 %v2297
  %v2436 = vunpack.c.l.b16 %v2298
  %v2437 = vunpack.c.h.b16 %v2298
  %v2438 = vunpack.c.l.b16 %v2299
  %v2439 = vunpack.c.h.b16 %v2299
  %v2440 = vunpack.c.l.b16 %v2300
  %v2441 = vunpack.c.h.b16 %v2300
  %v2442 = vunpack.c.l.b16 %v2301
  %v2443 = vunpack.c.h.b16 %v2301
  %v2444 = vunpack.c.l.b16 %v2302
  %v2445 = vunpack.c.h.b16 %v2302
  %v2446 = vunpack.c.l.b16 %v2303
  %v2447 = vunpack.c.h.b16 %v2303
  %v2448 = vunpack.c.l.b16 %v2304
  %v2449 = vunpack.c.h.b16 %v2304
  %v2450 = vunpack.c.l.b16 %v2305
  %v2451 = vunpack.c.h.b16 %v2305
  %v2452 = vunpack.c.l.b16 %v2306
  %v2453 = vunpack.c.h.b16 %v2306
  %v2454 = vunpack.c.l.b16 %v2307
  %v2455 = vunpack.c.h.b16 %v2307
  %v2456 = vunpack.c.l.b16 %v2308
  %v2457 = vunpack.c.h.b16 %v2308
  %v2458 = vpack.c.b16 %v2368, %v2362
  %v2459 = vpack.c.b16 %v2369, %v2363
  %v2460 = vpack.c.b16 %v2370, %v2364
  %v2461 = vpack.c.b16 %v2371, %v2365
  %v2462 = vpack.c.b16 %v2372, %v2366
  %v2463 = vpack.c.b16 %v2373, %v2367
  %v2464 = vpack.c.b16 %v2380, %v2374
  %v2465 = vpack.c.b16 %v2381, %v2375
  %v2466 = vpack.c.b16 %v2382, %v2376
  %v2467 = vpack.c.b16 %v2383, %v2377
  %v2468 = vpack.c.b16 %v2384, %v2378
  %v2469 = vpack.c.b16 %v2385, %v2379
  %v2470 = vpack.c.b16 %v2392, %v2386
  %v2471 = vpack.c.b16 %v2393, %v2387
  %v2472 = vpack.c.b16 %v2394, %v2388
  %v2473 = vpack.c.b16 %v2395, %v2389
  %v2474 = vpack.c.b16 %v2396, %v2390
  %v2475 = vpack.c.b16 %v2397, %v2391
  %v2476 = vpack.c.b16 %v2404, %v2398
  %v2477 = vpack.c.b16 %v2405, %v2399
  %v2478 = vpack.c.b16 %v2406, %v2400
  %v2479 = vpack.c.b16 %v2407, %v2401
  %v2480 = vpack.c.b16 %v2408, %v2402
  %v2481 = vpack.c.b16 %v2409, %v2403
  %v2482 = vpack.c.b16 %v2416, %v2410
  %v2483 = vpack.c.b16 %v2417, %v2411
  %v2484 = vpack.c.b16 %v2418, %v2412
  %v2485 = vpack.c.b16 %v2419, %v2413
  %v2486 = vpack.c.b16 %v2420, %v2414
  %v2487 = vpack.c.b16 %v2421, %v2415
  %v2488 = vpack.c.b16 %v2428, %v2422
  %v2489 = vpack.c.b16 %v2429, %v2423
  %v2490 = vpack.c.b16 %v2430, %v2424
  %v2491 = vpack.c.b16 %v2431, %v2425
  %v2492 = vpack.c.b16 %v2432, %v2426
  %v2493 = vpack.c.b16 %v2433, %v2427
  %v2494 = vpack.c.b16 %v2440, %v2434
  %v2495 = vpack.c.b16 %v2441, %v2435
  %v2496 = vpack.c.b16 %v2442, %v2436
  %v2497 = vpack.c.b16 %v2443, %v2437
  %v2498 = vpack.c.b16 %v2444, %v2438
  %v2499 = vpack.c.b16 %v2445, %v2439
  %v2500 = vpack.c.b16 %v2452, %v2446
  %v2501 = vpack.c.b16 %v2453, %v2447
  %v2502 = vpack.c.b16 %v2454, %v2448
  %v2503 = vpack.c.b16 %v2455, %v2449
  %v2504 = vpack.c.b16 %v2456, %v2450
  %v2505 = vpack.c.b16 %v2457, %v2451
  %2554 = vmatpush.bf16.msra.mxu0 %v2500
  %2555 = vmatpush.bf16.msra.mxu0 %v2494
  %2556 = vmatpush.bf16.msra.mxu0 %v2488
  %2557 = vmatpush.bf16.msra.mxu0 %v2482
  %2558 = vmatpush.bf16.msra.mxu0 %v2476
  %2559 = vmatpush.bf16.msra.mxu0 %v2470
  %2560 = vmatpush.bf16.msra.mxu0 %v2464
  %2561 = vmatpush.bf16.msra.mxu0 %v2458
  %2562 = vmatmul.bf16.gmra.mxu0 %v2312
  %v2563 = vpop.f32.mrf.mxu0
  %v2564 = vadd.f32 0.0, %v2563
  %v2565 = vpop.f32.mrf.mxu0
  %2566 = vdwg.mxu0
  %2567 = vmatpush.bf16.msra.mxu0 %v2501
  %2568 = vmatpush.bf16.msra.mxu0 %v2495
  %2569 = vmatpush.bf16.msra.mxu0 %v2489
  %2570 = vmatpush.bf16.msra.mxu0 %v2483
  %2571 = vmatpush.bf16.msra.mxu0 %v2477
  %2572 = vmatpush.bf16.msra.mxu0 %v2471
  %2573 = vmatpush.bf16.msra.mxu0 %v2465
  %2574 = vmatpush.bf16.msra.mxu0 %v2459
  %2575 = vmatmul.bf16.gmra.mxu0 %v2312
  %v2576 = vpop.f32.mrf.mxu0
  %v2577 = vadd.f32 0.0, %v2576
  %v2578 = vpop.f32.mrf.mxu0
  %2579 = vdwg.mxu0
  %2580 = vmatpush.bf16.msra.mxu0 %v2502
  %2581 = vmatpush.bf16.msra.mxu0 %v2496
  %2582 = vmatpush.bf16.msra.mxu0 %v2490
  %2583 = vmatpush.bf16.msra.mxu0 %v2484
  %2584 = vmatpush.bf16.msra.mxu0 %v2478
  %2585 = vmatpush.bf16.msra.mxu0 %v2472
  %2586 = vmatpush.bf16.msra.mxu0 %v2466
  %2587 = vmatpush.bf16.msra.mxu0 %v2460
  %2588 = vmatmul.bf16.gmra.mxu0 %v2312
  %v2589 = vpop.f32.mrf.mxu0
  %v2590 = vadd.f32 0.0, %v2589
  %v2591 = vpop.f32.mrf.mxu0
  %2592 = vdwg.mxu0
  %2593 = vmatpush.bf16.msra.mxu0 %v2503
  %2594 = vmatpush.bf16.msra.mxu0 %v2497
  %2595 = vmatpush.bf16.msra.mxu0 %v2491
  %2596 = vmatpush.bf16.msra.mxu0 %v2485
  %2597 = vmatpush.bf16.msra.mxu0 %v2479
  %2598 = vmatpush.bf16.msra.mxu0 %v2473
  %2599 = vmatpush.bf16.msra.mxu0 %v2467
  %2600 = vmatpush.bf16.msra.mxu0 %v2461
  %2601 = vmatmul.bf16.gmra.mxu0 %v2312
  %v2602 = vpop.f32.mrf.mxu0
  %v2603 = vadd.f32 0.0, %v2602
  %v2604 = vpop.f32.mrf.mxu0
  %2605 = vdwg.mxu0
  %2606 = vmatpush.bf16.msra.mxu0 %v2504
  %2607 = vmatpush.bf16.msra.mxu0 %v2498
  %2608 = vmatpush.bf16.msra.mxu0 %v2492
  %2609 = vmatpush.bf16.msra.mxu0 %v2486
  %2610 = vmatpush.bf16.msra.mxu0 %v2480
  %2611 = vmatpush.bf16.msra.mxu0 %v2474
  %2612 = vmatpush.bf16.msra.mxu0 %v2468
  %2613 = vmatpush.bf16.msra.mxu0 %v2462
  %2614 = vmatmul.bf16.gmra.mxu0 %v2312
  %v2615 = vpop.f32.mrf.mxu0
  %v2616 = vadd.f32 0.0, %v2615
  %v2617 = vpop.f32.mrf.mxu0
  %2618 = vdwg.mxu0
  %2619 = vmatpush.bf16.msra.mxu0 %v2505
  %2620 = vmatpush.bf16.msra.mxu0 %v2499
  %2621 = vmatpush.bf16.msra.mxu0 %v2493
  %2622 = vmatpush.bf16.msra.mxu0 %v2487
  %2623 = vmatpush.bf16.msra.mxu0 %v2481
  %2624 = vmatpush.bf16.msra.mxu0 %v2475
  %2625 = vmatpush.bf16.msra.mxu0 %v2469
  %2626 = vmatpush.bf16.msra.mxu0 %v2463
  %2627 = vmatmul.bf16.gmra.mxu0 %v2312
  %v2628 = vpop.f32.mrf.mxu0
  %v2629 = vadd.f32 0.0, %v2628
  %v2630 = vpop.f32.mrf.mxu0
  %2631 = vdwg.mxu0
  %v2680 = vunpack.c.l.b16 %v2212
  %v2681 = vunpack.c.h.b16 %v2212
  %v2682 = vunpack.c.l.b16 %v2213
  %v2683 = vunpack.c.h.b16 %v2213
  %v2684 = vunpack.c.l.b16 %v2214
  %v2685 = vunpack.c.h.b16 %v2214
  %v2686 = vunpack.c.l.b16 %v2215
  %v2687 = vunpack.c.h.b16 %v2215
  %v2688 = vunpack.c.l.b16 %v2216
  %v2689 = vunpack.c.h.b16 %v2216
  %v2690 = vunpack.c.l.b16 %v2217
  %v2691 = vunpack.c.h.b16 %v2217
  %v2692 = vunpack.c.l.b16 %v2218
  %v2693 = vunpack.c.h.b16 %v2218
  %v2694 = vunpack.c.l.b16 %v2219
  %v2695 = vunpack.c.h.b16 %v2219
  %v2696 = vunpack.c.l.b16 %v2220
  %v2697 = vunpack.c.h.b16 %v2220
  %v2698 = vunpack.c.l.b16 %v2221
  %v2699 = vunpack.c.h.b16 %v2221
  %v2700 = vunpack.c.l.b16 %v2222
  %v2701 = vunpack.c.h.b16 %v2222
  %v2702 = vunpack.c.l.b16 %v2223
  %v2703 = vunpack.c.h.b16 %v2223
  %v2704 = vunpack.c.l.b16 %v2224
  %v2705 = vunpack.c.h.b16 %v2224
  %v2706 = vunpack.c.l.b16 %v2225
  %v2707 = vunpack.c.h.b16 %v2225
  %v2708 = vunpack.c.l.b16 %v2226
  %v2709 = vunpack.c.h.b16 %v2226
  %v2710 = vunpack.c.l.b16 %v2227
  %v2711 = vunpack.c.h.b16 %v2227
  %v2712 = vunpack.c.l.b16 %v2228
  %v2713 = vunpack.c.h.b16 %v2228
  %v2714 = vunpack.c.l.b16 %v2229
  %v2715 = vunpack.c.h.b16 %v2229
  %v2716 = vunpack.c.l.b16 %v2230
  %v2717 = vunpack.c.h.b16 %v2230
  %v2718 = vunpack.c.l.b16 %v2231
  %v2719 = vunpack.c.h.b16 %v2231
  %v2720 = vunpack.c.l.b16 %v2232
  %v2721 = vunpack.c.h.b16 %v2232
  %v2722 = vunpack.c.l.b16 %v2233
  %v2723 = vunpack.c.h.b16 %v2233
  %v2724 = vunpack.c.l.b16 %v2234
  %v2725 = vunpack.c.h.b16 %v2234
  %v2726 = vunpack.c.l.b16 %v2235
  %v2727 = vunpack.c.h.b16 %v2235
  %v2728 = vunpack.c.l.b16 %v2236
  %v2729 = vunpack.c.h.b16 %v2236
  %v2730 = vunpack.c.l.b16 %v2237
  %v2731 = vunpack.c.h.b16 %v2237
  %v2732 = vunpack.c.l.b16 %v2238
  %v2733 = vunpack.c.h.b16 %v2238
  %v2734 = vunpack.c.l.b16 %v2239
  %v2735 = vunpack.c.h.b16 %v2239
  %v2736 = vunpack.c.l.b16 %v2240
  %v2737 = vunpack.c.h.b16 %v2240
  %v2738 = vunpack.c.l.b16 %v2241
  %v2739 = vunpack.c.h.b16 %v2241
  %v2740 = vunpack.c.l.b16 %v2242
  %v2741 = vunpack.c.h.b16 %v2242
  %v2742 = vunpack.c.l.b16 %v2243
  %v2743 = vunpack.c.h.b16 %v2243
  %v2744 = vunpack.c.l.b16 %v2244
  %v2745 = vunpack.c.h.b16 %v2244
  %v2746 = vunpack.c.l.b16 %v2245
  %v2747 = vunpack.c.h.b16 %v2245
  %v2748 = vunpack.c.l.b16 %v2246
  %v2749 = vunpack.c.h.b16 %v2246
  %v2750 = vunpack.c.l.b16 %v2247
  %v2751 = vunpack.c.h.b16 %v2247
  %v2752 = vunpack.c.l.b16 %v2248
  %v2753 = vunpack.c.h.b16 %v2248
  %v2754 = vunpack.c.l.b16 %v2249
  %v2755 = vunpack.c.h.b16 %v2249
  %v2756 = vunpack.c.l.b16 %v2250
  %v2757 = vunpack.c.h.b16 %v2250
  %v2758 = vunpack.c.l.b16 %v2251
  %v2759 = vunpack.c.h.b16 %v2251
  %v2760 = vunpack.c.l.b16 %v2252
  %v2761 = vunpack.c.h.b16 %v2252
  %v2762 = vunpack.c.l.b16 %v2253
  %v2763 = vunpack.c.h.b16 %v2253
  %v2764 = vunpack.c.l.b16 %v2254
  %v2765 = vunpack.c.h.b16 %v2254
  %v2766 = vunpack.c.l.b16 %v2255
  %v2767 = vunpack.c.h.b16 %v2255
  %v2768 = vunpack.c.l.b16 %v2256
  %v2769 = vunpack.c.h.b16 %v2256
  %v2770 = vunpack.c.l.b16 %v2257
  %v2771 = vunpack.c.h.b16 %v2257
  %v2772 = vunpack.c.l.b16 %v2258
  %v2773 = vunpack.c.h.b16 %v2258
  %v2774 = vunpack.c.l.b16 %v2259
  %v2775 = vunpack.c.h.b16 %v2259
  %v2776 = vpack.c.b16 %v2686, %v2680
  %v2777 = vpack.c.b16 %v2687, %v2681
  %v2778 = vpack.c.b16 %v2688, %v2682
  %v2779 = vpack.c.b16 %v2689, %v2683
  %v2780 = vpack.c.b16 %v2690, %v2684
  %v2781 = vpack.c.b16 %v2691, %v2685
  %v2782 = vpack.c.b16 %v2698, %v2692
  %v2783 = vpack.c.b16 %v2699, %v2693
  %v2784 = vpack.c.b16 %v2700, %v2694
  %v2785 = vpack.c.b16 %v2701, %v2695
  %v2786 = vpack.c.b16 %v2702, %v2696
  %v2787 = vpack.c.b16 %v2703, %v2697
  %v2788 = vpack.c.b16 %v2710, %v2704
  %v2789 = vpack.c.b16 %v2711, %v2705
  %v2790 = vpack.c.b16 %v2712, %v2706
  %v2791 = vpack.c.b16 %v2713, %v2707
  %v2792 = vpack.c.b16 %v2714, %v2708
  %v2793 = vpack.c.b16 %v2715, %v2709
  %v2794 = vpack.c.b16 %v2722, %v2716
  %v2795 = vpack.c.b16 %v2723, %v2717
  %v2796 = vpack.c.b16 %v2724, %v2718
  %v2797 = vpack.c.b16 %v2725, %v2719
  %v2798 = vpack.c.b16 %v2726, %v2720
  %v2799 = vpack.c.b16 %v2727, %v2721
  %v2800 = vpack.c.b16 %v2734, %v2728
  %v2801 = vpack.c.b16 %v2735, %v2729
  %v2802 = vpack.c.b16 %v2736, %v2730
  %v2803 = vpack.c.b16 %v2737, %v2731
  %v2804 = vpack.c.b16 %v2738, %v2732
  %v2805 = vpack.c.b16 %v2739, %v2733
  %v2806 = vpack.c.b16 %v2746, %v2740
  %v2807 = vpack.c.b16 %v2747, %v2741
  %v2808 = vpack.c.b16 %v2748, %v2742
  %v2809 = vpack.c.b16 %v2749, %v2743
  %v2810 = vpack.c.b16 %v2750, %v2744
  %v2811 = vpack.c.b16 %v2751, %v2745
  %v2812 = vpack.c.b16 %v2758, %v2752
  %v2813 = vpack.c.b16 %v2759, %v2753
  %v2814 = vpack.c.b16 %v2760, %v2754
  %v2815 = vpack.c.b16 %v2761, %v2755
  %v2816 = vpack.c.b16 %v2762, %v2756
  %v2817 = vpack.c.b16 %v2763, %v2757
  %v2818 = vpack.c.b16 %v2770, %v2764
  %v2819 = vpack.c.b16 %v2771, %v2765
  %v2820 = vpack.c.b16 %v2772, %v2766
  %v2821 = vpack.c.b16 %v2773, %v2767
  %v2822 = vpack.c.b16 %v2774, %v2768
  %v2823 = vpack.c.b16 %v2775, %v2769
  %2872 = vmatpush.bf16.msra.mxu0 %v2818
  %2873 = vmatpush.bf16.msra.mxu0 %v2812
  %2874 = vmatpush.bf16.msra.mxu0 %v2806
  %2875 = vmatpush.bf16.msra.mxu0 %v2800
  %2876 = vmatpush.bf16.msra.mxu0 %v2794
  %2877 = vmatpush.bf16.msra.mxu0 %v2788
  %2878 = vmatpush.bf16.msra.mxu0 %v2782
  %2879 = vmatpush.bf16.msra.mxu0 %v2776
  %2880 = vmatmul.bf16.gmra.mxu0 %v2210
  %v2881 = vpop.f32.mrf.mxu0
  %v2882 = vadd.f32 %v2564, %v2881
  %v2883 = vpop.f32.mrf.mxu0
  %2884 = vdwg.mxu0
  %2885 = vmatpush.bf16.msra.mxu0 %v2819
  %2886 = vmatpush.bf16.msra.mxu0 %v2813
  %2887 = vmatpush.bf16.msra.mxu0 %v2807
  %2888 = vmatpush.bf16.msra.mxu0 %v2801
  %2889 = vmatpush.bf16.msra.mxu0 %v2795
  %2890 = vmatpush.bf16.msra.mxu0 %v2789
  %2891 = vmatpush.bf16.msra.mxu0 %v2783
  %2892 = vmatpush.bf16.msra.mxu0 %v2777
  %2893 = vmatmul.bf16.gmra.mxu0 %v2210
  %v2894 = vpop.f32.mrf.mxu0
  %v2895 = vadd.f32 %v2577, %v2894
  %v2896 = vpop.f32.mrf.mxu0
  %2897 = vdwg.mxu0
  %2898 = vmatpush.bf16.msra.mxu0 %v2820
  %2899 = vmatpush.bf16.msra.mxu0 %v2814
  %2900 = vmatpush.bf16.msra.mxu0 %v2808
  %2901 = vmatpush.bf16.msra.mxu0 %v2802
  %2902 = vmatpush.bf16.msra.mxu0 %v2796
  %2903 = vmatpush.bf16.msra.mxu0 %v2790
  %2904 = vmatpush.bf16.msra.mxu0 %v2784
  %2905 = vmatpush.bf16.msra.mxu0 %v2778
  %2906 = vmatmul.bf16.gmra.mxu0 %v2210
  %v2907 = vpop.f32.mrf.mxu0
  %v2908 = vadd.f32 %v2590, %v2907
  %v2909 = vpop.f32.mrf.mxu0
  %2910 = vdwg.mxu0
  %2911 = vmatpush.bf16.msra.mxu0 %v2821
  %2912 = vmatpush.bf16.msra.mxu0 %v2815
  %2913 = vmatpush.bf16.msra.mxu0 %v2809
  %2914 = vmatpush.bf16.msra.mxu0 %v2803
  %2915 = vmatpush.bf16.msra.mxu0 %v2797
  %2916 = vmatpush.bf16.msra.mxu0 %v2791
  %2917 = vmatpush.bf16.msra.mxu0 %v2785
  %2918 = vmatpush.bf16.msra.mxu0 %v2779
  %2919 = vmatmul.bf16.gmra.mxu0 %v2210
  %v2920 = vpop.f32.mrf.mxu0
  %v2921 = vadd.f32 %v2603, %v2920
  %v2922 = vpop.f32.mrf.mxu0
  %2923 = vdwg.mxu0
  %2924 = vmatpush.bf16.msra.mxu0 %v2822
  %2925 = vmatpush.bf16.msra.mxu0 %v2816
  %2926 = vmatpush.bf16.msra.mxu0 %v2810
  %2927 = vmatpush.bf16.msra.mxu0 %v2804
  %2928 = vmatpush.bf16.msra.mxu0 %v2798
  %2929 = vmatpush.bf16.msra.mxu0 %v2792
  %2930 = vmatpush.bf16.msra.mxu0 %v2786
  %2931 = vmatpush.bf16.msra.mxu0 %v2780
  %2932 = vmatmul.bf16.gmra.mxu0 %v2210
  %v2933 = vpop.f32.mrf.mxu0
  %v2934 = vadd.f32 %v2616, %v2933
  %v2935 = vpop.f32.mrf.mxu0
  %2936 = vdwg.mxu0
  %2937 = vmatpush.bf16.msra.mxu0 %v2823
  %2938 = vmatpush.bf16.msra.mxu0 %v2817
  %2939 = vmatpush.bf16.msra.mxu0 %v2811
  %2940 = vmatpush.bf16.msra.mxu0 %v2805
  %2941 = vmatpush.bf16.msra.mxu0 %v2799
  %2942 = vmatpush.bf16.msra.mxu0 %v2793
  %2943 = vmatpush.bf16.msra.mxu0 %v2787
  %2944 = vmatpush.bf16.msra.mxu0 %v2781
  %2945 = vmatmul.bf16.gmra.mxu0 %v2210
  %v2946 = vpop.f32.mrf.mxu0
  %v2947 = vadd.f32 %v2629, %v2946
  %v2948 = vpop.f32.mrf.mxu0
  %2949 = vdwg.mxu0
  %s2950 = scalar_lea.vmem %s3, 768
  %v2951 = vld [vmem:[%s2950] sm:$0xff]
  %v2952 = vld [vmem:[%s2950 + $0x8] sm:$0xff]
  %v2953 = vld [vmem:[%s2950 + $0x10] sm:$0xff]
  %v2954 = vld [vmem:[%s2950 + $0x18] sm:$0xff]
  %v2955 = vld [vmem:[%s2950 + $0x20] sm:$0xff]
  %v2956 = vld [vmem:[%s2950 + $0x28] sm:$0xff]
  %v2957 = vld [vmem:[%s2950 + $0x30] sm:$0xff]
  %v2958 = vld [vmem:[%s2950 + $0x38] sm:$0xff]
  %v2959 = vld [vmem:[%s2950 + $0x40] sm:$0xff]
  %v2960 = vld [vmem:[%s2950 + $0x48] sm:$0xff]
  %v2961 = vld [vmem:[%s2950 + $0x50] sm:$0xff]
  %v2962 = vld [vmem:[%s2950 + $0x58] sm:$0xff]
  %v2963 = vld [vmem:[%s2950 + $0x60] sm:$0xff]
  %v2964 = vld [vmem:[%s2950 + $0x68] sm:$0xff]
  %v2965 = vld [vmem:[%s2950 + $0x70] sm:$0xff]
  %v2966 = vld [vmem:[%s2950 + $0x78] sm:$0xff]
  %v2967 = vld [vmem:[%s2950 + $0x80] sm:$0xff]
  %v2968 = vld [vmem:[%s2950 + $0x88] sm:$0xff]
  %v2969 = vld [vmem:[%s2950 + $0x90] sm:$0xff]
  %v2970 = vld [vmem:[%s2950 + $0x98] sm:$0xff]
  %v2971 = vld [vmem:[%s2950 + $0xa0] sm:$0xff]
  %v2972 = vld [vmem:[%s2950 + $0xa8] sm:$0xff]
  %v2973 = vld [vmem:[%s2950 + $0xb0] sm:$0xff]
  %v2974 = vld [vmem:[%s2950 + $0xb8] sm:$0xff]
  %v2975 = vld [vmem:[%s2950 + $0xc0] sm:$0xff]
  %v2976 = vld [vmem:[%s2950 + $0xc8] sm:$0xff]
  %v2977 = vld [vmem:[%s2950 + $0xd0] sm:$0xff]
  %v2978 = vld [vmem:[%s2950 + $0xd8] sm:$0xff]
  %v2979 = vld [vmem:[%s2950 + $0xe0] sm:$0xff]
  %v2980 = vld [vmem:[%s2950 + $0xe8] sm:$0xff]
  %v2981 = vld [vmem:[%s2950 + $0xf0] sm:$0xff]
  %v2982 = vld [vmem:[%s2950 + $0xf8] sm:$0xff]
  %v2983 = vld [vmem:[%s2950 + $0x100] sm:$0xff]
  %v2984 = vld [vmem:[%s2950 + $0x108] sm:$0xff]
  %v2985 = vld [vmem:[%s2950 + $0x110] sm:$0xff]
  %v2986 = vld [vmem:[%s2950 + $0x118] sm:$0xff]
  %v2987 = vld [vmem:[%s2950 + $0x120] sm:$0xff]
  %v2988 = vld [vmem:[%s2950 + $0x128] sm:$0xff]
  %v2989 = vld [vmem:[%s2950 + $0x130] sm:$0xff]
  %v2990 = vld [vmem:[%s2950 + $0x138] sm:$0xff]
  %v2991 = vld [vmem:[%s2950 + $0x140] sm:$0xff]
  %v2992 = vld [vmem:[%s2950 + $0x148] sm:$0xff]
  %v2993 = vld [vmem:[%s2950 + $0x150] sm:$0xff]
  %v2994 = vld [vmem:[%s2950 + $0x158] sm:$0xff]
  %v2995 = vld [vmem:[%s2950 + $0x160] sm:$0xff]
  %v2996 = vld [vmem:[%s2950 + $0x168] sm:$0xff]
  %v2997 = vld [vmem:[%s2950 + $0x170] sm:$0xff]
  %v2998 = vld [vmem:[%s2950 + $0x178] sm:$0xff]
  %v2999 = vrot.slane %v2311, 2
  %v3049 = vunpack.c.l.b16 %v2951
  %v3050 = vunpack.c.h.b16 %v2951
  %v3051 = vunpack.c.l.b16 %v2952
  %v3052 = vunpack.c.h.b16 %v2952
  %v3053 = vunpack.c.l.b16 %v2953
  %v3054 = vunpack.c.h.b16 %v2953
  %v3055 = vunpack.c.l.b16 %v2954
  %v3056 = vunpack.c.h.b16 %v2954
  %v3057 = vunpack.c.l.b16 %v2955
  %v3058 = vunpack.c.h.b16 %v2955
  %v3059 = vunpack.c.l.b16 %v2956
  %v3060 = vunpack.c.h.b16 %v2956
  %v3061 = vunpack.c.l.b16 %v2957
  %v3062 = vunpack.c.h.b16 %v2957
  %v3063 = vunpack.c.l.b16 %v2958
  %v3064 = vunpack.c.h.b16 %v2958
  %v3065 = vunpack.c.l.b16 %v2959
  %v3066 = vunpack.c.h.b16 %v2959
  %v3067 = vunpack.c.l.b16 %v2960
  %v3068 = vunpack.c.h.b16 %v2960
  %v3069 = vunpack.c.l.b16 %v2961
  %v3070 = vunpack.c.h.b16 %v2961
  %v3071 = vunpack.c.l.b16 %v2962
  %v3072 = vunpack.c.h.b16 %v2962
  %v3073 = vunpack.c.l.b16 %v2963
  %v3074 = vunpack.c.h.b16 %v2963
  %v3075 = vunpack.c.l.b16 %v2964
  %v3076 = vunpack.c.h.b16 %v2964
  %v3077 = vunpack.c.l.b16 %v2965
  %v3078 = vunpack.c.h.b16 %v2965
  %v3079 = vunpack.c.l.b16 %v2966
  %v3080 = vunpack.c.h.b16 %v2966
  %v3081 = vunpack.c.l.b16 %v2967
  %v3082 = vunpack.c.h.b16 %v2967
  %v3083 = vunpack.c.l.b16 %v2968
  %v3084 = vunpack.c.h.b16 %v2968
  %v3085 = vunpack.c.l.b16 %v2969
  %v3086 = vunpack.c.h.b16 %v2969
  %v3087 = vunpack.c.l.b16 %v2970
  %v3088 = vunpack.c.h.b16 %v2970
  %v3089 = vunpack.c.l.b16 %v2971
  %v3090 = vunpack.c.h.b16 %v2971
  %v3091 = vunpack.c.l.b16 %v2972
  %v3092 = vunpack.c.h.b16 %v2972
  %v3093 = vunpack.c.l.b16 %v2973
  %v3094 = vunpack.c.h.b16 %v2973
  %v3095 = vunpack.c.l.b16 %v2974
  %v3096 = vunpack.c.h.b16 %v2974
  %v3097 = vunpack.c.l.b16 %v2975
  %v3098 = vunpack.c.h.b16 %v2975
  %v3099 = vunpack.c.l.b16 %v2976
  %v3100 = vunpack.c.h.b16 %v2976
  %v3101 = vunpack.c.l.b16 %v2977
  %v3102 = vunpack.c.h.b16 %v2977
  %v3103 = vunpack.c.l.b16 %v2978
  %v3104 = vunpack.c.h.b16 %v2978
  %v3105 = vunpack.c.l.b16 %v2979
  %v3106 = vunpack.c.h.b16 %v2979
  %v3107 = vunpack.c.l.b16 %v2980
  %v3108 = vunpack.c.h.b16 %v2980
  %v3109 = vunpack.c.l.b16 %v2981
  %v3110 = vunpack.c.h.b16 %v2981
  %v3111 = vunpack.c.l.b16 %v2982
  %v3112 = vunpack.c.h.b16 %v2982
  %v3113 = vunpack.c.l.b16 %v2983
  %v3114 = vunpack.c.h.b16 %v2983
  %v3115 = vunpack.c.l.b16 %v2984
  %v3116 = vunpack.c.h.b16 %v2984
  %v3117 = vunpack.c.l.b16 %v2985
  %v3118 = vunpack.c.h.b16 %v2985
  %v3119 = vunpack.c.l.b16 %v2986
  %v3120 = vunpack.c.h.b16 %v2986
  %v3121 = vunpack.c.l.b16 %v2987
  %v3122 = vunpack.c.h.b16 %v2987
  %v3123 = vunpack.c.l.b16 %v2988
  %v3124 = vunpack.c.h.b16 %v2988
  %v3125 = vunpack.c.l.b16 %v2989
  %v3126 = vunpack.c.h.b16 %v2989
  %v3127 = vunpack.c.l.b16 %v2990
  %v3128 = vunpack.c.h.b16 %v2990
  %v3129 = vunpack.c.l.b16 %v2991
  %v3130 = vunpack.c.h.b16 %v2991
  %v3131 = vunpack.c.l.b16 %v2992
  %v3132 = vunpack.c.h.b16 %v2992
  %v3133 = vunpack.c.l.b16 %v2993
  %v3134 = vunpack.c.h.b16 %v2993
  %v3135 = vunpack.c.l.b16 %v2994
  %v3136 = vunpack.c.h.b16 %v2994
  %v3137 = vunpack.c.l.b16 %v2995
  %v3138 = vunpack.c.h.b16 %v2995
  %v3139 = vunpack.c.l.b16 %v2996
  %v3140 = vunpack.c.h.b16 %v2996
  %v3141 = vunpack.c.l.b16 %v2997
  %v3142 = vunpack.c.h.b16 %v2997
  %v3143 = vunpack.c.l.b16 %v2998
  %v3144 = vunpack.c.h.b16 %v2998
  %v3145 = vpack.c.b16 %v3055, %v3049
  %v3146 = vpack.c.b16 %v3056, %v3050
  %v3147 = vpack.c.b16 %v3057, %v3051
  %v3148 = vpack.c.b16 %v3058, %v3052
  %v3149 = vpack.c.b16 %v3059, %v3053
  %v3150 = vpack.c.b16 %v3060, %v3054
  %v3151 = vpack.c.b16 %v3067, %v3061
  %v3152 = vpack.c.b16 %v3068, %v3062
  %v3153 = vpack.c.b16 %v3069, %v3063
  %v3154 = vpack.c.b16 %v3070, %v3064
  %v3155 = vpack.c.b16 %v3071, %v3065
  %v3156 = vpack.c.b16 %v3072, %v3066
  %v3157 = vpack.c.b16 %v3079, %v3073
  %v3158 = vpack.c.b16 %v3080, %v3074
  %v3159 = vpack.c.b16 %v3081, %v3075
  %v3160 = vpack.c.b16 %v3082, %v3076
  %v3161 = vpack.c.b16 %v3083, %v3077
  %v3162 = vpack.c.b16 %v3084, %v3078
  %v3163 = vpack.c.b16 %v3091, %v3085
  %v3164 = vpack.c.b16 %v3092, %v3086
  %v3165 = vpack.c.b16 %v3093, %v3087
  %v3166 = vpack.c.b16 %v3094, %v3088
  %v3167 = vpack.c.b16 %v3095, %v3089
  %v3168 = vpack.c.b16 %v3096, %v3090
  %v3169 = vpack.c.b16 %v3103, %v3097
  %v3170 = vpack.c.b16 %v3104, %v3098
  %v3171 = vpack.c.b16 %v3105, %v3099
  %v3172 = vpack.c.b16 %v3106, %v3100
  %v3173 = vpack.c.b16 %v3107, %v3101
  %v3174 = vpack.c.b16 %v3108, %v3102
  %v3175 = vpack.c.b16 %v3115, %v3109
  %v3176 = vpack.c.b16 %v3116, %v3110
  %v3177 = vpack.c.b16 %v3117, %v3111
  %v3178 = vpack.c.b16 %v3118, %v3112
  %v3179 = vpack.c.b16 %v3119, %v3113
  %v3180 = vpack.c.b16 %v3120, %v3114
  %v3181 = vpack.c.b16 %v3127, %v3121
  %v3182 = vpack.c.b16 %v3128, %v3122
  %v3183 = vpack.c.b16 %v3129, %v3123
  %v3184 = vpack.c.b16 %v3130, %v3124
  %v3185 = vpack.c.b16 %v3131, %v3125
  %v3186 = vpack.c.b16 %v3132, %v3126
  %v3187 = vpack.c.b16 %v3139, %v3133
  %v3188 = vpack.c.b16 %v3140, %v3134
  %v3189 = vpack.c.b16 %v3141, %v3135
  %v3190 = vpack.c.b16 %v3142, %v3136
  %v3191 = vpack.c.b16 %v3143, %v3137
  %v3192 = vpack.c.b16 %v3144, %v3138
  %3241 = vmatpush.bf16.msra.mxu0 %v3187
  %3242 = vmatpush.bf16.msra.mxu0 %v3181
  %3243 = vmatpush.bf16.msra.mxu0 %v3175
  %3244 = vmatpush.bf16.msra.mxu0 %v3169
  %3245 = vmatpush.bf16.msra.mxu0 %v3163
  %3246 = vmatpush.bf16.msra.mxu0 %v3157
  %3247 = vmatpush.bf16.msra.mxu0 %v3151
  %3248 = vmatpush.bf16.msra.mxu0 %v3145
  %3249 = vmatmul.bf16.gmra.mxu0 %v2999
  %v3250 = vpop.f32.mrf.mxu0
  %v3251 = vadd.f32 0.0, %v3250
  %v3252 = vpop.f32.mrf.mxu0
  %3253 = vdwg.mxu0
  %3254 = vmatpush.bf16.msra.mxu0 %v3188
  %3255 = vmatpush.bf16.msra.mxu0 %v3182
  %3256 = vmatpush.bf16.msra.mxu0 %v3176
  %3257 = vmatpush.bf16.msra.mxu0 %v3170
  %3258 = vmatpush.bf16.msra.mxu0 %v3164
  %3259 = vmatpush.bf16.msra.mxu0 %v3158
  %3260 = vmatpush.bf16.msra.mxu0 %v3152
  %3261 = vmatpush.bf16.msra.mxu0 %v3146
  %3262 = vmatmul.bf16.gmra.mxu0 %v2999
  %v3263 = vpop.f32.mrf.mxu0
  %v3264 = vadd.f32 0.0, %v3263
  %v3265 = vpop.f32.mrf.mxu0
  %3266 = vdwg.mxu0
  %3267 = vmatpush.bf16.msra.mxu0 %v3189
  %3268 = vmatpush.bf16.msra.mxu0 %v3183
  %3269 = vmatpush.bf16.msra.mxu0 %v3177
  %3270 = vmatpush.bf16.msra.mxu0 %v3171
  %3271 = vmatpush.bf16.msra.mxu0 %v3165
  %3272 = vmatpush.bf16.msra.mxu0 %v3159
  %3273 = vmatpush.bf16.msra.mxu0 %v3153
  %3274 = vmatpush.bf16.msra.mxu0 %v3147
  %3275 = vmatmul.bf16.gmra.mxu0 %v2999
  %v3276 = vpop.f32.mrf.mxu0
  %v3277 = vadd.f32 0.0, %v3276
  %v3278 = vpop.f32.mrf.mxu0
  %3279 = vdwg.mxu0
  %3280 = vmatpush.bf16.msra.mxu0 %v3190
  %3281 = vmatpush.bf16.msra.mxu0 %v3184
  %3282 = vmatpush.bf16.msra.mxu0 %v3178
  %3283 = vmatpush.bf16.msra.mxu0 %v3172
  %3284 = vmatpush.bf16.msra.mxu0 %v3166
  %3285 = vmatpush.bf16.msra.mxu0 %v3160
  %3286 = vmatpush.bf16.msra.mxu0 %v3154
  %3287 = vmatpush.bf16.msra.mxu0 %v3148
  %3288 = vmatmul.bf16.gmra.mxu0 %v2999
  %v3289 = vpop.f32.mrf.mxu0
  %v3290 = vadd.f32 0.0, %v3289
  %v3291 = vpop.f32.mrf.mxu0
  %3292 = vdwg.mxu0
  %3293 = vmatpush.bf16.msra.mxu0 %v3191
  %3294 = vmatpush.bf16.msra.mxu0 %v3185
  %3295 = vmatpush.bf16.msra.mxu0 %v3179
  %3296 = vmatpush.bf16.msra.mxu0 %v3173
  %3297 = vmatpush.bf16.msra.mxu0 %v3167
  %3298 = vmatpush.bf16.msra.mxu0 %v3161
  %3299 = vmatpush.bf16.msra.mxu0 %v3155
  %3300 = vmatpush.bf16.msra.mxu0 %v3149
  %3301 = vmatmul.bf16.gmra.mxu0 %v2999
  %v3302 = vpop.f32.mrf.mxu0
  %v3303 = vadd.f32 0.0, %v3302
  %v3304 = vpop.f32.mrf.mxu0
  %3305 = vdwg.mxu0
  %3306 = vmatpush.bf16.msra.mxu0 %v3192
  %3307 = vmatpush.bf16.msra.mxu0 %v3186
  %3308 = vmatpush.bf16.msra.mxu0 %v3180
  %3309 = vmatpush.bf16.msra.mxu0 %v3174
  %3310 = vmatpush.bf16.msra.mxu0 %v3168
  %3311 = vmatpush.bf16.msra.mxu0 %v3162
  %3312 = vmatpush.bf16.msra.mxu0 %v3156
  %3313 = vmatpush.bf16.msra.mxu0 %v3150
  %3314 = vmatmul.bf16.gmra.mxu0 %v2999
  %v3315 = vpop.f32.mrf.mxu0
  %v3316 = vadd.f32 0.0, %v3315
  %v3317 = vpop.f32.mrf.mxu0
  %3318 = vdwg.mxu0
  %v3319 = vadd.f32 %v2882, %v3251
  %v3320 = vadd.f32 %v2895, %v3264
  %v3321 = vadd.f32 %v2908, %v3277
  %v3322 = vadd.f32 %v2921, %v3290
  %v3323 = vadd.f32 %v2934, %v3303
  %v3324 = vadd.f32 %v2947, %v3316
  %s3325 = scalar_lea.vmem %s3, 1152
  %v3326 = vld [vmem:[%s3325] sm:$0xff]
  %v3327 = vld [vmem:[%s3325 + $0x8] sm:$0xff]
  %v3328 = vld [vmem:[%s3325 + $0x10] sm:$0xff]
  %v3329 = vld [vmem:[%s3325 + $0x18] sm:$0xff]
  %v3330 = vld [vmem:[%s3325 + $0x20] sm:$0xff]
  %v3331 = vld [vmem:[%s3325 + $0x28] sm:$0xff]
  %v3332 = vld [vmem:[%s3325 + $0x30] sm:$0xff]
  %v3333 = vld [vmem:[%s3325 + $0x38] sm:$0xff]
  %v3334 = vld [vmem:[%s3325 + $0x40] sm:$0xff]
  %v3335 = vld [vmem:[%s3325 + $0x48] sm:$0xff]
  %v3336 = vld [vmem:[%s3325 + $0x50] sm:$0xff]
  %v3337 = vld [vmem:[%s3325 + $0x58] sm:$0xff]
  %v3338 = vld [vmem:[%s3325 + $0x60] sm:$0xff]
  %v3339 = vld [vmem:[%s3325 + $0x68] sm:$0xff]
  %v3340 = vld [vmem:[%s3325 + $0x70] sm:$0xff]
  %v3341 = vld [vmem:[%s3325 + $0x78] sm:$0xff]
  %v3342 = vld [vmem:[%s3325 + $0x80] sm:$0xff]
  %v3343 = vld [vmem:[%s3325 + $0x88] sm:$0xff]
  %v3344 = vld [vmem:[%s3325 + $0x90] sm:$0xff]
  %v3345 = vld [vmem:[%s3325 + $0x98] sm:$0xff]
  %v3346 = vld [vmem:[%s3325 + $0xa0] sm:$0xff]
  %v3347 = vld [vmem:[%s3325 + $0xa8] sm:$0xff]
  %v3348 = vld [vmem:[%s3325 + $0xb0] sm:$0xff]
  %v3349 = vld [vmem:[%s3325 + $0xb8] sm:$0xff]
  %v3350 = vld [vmem:[%s3325 + $0xc0] sm:$0xff]
  %v3351 = vld [vmem:[%s3325 + $0xc8] sm:$0xff]
  %v3352 = vld [vmem:[%s3325 + $0xd0] sm:$0xff]
  %v3353 = vld [vmem:[%s3325 + $0xd8] sm:$0xff]
  %v3354 = vld [vmem:[%s3325 + $0xe0] sm:$0xff]
  %v3355 = vld [vmem:[%s3325 + $0xe8] sm:$0xff]
  %v3356 = vld [vmem:[%s3325 + $0xf0] sm:$0xff]
  %v3357 = vld [vmem:[%s3325 + $0xf8] sm:$0xff]
  %v3358 = vld [vmem:[%s3325 + $0x100] sm:$0xff]
  %v3359 = vld [vmem:[%s3325 + $0x108] sm:$0xff]
  %v3360 = vld [vmem:[%s3325 + $0x110] sm:$0xff]
  %v3361 = vld [vmem:[%s3325 + $0x118] sm:$0xff]
  %v3362 = vld [vmem:[%s3325 + $0x120] sm:$0xff]
  %v3363 = vld [vmem:[%s3325 + $0x128] sm:$0xff]
  %v3364 = vld [vmem:[%s3325 + $0x130] sm:$0xff]
  %v3365 = vld [vmem:[%s3325 + $0x138] sm:$0xff]
  %v3366 = vld [vmem:[%s3325 + $0x140] sm:$0xff]
  %v3367 = vld [vmem:[%s3325 + $0x148] sm:$0xff]
  %v3368 = vld [vmem:[%s3325 + $0x150] sm:$0xff]
  %v3369 = vld [vmem:[%s3325 + $0x158] sm:$0xff]
  %v3370 = vld [vmem:[%s3325 + $0x160] sm:$0xff]
  %v3371 = vld [vmem:[%s3325 + $0x168] sm:$0xff]
  %v3372 = vld [vmem:[%s3325 + $0x170] sm:$0xff]
  %v3373 = vld [vmem:[%s3325 + $0x178] sm:$0xff]
  %v3374 = vrot.slane %v2311, 3
  %v3424 = vunpack.c.l.b16 %v3326
  %v3425 = vunpack.c.h.b16 %v3326
  %v3426 = vunpack.c.l.b16 %v3327
  %v3427 = vunpack.c.h.b16 %v3327
  %v3428 = vunpack.c.l.b16 %v3328
  %v3429 = vunpack.c.h.b16 %v3328
  %v3430 = vunpack.c.l.b16 %v3329
  %v3431 = vunpack.c.h.b16 %v3329
  %v3432 = vunpack.c.l.b16 %v3330
  %v3433 = vunpack.c.h.b16 %v3330
  %v3434 = vunpack.c.l.b16 %v3331
  %v3435 = vunpack.c.h.b16 %v3331
  %v3436 = vunpack.c.l.b16 %v3332
  %v3437 = vunpack.c.h.b16 %v3332
  %v3438 = vunpack.c.l.b16 %v3333
  %v3439 = vunpack.c.h.b16 %v3333
  %v3440 = vunpack.c.l.b16 %v3334
  %v3441 = vunpack.c.h.b16 %v3334
  %v3442 = vunpack.c.l.b16 %v3335
  %v3443 = vunpack.c.h.b16 %v3335
  %v3444 = vunpack.c.l.b16 %v3336
  %v3445 = vunpack.c.h.b16 %v3336
  %v3446 = vunpack.c.l.b16 %v3337
  %v3447 = vunpack.c.h.b16 %v3337
  %v3448 = vunpack.c.l.b16 %v3338
  %v3449 = vunpack.c.h.b16 %v3338
  %v3450 = vunpack.c.l.b16 %v3339
  %v3451 = vunpack.c.h.b16 %v3339
  %v3452 = vunpack.c.l.b16 %v3340
  %v3453 = vunpack.c.h.b16 %v3340
  %v3454 = vunpack.c.l.b16 %v3341
  %v3455 = vunpack.c.h.b16 %v3341
  %v3456 = vunpack.c.l.b16 %v3342
  %v3457 = vunpack.c.h.b16 %v3342
  %v3458 = vunpack.c.l.b16 %v3343
  %v3459 = vunpack.c.h.b16 %v3343
  %v3460 = vunpack.c.l.b16 %v3344
  %v3461 = vunpack.c.h.b16 %v3344
  %v3462 = vunpack.c.l.b16 %v3345
  %v3463 = vunpack.c.h.b16 %v3345
  %v3464 = vunpack.c.l.b16 %v3346
  %v3465 = vunpack.c.h.b16 %v3346
  %v3466 = vunpack.c.l.b16 %v3347
  %v3467 = vunpack.c.h.b16 %v3347
  %v3468 = vunpack.c.l.b16 %v3348
  %v3469 = vunpack.c.h.b16 %v3348
  %v3470 = vunpack.c.l.b16 %v3349
  %v3471 = vunpack.c.h.b16 %v3349
  %v3472 = vunpack.c.l.b16 %v3350
  %v3473 = vunpack.c.h.b16 %v3350
  %v3474 = vunpack.c.l.b16 %v3351
  %v3475 = vunpack.c.h.b16 %v3351
  %v3476 = vunpack.c.l.b16 %v3352
  %v3477 = vunpack.c.h.b16 %v3352
  %v3478 = vunpack.c.l.b16 %v3353
  %v3479 = vunpack.c.h.b16 %v3353
  %v3480 = vunpack.c.l.b16 %v3354
  %v3481 = vunpack.c.h.b16 %v3354
  %v3482 = vunpack.c.l.b16 %v3355
  %v3483 = vunpack.c.h.b16 %v3355
  %v3484 = vunpack.c.l.b16 %v3356
  %v3485 = vunpack.c.h.b16 %v3356
  %v3486 = vunpack.c.l.b16 %v3357
  %v3487 = vunpack.c.h.b16 %v3357
  %v3488 = vunpack.c.l.b16 %v3358
  %v3489 = vunpack.c.h.b16 %v3358
  %v3490 = vunpack.c.l.b16 %v3359
  %v3491 = vunpack.c.h.b16 %v3359
  %v3492 = vunpack.c.l.b16 %v3360
  %v3493 = vunpack.c.h.b16 %v3360
  %v3494 = vunpack.c.l.b16 %v3361
  %v3495 = vunpack.c.h.b16 %v3361
  %v3496 = vunpack.c.l.b16 %v3362
  %v3497 = vunpack.c.h.b16 %v3362
  %v3498 = vunpack.c.l.b16 %v3363
  %v3499 = vunpack.c.h.b16 %v3363
  %v3500 = vunpack.c.l.b16 %v3364
  %v3501 = vunpack.c.h.b16 %v3364
  %v3502 = vunpack.c.l.b16 %v3365
  %v3503 = vunpack.c.h.b16 %v3365
  %v3504 = vunpack.c.l.b16 %v3366
  %v3505 = vunpack.c.h.b16 %v3366
  %v3506 = vunpack.c.l.b16 %v3367
  %v3507 = vunpack.c.h.b16 %v3367
  %v3508 = vunpack.c.l.b16 %v3368
  %v3509 = vunpack.c.h.b16 %v3368
  %v3510 = vunpack.c.l.b16 %v3369
  %v3511 = vunpack.c.h.b16 %v3369
  %v3512 = vunpack.c.l.b16 %v3370
  %v3513 = vunpack.c.h.b16 %v3370
  %v3514 = vunpack.c.l.b16 %v3371
  %v3515 = vunpack.c.h.b16 %v3371
  %v3516 = vunpack.c.l.b16 %v3372
  %v3517 = vunpack.c.h.b16 %v3372
  %v3518 = vunpack.c.l.b16 %v3373
  %v3519 = vunpack.c.h.b16 %v3373
  %v3520 = vpack.c.b16 %v3430, %v3424
  %v3521 = vpack.c.b16 %v3431, %v3425
  %v3522 = vpack.c.b16 %v3432, %v3426
  %v3523 = vpack.c.b16 %v3433, %v3427
  %v3524 = vpack.c.b16 %v3434, %v3428
  %v3525 = vpack.c.b16 %v3435, %v3429
  %v3526 = vpack.c.b16 %v3442, %v3436
  %v3527 = vpack.c.b16 %v3443, %v3437
  %v3528 = vpack.c.b16 %v3444, %v3438
  %v3529 = vpack.c.b16 %v3445, %v3439
  %v3530 = vpack.c.b16 %v3446, %v3440
  %v3531 = vpack.c.b16 %v3447, %v3441
  %v3532 = vpack.c.b16 %v3454, %v3448
  %v3533 = vpack.c.b16 %v3455, %v3449
  %v3534 = vpack.c.b16 %v3456, %v3450
  %v3535 = vpack.c.b16 %v3457, %v3451
  %v3536 = vpack.c.b16 %v3458, %v3452
  %v3537 = vpack.c.b16 %v3459, %v3453
  %v3538 = vpack.c.b16 %v3466, %v3460
  %v3539 = vpack.c.b16 %v3467, %v3461
  %v3540 = vpack.c.b16 %v3468, %v3462
  %v3541 = vpack.c.b16 %v3469, %v3463
  %v3542 = vpack.c.b16 %v3470, %v3464
  %v3543 = vpack.c.b16 %v3471, %v3465
  %v3544 = vpack.c.b16 %v3478, %v3472
  %v3545 = vpack.c.b16 %v3479, %v3473
  %v3546 = vpack.c.b16 %v3480, %v3474
  %v3547 = vpack.c.b16 %v3481, %v3475
  %v3548 = vpack.c.b16 %v3482, %v3476
  %v3549 = vpack.c.b16 %v3483, %v3477
  %v3550 = vpack.c.b16 %v3490, %v3484
  %v3551 = vpack.c.b16 %v3491, %v3485
  %v3552 = vpack.c.b16 %v3492, %v3486
  %v3553 = vpack.c.b16 %v3493, %v3487
  %v3554 = vpack.c.b16 %v3494, %v3488
  %v3555 = vpack.c.b16 %v3495, %v3489
  %v3556 = vpack.c.b16 %v3502, %v3496
  %v3557 = vpack.c.b16 %v3503, %v3497
  %v3558 = vpack.c.b16 %v3504, %v3498
  %v3559 = vpack.c.b16 %v3505, %v3499
  %v3560 = vpack.c.b16 %v3506, %v3500
  %v3561 = vpack.c.b16 %v3507, %v3501
  %v3562 = vpack.c.b16 %v3514, %v3508
  %v3563 = vpack.c.b16 %v3515, %v3509
  %v3564 = vpack.c.b16 %v3516, %v3510
  %v3565 = vpack.c.b16 %v3517, %v3511
  %v3566 = vpack.c.b16 %v3518, %v3512
  %v3567 = vpack.c.b16 %v3519, %v3513
  %3616 = vmatpush.bf16.msra.mxu0 %v3562
  %3617 = vmatpush.bf16.msra.mxu0 %v3556
  %3618 = vmatpush.bf16.msra.mxu0 %v3550
  %3619 = vmatpush.bf16.msra.mxu0 %v3544
  %3620 = vmatpush.bf16.msra.mxu0 %v3538
  %3621 = vmatpush.bf16.msra.mxu0 %v3532
  %3622 = vmatpush.bf16.msra.mxu0 %v3526
  %3623 = vmatpush.bf16.msra.mxu0 %v3520
  %3624 = vmatmul.bf16.gmra.mxu0 %v3374
  %v3625 = vpop.f32.mrf.mxu0
  %v3626 = vadd.f32 0.0, %v3625
  %v3627 = vpop.f32.mrf.mxu0
  %3628 = vdwg.mxu0
  %3629 = vmatpush.bf16.msra.mxu0 %v3563
  %3630 = vmatpush.bf16.msra.mxu0 %v3557
  %3631 = vmatpush.bf16.msra.mxu0 %v3551
  %3632 = vmatpush.bf16.msra.mxu0 %v3545
  %3633 = vmatpush.bf16.msra.mxu0 %v3539
  %3634 = vmatpush.bf16.msra.mxu0 %v3533
  %3635 = vmatpush.bf16.msra.mxu0 %v3527
  %3636 = vmatpush.bf16.msra.mxu0 %v3521
  %3637 = vmatmul.bf16.gmra.mxu0 %v3374
  %v3638 = vpop.f32.mrf.mxu0
  %v3639 = vadd.f32 0.0, %v3638
  %v3640 = vpop.f32.mrf.mxu0
  %3641 = vdwg.mxu0
  %3642 = vmatpush.bf16.msra.mxu0 %v3564
  %3643 = vmatpush.bf16.msra.mxu0 %v3558
  %3644 = vmatpush.bf16.msra.mxu0 %v3552
  %3645 = vmatpush.bf16.msra.mxu0 %v3546
  %3646 = vmatpush.bf16.msra.mxu0 %v3540
  %3647 = vmatpush.bf16.msra.mxu0 %v3534
  %3648 = vmatpush.bf16.msra.mxu0 %v3528
  %3649 = vmatpush.bf16.msra.mxu0 %v3522
  %3650 = vmatmul.bf16.gmra.mxu0 %v3374
  %v3651 = vpop.f32.mrf.mxu0
  %v3652 = vadd.f32 0.0, %v3651
  %v3653 = vpop.f32.mrf.mxu0
  %3654 = vdwg.mxu0
  %3655 = vmatpush.bf16.msra.mxu0 %v3565
  %3656 = vmatpush.bf16.msra.mxu0 %v3559
  %3657 = vmatpush.bf16.msra.mxu0 %v3553
  %3658 = vmatpush.bf16.msra.mxu0 %v3547
  %3659 = vmatpush.bf16.msra.mxu0 %v3541
  %3660 = vmatpush.bf16.msra.mxu0 %v3535
  %3661 = vmatpush.bf16.msra.mxu0 %v3529
  %3662 = vmatpush.bf16.msra.mxu0 %v3523
  %3663 = vmatmul.bf16.gmra.mxu0 %v3374
  %v3664 = vpop.f32.mrf.mxu0
  %v3665 = vadd.f32 0.0, %v3664
  %v3666 = vpop.f32.mrf.mxu0
  %3667 = vdwg.mxu0
  %3668 = vmatpush.bf16.msra.mxu0 %v3566
  %3669 = vmatpush.bf16.msra.mxu0 %v3560
  %3670 = vmatpush.bf16.msra.mxu0 %v3554
  %3671 = vmatpush.bf16.msra.mxu0 %v3548
  %3672 = vmatpush.bf16.msra.mxu0 %v3542
  %3673 = vmatpush.bf16.msra.mxu0 %v3536
  %3674 = vmatpush.bf16.msra.mxu0 %v3530
  %3675 = vmatpush.bf16.msra.mxu0 %v3524
  %3676 = vmatmul.bf16.gmra.mxu0 %v3374
  %v3677 = vpop.f32.mrf.mxu0
  %v3678 = vadd.f32 0.0, %v3677
  %v3679 = vpop.f32.mrf.mxu0
  %3680 = vdwg.mxu0
  %3681 = vmatpush.bf16.msra.mxu0 %v3567
  %3682 = vmatpush.bf16.msra.mxu0 %v3561
  %3683 = vmatpush.bf16.msra.mxu0 %v3555
  %3684 = vmatpush.bf16.msra.mxu0 %v3549
  %3685 = vmatpush.bf16.msra.mxu0 %v3543
  %3686 = vmatpush.bf16.msra.mxu0 %v3537
  %3687 = vmatpush.bf16.msra.mxu0 %v3531
  %3688 = vmatpush.bf16.msra.mxu0 %v3525
  %3689 = vmatmul.bf16.gmra.mxu0 %v3374
  %v3690 = vpop.f32.mrf.mxu0
  %v3691 = vadd.f32 0.0, %v3690
  %v3692 = vpop.f32.mrf.mxu0
  %3693 = vdwg.mxu0
  %v3694 = vadd.f32 %v3319, %v3626
  %v3695 = vadd.f32 %v3320, %v3639
  %v3696 = vadd.f32 %v3321, %v3652
  %v3697 = vadd.f32 %v3322, %v3665
  %v3698 = vadd.f32 %v3323, %v3678
  %v3699 = vadd.f32 %v3324, %v3691
  %s3700 = scalar_lea.vmem %s3, 1536
  %v3701 = vld [vmem:[%s3700] sm:$0xff]
  %v3702 = vld [vmem:[%s3700 + $0x8] sm:$0xff]
  %v3703 = vld [vmem:[%s3700 + $0x10] sm:$0xff]
  %v3704 = vld [vmem:[%s3700 + $0x18] sm:$0xff]
  %v3705 = vld [vmem:[%s3700 + $0x20] sm:$0xff]
  %v3706 = vld [vmem:[%s3700 + $0x28] sm:$0xff]
  %v3707 = vld [vmem:[%s3700 + $0x30] sm:$0xff]
  %v3708 = vld [vmem:[%s3700 + $0x38] sm:$0xff]
  %v3709 = vld [vmem:[%s3700 + $0x40] sm:$0xff]
  %v3710 = vld [vmem:[%s3700 + $0x48] sm:$0xff]
  %v3711 = vld [vmem:[%s3700 + $0x50] sm:$0xff]
  %v3712 = vld [vmem:[%s3700 + $0x58] sm:$0xff]
  %v3713 = vld [vmem:[%s3700 + $0x60] sm:$0xff]
  %v3714 = vld [vmem:[%s3700 + $0x68] sm:$0xff]
  %v3715 = vld [vmem:[%s3700 + $0x70] sm:$0xff]
  %v3716 = vld [vmem:[%s3700 + $0x78] sm:$0xff]
  %v3717 = vld [vmem:[%s3700 + $0x80] sm:$0xff]
  %v3718 = vld [vmem:[%s3700 + $0x88] sm:$0xff]
  %v3719 = vld [vmem:[%s3700 + $0x90] sm:$0xff]
  %v3720 = vld [vmem:[%s3700 + $0x98] sm:$0xff]
  %v3721 = vld [vmem:[%s3700 + $0xa0] sm:$0xff]
  %v3722 = vld [vmem:[%s3700 + $0xa8] sm:$0xff]
  %v3723 = vld [vmem:[%s3700 + $0xb0] sm:$0xff]
  %v3724 = vld [vmem:[%s3700 + $0xb8] sm:$0xff]
  %v3725 = vld [vmem:[%s3700 + $0xc0] sm:$0xff]
  %v3726 = vld [vmem:[%s3700 + $0xc8] sm:$0xff]
  %v3727 = vld [vmem:[%s3700 + $0xd0] sm:$0xff]
  %v3728 = vld [vmem:[%s3700 + $0xd8] sm:$0xff]
  %v3729 = vld [vmem:[%s3700 + $0xe0] sm:$0xff]
  %v3730 = vld [vmem:[%s3700 + $0xe8] sm:$0xff]
  %v3731 = vld [vmem:[%s3700 + $0xf0] sm:$0xff]
  %v3732 = vld [vmem:[%s3700 + $0xf8] sm:$0xff]
  %v3733 = vld [vmem:[%s3700 + $0x100] sm:$0xff]
  %v3734 = vld [vmem:[%s3700 + $0x108] sm:$0xff]
  %v3735 = vld [vmem:[%s3700 + $0x110] sm:$0xff]
  %v3736 = vld [vmem:[%s3700 + $0x118] sm:$0xff]
  %v3737 = vld [vmem:[%s3700 + $0x120] sm:$0xff]
  %v3738 = vld [vmem:[%s3700 + $0x128] sm:$0xff]
  %v3739 = vld [vmem:[%s3700 + $0x130] sm:$0xff]
  %v3740 = vld [vmem:[%s3700 + $0x138] sm:$0xff]
  %v3741 = vld [vmem:[%s3700 + $0x140] sm:$0xff]
  %v3742 = vld [vmem:[%s3700 + $0x148] sm:$0xff]
  %v3743 = vld [vmem:[%s3700 + $0x150] sm:$0xff]
  %v3744 = vld [vmem:[%s3700 + $0x158] sm:$0xff]
  %v3745 = vld [vmem:[%s3700 + $0x160] sm:$0xff]
  %v3746 = vld [vmem:[%s3700 + $0x168] sm:$0xff]
  %v3747 = vld [vmem:[%s3700 + $0x170] sm:$0xff]
  %v3748 = vld [vmem:[%s3700 + $0x178] sm:$0xff]
  %v3797 = vunpack.c.l.b16 %v3701
  %v3798 = vunpack.c.h.b16 %v3701
  %v3799 = vunpack.c.l.b16 %v3702
  %v3800 = vunpack.c.h.b16 %v3702
  %v3801 = vunpack.c.l.b16 %v3703
  %v3802 = vunpack.c.h.b16 %v3703
  %v3803 = vunpack.c.l.b16 %v3704
  %v3804 = vunpack.c.h.b16 %v3704
  %v3805 = vunpack.c.l.b16 %v3705
  %v3806 = vunpack.c.h.b16 %v3705
  %v3807 = vunpack.c.l.b16 %v3706
  %v3808 = vunpack.c.h.b16 %v3706
  %v3809 = vunpack.c.l.b16 %v3707
  %v3810 = vunpack.c.h.b16 %v3707
  %v3811 = vunpack.c.l.b16 %v3708
  %v3812 = vunpack.c.h.b16 %v3708
  %v3813 = vunpack.c.l.b16 %v3709
  %v3814 = vunpack.c.h.b16 %v3709
  %v3815 = vunpack.c.l.b16 %v3710
  %v3816 = vunpack.c.h.b16 %v3710
  %v3817 = vunpack.c.l.b16 %v3711
  %v3818 = vunpack.c.h.b16 %v3711
  %v3819 = vunpack.c.l.b16 %v3712
  %v3820 = vunpack.c.h.b16 %v3712
  %v3821 = vunpack.c.l.b16 %v3713
  %v3822 = vunpack.c.h.b16 %v3713
  %v3823 = vunpack.c.l.b16 %v3714
  %v3824 = vunpack.c.h.b16 %v3714
  %v3825 = vunpack.c.l.b16 %v3715
  %v3826 = vunpack.c.h.b16 %v3715
  %v3827 = vunpack.c.l.b16 %v3716
  %v3828 = vunpack.c.h.b16 %v3716
  %v3829 = vunpack.c.l.b16 %v3717
  %v3830 = vunpack.c.h.b16 %v3717
  %v3831 = vunpack.c.l.b16 %v3718
  %v3832 = vunpack.c.h.b16 %v3718
  %v3833 = vunpack.c.l.b16 %v3719
  %v3834 = vunpack.c.h.b16 %v3719
  %v3835 = vunpack.c.l.b16 %v3720
  %v3836 = vunpack.c.h.b16 %v3720
  %v3837 = vunpack.c.l.b16 %v3721
  %v3838 = vunpack.c.h.b16 %v3721
  %v3839 = vunpack.c.l.b16 %v3722
  %v3840 = vunpack.c.h.b16 %v3722
  %v3841 = vunpack.c.l.b16 %v3723
  %v3842 = vunpack.c.h.b16 %v3723
  %v3843 = vunpack.c.l.b16 %v3724
  %v3844 = vunpack.c.h.b16 %v3724
  %v3845 = vunpack.c.l.b16 %v3725
  %v3846 = vunpack.c.h.b16 %v3725
  %v3847 = vunpack.c.l.b16 %v3726
  %v3848 = vunpack.c.h.b16 %v3726
  %v3849 = vunpack.c.l.b16 %v3727
  %v3850 = vunpack.c.h.b16 %v3727
  %v3851 = vunpack.c.l.b16 %v3728
  %v3852 = vunpack.c.h.b16 %v3728
  %v3853 = vunpack.c.l.b16 %v3729
  %v3854 = vunpack.c.h.b16 %v3729
  %v3855 = vunpack.c.l.b16 %v3730
  %v3856 = vunpack.c.h.b16 %v3730
  %v3857 = vunpack.c.l.b16 %v3731
  %v3858 = vunpack.c.h.b16 %v3731
  %v3859 = vunpack.c.l.b16 %v3732
  %v3860 = vunpack.c.h.b16 %v3732
  %v3861 = vunpack.c.l.b16 %v3733
  %v3862 = vunpack.c.h.b16 %v3733
  %v3863 = vunpack.c.l.b16 %v3734
  %v3864 = vunpack.c.h.b16 %v3734
  %v3865 = vunpack.c.l.b16 %v3735
  %v3866 = vunpack.c.h.b16 %v3735
  %v3867 = vunpack.c.l.b16 %v3736
  %v3868 = vunpack.c.h.b16 %v3736
  %v3869 = vunpack.c.l.b16 %v3737
  %v3870 = vunpack.c.h.b16 %v3737
  %v3871 = vunpack.c.l.b16 %v3738
  %v3872 = vunpack.c.h.b16 %v3738
  %v3873 = vunpack.c.l.b16 %v3739
  %v3874 = vunpack.c.h.b16 %v3739
  %v3875 = vunpack.c.l.b16 %v3740
  %v3876 = vunpack.c.h.b16 %v3740
  %v3877 = vunpack.c.l.b16 %v3741
  %v3878 = vunpack.c.h.b16 %v3741
  %v3879 = vunpack.c.l.b16 %v3742
  %v3880 = vunpack.c.h.b16 %v3742
  %v3881 = vunpack.c.l.b16 %v3743
  %v3882 = vunpack.c.h.b16 %v3743
  %v3883 = vunpack.c.l.b16 %v3744
  %v3884 = vunpack.c.h.b16 %v3744
  %v3885 = vunpack.c.l.b16 %v3745
  %v3886 = vunpack.c.h.b16 %v3745
  %v3887 = vunpack.c.l.b16 %v3746
  %v3888 = vunpack.c.h.b16 %v3746
  %v3889 = vunpack.c.l.b16 %v3747
  %v3890 = vunpack.c.h.b16 %v3747
  %v3891 = vunpack.c.l.b16 %v3748
  %v3892 = vunpack.c.h.b16 %v3748
  %v3893 = vpack.c.b16 %v3803, %v3797
  %v3894 = vpack.c.b16 %v3804, %v3798
  %v3895 = vpack.c.b16 %v3805, %v3799
  %v3896 = vpack.c.b16 %v3806, %v3800
  %v3897 = vpack.c.b16 %v3807, %v3801
  %v3898 = vpack.c.b16 %v3808, %v3802
  %v3899 = vpack.c.b16 %v3815, %v3809
  %v3900 = vpack.c.b16 %v3816, %v3810
  %v3901 = vpack.c.b16 %v3817, %v3811
  %v3902 = vpack.c.b16 %v3818, %v3812
  %v3903 = vpack.c.b16 %v3819, %v3813
  %v3904 = vpack.c.b16 %v3820, %v3814
  %v3905 = vpack.c.b16 %v3827, %v3821
  %v3906 = vpack.c.b16 %v3828, %v3822
  %v3907 = vpack.c.b16 %v3829, %v3823
  %v3908 = vpack.c.b16 %v3830, %v3824
  %v3909 = vpack.c.b16 %v3831, %v3825
  %v3910 = vpack.c.b16 %v3832, %v3826
  %v3911 = vpack.c.b16 %v3839, %v3833
  %v3912 = vpack.c.b16 %v3840, %v3834
  %v3913 = vpack.c.b16 %v3841, %v3835
  %v3914 = vpack.c.b16 %v3842, %v3836
  %v3915 = vpack.c.b16 %v3843, %v3837
  %v3916 = vpack.c.b16 %v3844, %v3838
  %v3917 = vpack.c.b16 %v3851, %v3845
  %v3918 = vpack.c.b16 %v3852, %v3846
  %v3919 = vpack.c.b16 %v3853, %v3847
  %v3920 = vpack.c.b16 %v3854, %v3848
  %v3921 = vpack.c.b16 %v3855, %v3849
  %v3922 = vpack.c.b16 %v3856, %v3850
  %v3923 = vpack.c.b16 %v3863, %v3857
  %v3924 = vpack.c.b16 %v3864, %v3858
  %v3925 = vpack.c.b16 %v3865, %v3859
  %v3926 = vpack.c.b16 %v3866, %v3860
  %v3927 = vpack.c.b16 %v3867, %v3861
  %v3928 = vpack.c.b16 %v3868, %v3862
  %v3929 = vpack.c.b16 %v3875, %v3869
  %v3930 = vpack.c.b16 %v3876, %v3870
  %v3931 = vpack.c.b16 %v3877, %v3871
  %v3932 = vpack.c.b16 %v3878, %v3872
  %v3933 = vpack.c.b16 %v3879, %v3873
  %v3934 = vpack.c.b16 %v3880, %v3874
  %v3935 = vpack.c.b16 %v3887, %v3881
  %v3936 = vpack.c.b16 %v3888, %v3882
  %v3937 = vpack.c.b16 %v3889, %v3883
  %v3938 = vpack.c.b16 %v3890, %v3884
  %v3939 = vpack.c.b16 %v3891, %v3885
  %v3940 = vpack.c.b16 %v3892, %v3886
  %3989 = vmatpush.bf16.msra.mxu0 %v3935
  %3990 = vmatpush.bf16.msra.mxu0 %v3929
  %3991 = vmatpush.bf16.msra.mxu0 %v3923
  %3992 = vmatpush.bf16.msra.mxu0 %v3917
  %3993 = vmatpush.bf16.msra.mxu0 %v3911
  %3994 = vmatpush.bf16.msra.mxu0 %v3905
  %3995 = vmatpush.bf16.msra.mxu0 %v3899
  %3996 = vmatpush.bf16.msra.mxu0 %v3893
  %3997 = vmatmul.bf16.gmra.mxu0 %v2211
  %v3998 = vpop.f32.mrf.mxu0
  %v3999 = vadd.f32 0.0, %v3998
  %v4000 = vpop.f32.mrf.mxu0
  %4001 = vdwg.mxu0
  %4002 = vmatpush.bf16.msra.mxu0 %v3936
  %4003 = vmatpush.bf16.msra.mxu0 %v3930
  %4004 = vmatpush.bf16.msra.mxu0 %v3924
  %4005 = vmatpush.bf16.msra.mxu0 %v3918
  %4006 = vmatpush.bf16.msra.mxu0 %v3912
  %4007 = vmatpush.bf16.msra.mxu0 %v3906
  %4008 = vmatpush.bf16.msra.mxu0 %v3900
  %4009 = vmatpush.bf16.msra.mxu0 %v3894
  %4010 = vmatmul.bf16.gmra.mxu0 %v2211
  %v4011 = vpop.f32.mrf.mxu0
  %v4012 = vadd.f32 0.0, %v4011
  %v4013 = vpop.f32.mrf.mxu0
  %4014 = vdwg.mxu0
  %4015 = vmatpush.bf16.msra.mxu0 %v3937
  %4016 = vmatpush.bf16.msra.mxu0 %v3931
  %4017 = vmatpush.bf16.msra.mxu0 %v3925
  %4018 = vmatpush.bf16.msra.mxu0 %v3919
  %4019 = vmatpush.bf16.msra.mxu0 %v3913
  %4020 = vmatpush.bf16.msra.mxu0 %v3907
  %4021 = vmatpush.bf16.msra.mxu0 %v3901
  %4022 = vmatpush.bf16.msra.mxu0 %v3895
  %4023 = vmatmul.bf16.gmra.mxu0 %v2211
  %v4024 = vpop.f32.mrf.mxu0
  %v4025 = vadd.f32 0.0, %v4024
  %v4026 = vpop.f32.mrf.mxu0
  %4027 = vdwg.mxu0
  %4028 = vmatpush.bf16.msra.mxu0 %v3938
  %4029 = vmatpush.bf16.msra.mxu0 %v3932
  %4030 = vmatpush.bf16.msra.mxu0 %v3926
  %4031 = vmatpush.bf16.msra.mxu0 %v3920
  %4032 = vmatpush.bf16.msra.mxu0 %v3914
  %4033 = vmatpush.bf16.msra.mxu0 %v3908
  %4034 = vmatpush.bf16.msra.mxu0 %v3902
  %4035 = vmatpush.bf16.msra.mxu0 %v3896
  %4036 = vmatmul.bf16.gmra.mxu0 %v2211
  %v4037 = vpop.f32.mrf.mxu0
  %v4038 = vadd.f32 0.0, %v4037
  %v4039 = vpop.f32.mrf.mxu0
  %4040 = vdwg.mxu0
  %4041 = vmatpush.bf16.msra.mxu0 %v3939
  %4042 = vmatpush.bf16.msra.mxu0 %v3933
  %4043 = vmatpush.bf16.msra.mxu0 %v3927
  %4044 = vmatpush.bf16.msra.mxu0 %v3921
  %4045 = vmatpush.bf16.msra.mxu0 %v3915
  %4046 = vmatpush.bf16.msra.mxu0 %v3909
  %4047 = vmatpush.bf16.msra.mxu0 %v3903
  %4048 = vmatpush.bf16.msra.mxu0 %v3897
  %4049 = vmatmul.bf16.gmra.mxu0 %v2211
  %v4050 = vpop.f32.mrf.mxu0
  %v4051 = vadd.f32 0.0, %v4050
  %v4052 = vpop.f32.mrf.mxu0
  %4053 = vdwg.mxu0
  %4054 = vmatpush.bf16.msra.mxu0 %v3940
  %4055 = vmatpush.bf16.msra.mxu0 %v3934
  %4056 = vmatpush.bf16.msra.mxu0 %v3928
  %4057 = vmatpush.bf16.msra.mxu0 %v3922
  %4058 = vmatpush.bf16.msra.mxu0 %v3916
  %4059 = vmatpush.bf16.msra.mxu0 %v3910
  %4060 = vmatpush.bf16.msra.mxu0 %v3904
  %4061 = vmatpush.bf16.msra.mxu0 %v3898
  %4062 = vmatmul.bf16.gmra.mxu0 %v2211
  %v4063 = vpop.f32.mrf.mxu0
  %v4064 = vadd.f32 0.0, %v4063
  %v4065 = vpop.f32.mrf.mxu0
  %4066 = vdwg.mxu0
  %v4067 = vadd.f32 %v3694, %v3999
  %v4068 = vadd.f32 %v3695, %v4012
  %v4069 = vadd.f32 %v3696, %v4025
  %v4070 = vadd.f32 %v3697, %v4038
  %v4071 = vadd.f32 %v3698, %v4051
  %v4072 = vadd.f32 %v3699, %v4064
  %s4073 = scalar_lea.vmem %s3, 1920
  %v4074 = vld [vmem:[%s4073] sm:$0xff]
  %v4075 = vld [vmem:[%s4073 + $0x8] sm:$0xff]
  %v4076 = vld [vmem:[%s4073 + $0x10] sm:$0xff]
  %v4077 = vld [vmem:[%s4073 + $0x18] sm:$0xff]
  %v4078 = vld [vmem:[%s4073 + $0x20] sm:$0xff]
  %v4079 = vld [vmem:[%s4073 + $0x28] sm:$0xff]
  %v4080 = vld [vmem:[%s4073 + $0x30] sm:$0xff]
  %v4081 = vld [vmem:[%s4073 + $0x38] sm:$0xff]
  %v4082 = vld [vmem:[%s4073 + $0x40] sm:$0xff]
  %v4083 = vld [vmem:[%s4073 + $0x48] sm:$0xff]
  %v4084 = vld [vmem:[%s4073 + $0x50] sm:$0xff]
  %v4085 = vld [vmem:[%s4073 + $0x58] sm:$0xff]
  %v4086 = vld [vmem:[%s4073 + $0x60] sm:$0xff]
  %v4087 = vld [vmem:[%s4073 + $0x68] sm:$0xff]
  %v4088 = vld [vmem:[%s4073 + $0x70] sm:$0xff]
  %v4089 = vld [vmem:[%s4073 + $0x78] sm:$0xff]
  %v4090 = vld [vmem:[%s4073 + $0x80] sm:$0xff]
  %v4091 = vld [vmem:[%s4073 + $0x88] sm:$0xff]
  %v4092 = vld [vmem:[%s4073 + $0x90] sm:$0xff]
  %v4093 = vld [vmem:[%s4073 + $0x98] sm:$0xff]
  %v4094 = vld [vmem:[%s4073 + $0xa0] sm:$0xff]
  %v4095 = vld [vmem:[%s4073 + $0xa8] sm:$0xff]
  %v4096 = vld [vmem:[%s4073 + $0xb0] sm:$0xff]
  %v4097 = vld [vmem:[%s4073 + $0xb8] sm:$0xff]
  %v4098 = vld [vmem:[%s4073 + $0xc0] sm:$0xff]
  %v4099 = vld [vmem:[%s4073 + $0xc8] sm:$0xff]
  %v4100 = vld [vmem:[%s4073 + $0xd0] sm:$0xff]
  %v4101 = vld [vmem:[%s4073 + $0xd8] sm:$0xff]
  %v4102 = vld [vmem:[%s4073 + $0xe0] sm:$0xff]
  %v4103 = vld [vmem:[%s4073 + $0xe8] sm:$0xff]
  %v4104 = vld [vmem:[%s4073 + $0xf0] sm:$0xff]
  %v4105 = vld [vmem:[%s4073 + $0xf8] sm:$0xff]
  %v4106 = vld [vmem:[%s4073 + $0x100] sm:$0xff]
  %v4107 = vld [vmem:[%s4073 + $0x108] sm:$0xff]
  %v4108 = vld [vmem:[%s4073 + $0x110] sm:$0xff]
  %v4109 = vld [vmem:[%s4073 + $0x118] sm:$0xff]
  %v4110 = vld [vmem:[%s4073 + $0x120] sm:$0xff]
  %v4111 = vld [vmem:[%s4073 + $0x128] sm:$0xff]
  %v4112 = vld [vmem:[%s4073 + $0x130] sm:$0xff]
  %v4113 = vld [vmem:[%s4073 + $0x138] sm:$0xff]
  %v4114 = vld [vmem:[%s4073 + $0x140] sm:$0xff]
  %v4115 = vld [vmem:[%s4073 + $0x148] sm:$0xff]
  %v4116 = vld [vmem:[%s4073 + $0x150] sm:$0xff]
  %v4117 = vld [vmem:[%s4073 + $0x158] sm:$0xff]
  %v4118 = vld [vmem:[%s4073 + $0x160] sm:$0xff]
  %v4119 = vld [vmem:[%s4073 + $0x168] sm:$0xff]
  %v4120 = vld [vmem:[%s4073 + $0x170] sm:$0xff]
  %v4121 = vld [vmem:[%s4073 + $0x178] sm:$0xff]
  %v4123 = vunpack.c.l.b16 %v2211
  %v4124 = vpack.c.b16 %v4123, %v4123
  %v4125 = vrot.slane %v4124, 1
  %v4175 = vunpack.c.l.b16 %v4074
  %v4176 = vunpack.c.h.b16 %v4074
  %v4177 = vunpack.c.l.b16 %v4075
  %v4178 = vunpack.c.h.b16 %v4075
  %v4179 = vunpack.c.l.b16 %v4076
  %v4180 = vunpack.c.h.b16 %v4076
  %v4181 = vunpack.c.l.b16 %v4077
  %v4182 = vunpack.c.h.b16 %v4077
  %v4183 = vunpack.c.l.b16 %v4078
  %v4184 = vunpack.c.h.b16 %v4078
  %v4185 = vunpack.c.l.b16 %v4079
  %v4186 = vunpack.c.h.b16 %v4079
  %v4187 = vunpack.c.l.b16 %v4080
  %v4188 = vunpack.c.h.b16 %v4080
  %v4189 = vunpack.c.l.b16 %v4081
  %v4190 = vunpack.c.h.b16 %v4081
  %v4191 = vunpack.c.l.b16 %v4082
  %v4192 = vunpack.c.h.b16 %v4082
  %v4193 = vunpack.c.l.b16 %v4083
  %v4194 = vunpack.c.h.b16 %v4083
  %v4195 = vunpack.c.l.b16 %v4084
  %v4196 = vunpack.c.h.b16 %v4084
  %v4197 = vunpack.c.l.b16 %v4085
  %v4198 = vunpack.c.h.b16 %v4085
  %v4199 = vunpack.c.l.b16 %v4086
  %v4200 = vunpack.c.h.b16 %v4086
  %v4201 = vunpack.c.l.b16 %v4087
  %v4202 = vunpack.c.h.b16 %v4087
  %v4203 = vunpack.c.l.b16 %v4088
  %v4204 = vunpack.c.h.b16 %v4088
  %v4205 = vunpack.c.l.b16 %v4089
  %v4206 = vunpack.c.h.b16 %v4089
  %v4207 = vunpack.c.l.b16 %v4090
  %v4208 = vunpack.c.h.b16 %v4090
  %v4209 = vunpack.c.l.b16 %v4091
  %v4210 = vunpack.c.h.b16 %v4091
  %v4211 = vunpack.c.l.b16 %v4092
  %v4212 = vunpack.c.h.b16 %v4092
  %v4213 = vunpack.c.l.b16 %v4093
  %v4214 = vunpack.c.h.b16 %v4093
  %v4215 = vunpack.c.l.b16 %v4094
  %v4216 = vunpack.c.h.b16 %v4094
  %v4217 = vunpack.c.l.b16 %v4095
  %v4218 = vunpack.c.h.b16 %v4095
  %v4219 = vunpack.c.l.b16 %v4096
  %v4220 = vunpack.c.h.b16 %v4096
  %v4221 = vunpack.c.l.b16 %v4097
  %v4222 = vunpack.c.h.b16 %v4097
  %v4223 = vunpack.c.l.b16 %v4098
  %v4224 = vunpack.c.h.b16 %v4098
  %v4225 = vunpack.c.l.b16 %v4099
  %v4226 = vunpack.c.h.b16 %v4099
  %v4227 = vunpack.c.l.b16 %v4100
  %v4228 = vunpack.c.h.b16 %v4100
  %v4229 = vunpack.c.l.b16 %v4101
  %v4230 = vunpack.c.h.b16 %v4101
  %v4231 = vunpack.c.l.b16 %v4102
  %v4232 = vunpack.c.h.b16 %v4102
  %v4233 = vunpack.c.l.b16 %v4103
  %v4234 = vunpack.c.h.b16 %v4103
  %v4235 = vunpack.c.l.b16 %v4104
  %v4236 = vunpack.c.h.b16 %v4104
  %v4237 = vunpack.c.l.b16 %v4105
  %v4238 = vunpack.c.h.b16 %v4105
  %v4239 = vunpack.c.l.b16 %v4106
  %v4240 = vunpack.c.h.b16 %v4106
  %v4241 = vunpack.c.l.b16 %v4107
  %v4242 = vunpack.c.h.b16 %v4107
  %v4243 = vunpack.c.l.b16 %v4108
  %v4244 = vunpack.c.h.b16 %v4108
  %v4245 = vunpack.c.l.b16 %v4109
  %v4246 = vunpack.c.h.b16 %v4109
  %v4247 = vunpack.c.l.b16 %v4110
  %v4248 = vunpack.c.h.b16 %v4110
  %v4249 = vunpack.c.l.b16 %v4111
  %v4250 = vunpack.c.h.b16 %v4111
  %v4251 = vunpack.c.l.b16 %v4112
  %v4252 = vunpack.c.h.b16 %v4112
  %v4253 = vunpack.c.l.b16 %v4113
  %v4254 = vunpack.c.h.b16 %v4113
  %v4255 = vunpack.c.l.b16 %v4114
  %v4256 = vunpack.c.h.b16 %v4114
  %v4257 = vunpack.c.l.b16 %v4115
  %v4258 = vunpack.c.h.b16 %v4115
  %v4259 = vunpack.c.l.b16 %v4116
  %v4260 = vunpack.c.h.b16 %v4116
  %v4261 = vunpack.c.l.b16 %v4117
  %v4262 = vunpack.c.h.b16 %v4117
  %v4263 = vunpack.c.l.b16 %v4118
  %v4264 = vunpack.c.h.b16 %v4118
  %v4265 = vunpack.c.l.b16 %v4119
  %v4266 = vunpack.c.h.b16 %v4119
  %v4267 = vunpack.c.l.b16 %v4120
  %v4268 = vunpack.c.h.b16 %v4120
  %v4269 = vunpack.c.l.b16 %v4121
  %v4270 = vunpack.c.h.b16 %v4121
  %v4271 = vpack.c.b16 %v4181, %v4175
  %v4272 = vpack.c.b16 %v4182, %v4176
  %v4273 = vpack.c.b16 %v4183, %v4177
  %v4274 = vpack.c.b16 %v4184, %v4178
  %v4275 = vpack.c.b16 %v4185, %v4179
  %v4276 = vpack.c.b16 %v4186, %v4180
  %v4277 = vpack.c.b16 %v4193, %v4187
  %v4278 = vpack.c.b16 %v4194, %v4188
  %v4279 = vpack.c.b16 %v4195, %v4189
  %v4280 = vpack.c.b16 %v4196, %v4190
  %v4281 = vpack.c.b16 %v4197, %v4191
  %v4282 = vpack.c.b16 %v4198, %v4192
  %v4283 = vpack.c.b16 %v4205, %v4199
  %v4284 = vpack.c.b16 %v4206, %v4200
  %v4285 = vpack.c.b16 %v4207, %v4201
  %v4286 = vpack.c.b16 %v4208, %v4202
  %v4287 = vpack.c.b16 %v4209, %v4203
  %v4288 = vpack.c.b16 %v4210, %v4204
  %v4289 = vpack.c.b16 %v4217, %v4211
  %v4290 = vpack.c.b16 %v4218, %v4212
  %v4291 = vpack.c.b16 %v4219, %v4213
  %v4292 = vpack.c.b16 %v4220, %v4214
  %v4293 = vpack.c.b16 %v4221, %v4215
  %v4294 = vpack.c.b16 %v4222, %v4216
  %v4295 = vpack.c.b16 %v4229, %v4223
  %v4296 = vpack.c.b16 %v4230, %v4224
  %v4297 = vpack.c.b16 %v4231, %v4225
  %v4298 = vpack.c.b16 %v4232, %v4226
  %v4299 = vpack.c.b16 %v4233, %v4227
  %v4300 = vpack.c.b16 %v4234, %v4228
  %v4301 = vpack.c.b16 %v4241, %v4235
  %v4302 = vpack.c.b16 %v4242, %v4236
  %v4303 = vpack.c.b16 %v4243, %v4237
  %v4304 = vpack.c.b16 %v4244, %v4238
  %v4305 = vpack.c.b16 %v4245, %v4239
  %v4306 = vpack.c.b16 %v4246, %v4240
  %v4307 = vpack.c.b16 %v4253, %v4247
  %v4308 = vpack.c.b16 %v4254, %v4248
  %v4309 = vpack.c.b16 %v4255, %v4249
  %v4310 = vpack.c.b16 %v4256, %v4250
  %v4311 = vpack.c.b16 %v4257, %v4251
  %v4312 = vpack.c.b16 %v4258, %v4252
  %v4313 = vpack.c.b16 %v4265, %v4259
  %v4314 = vpack.c.b16 %v4266, %v4260
  %v4315 = vpack.c.b16 %v4267, %v4261
  %v4316 = vpack.c.b16 %v4268, %v4262
  %v4317 = vpack.c.b16 %v4269, %v4263
  %v4318 = vpack.c.b16 %v4270, %v4264
  %4367 = vmatpush.bf16.msra.mxu0 %v4313
  %4368 = vmatpush.bf16.msra.mxu0 %v4307
  %4369 = vmatpush.bf16.msra.mxu0 %v4301
  %4370 = vmatpush.bf16.msra.mxu0 %v4295
  %4371 = vmatpush.bf16.msra.mxu0 %v4289
  %4372 = vmatpush.bf16.msra.mxu0 %v4283
  %4373 = vmatpush.bf16.msra.mxu0 %v4277
  %4374 = vmatpush.bf16.msra.mxu0 %v4271
  %4375 = vmatmul.bf16.gmra.mxu0 %v4125
  %v4376 = vpop.f32.mrf.mxu0
  %v4377 = vadd.f32 0.0, %v4376
  %v4378 = vpop.f32.mrf.mxu0
  %4379 = vdwg.mxu0
  %4380 = vmatpush.bf16.msra.mxu0 %v4314
  %4381 = vmatpush.bf16.msra.mxu0 %v4308
  %4382 = vmatpush.bf16.msra.mxu0 %v4302
  %4383 = vmatpush.bf16.msra.mxu0 %v4296
  %4384 = vmatpush.bf16.msra.mxu0 %v4290
  %4385 = vmatpush.bf16.msra.mxu0 %v4284
  %4386 = vmatpush.bf16.msra.mxu0 %v4278
  %4387 = vmatpush.bf16.msra.mxu0 %v4272
  %4388 = vmatmul.bf16.gmra.mxu0 %v4125
  %v4389 = vpop.f32.mrf.mxu0
  %v4390 = vadd.f32 0.0, %v4389
  %v4391 = vpop.f32.mrf.mxu0
  %4392 = vdwg.mxu0
  %4393 = vmatpush.bf16.msra.mxu0 %v4315
  %4394 = vmatpush.bf16.msra.mxu0 %v4309
  %4395 = vmatpush.bf16.msra.mxu0 %v4303
  %4396 = vmatpush.bf16.msra.mxu0 %v4297
  %4397 = vmatpush.bf16.msra.mxu0 %v4291
  %4398 = vmatpush.bf16.msra.mxu0 %v4285
  %4399 = vmatpush.bf16.msra.mxu0 %v4279
  %4400 = vmatpush.bf16.msra.mxu0 %v4273
  %4401 = vmatmul.bf16.gmra.mxu0 %v4125
  %v4402 = vpop.f32.mrf.mxu0
  %v4403 = vadd.f32 0.0, %v4402
  %v4404 = vpop.f32.mrf.mxu0
  %4405 = vdwg.mxu0
  %4406 = vmatpush.bf16.msra.mxu0 %v4316
  %4407 = vmatpush.bf16.msra.mxu0 %v4310
  %4408 = vmatpush.bf16.msra.mxu0 %v4304
  %4409 = vmatpush.bf16.msra.mxu0 %v4298
  %4410 = vmatpush.bf16.msra.mxu0 %v4292
  %4411 = vmatpush.bf16.msra.mxu0 %v4286
  %4412 = vmatpush.bf16.msra.mxu0 %v4280
  %4413 = vmatpush.bf16.msra.mxu0 %v4274
  %4414 = vmatmul.bf16.gmra.mxu0 %v4125
  %v4415 = vpop.f32.mrf.mxu0
  %v4416 = vadd.f32 0.0, %v4415
  %v4417 = vpop.f32.mrf.mxu0
  %4418 = vdwg.mxu0
  %4419 = vmatpush.bf16.msra.mxu0 %v4317
  %4420 = vmatpush.bf16.msra.mxu0 %v4311
  %4421 = vmatpush.bf16.msra.mxu0 %v4305
  %4422 = vmatpush.bf16.msra.mxu0 %v4299
  %4423 = vmatpush.bf16.msra.mxu0 %v4293
  %4424 = vmatpush.bf16.msra.mxu0 %v4287
  %4425 = vmatpush.bf16.msra.mxu0 %v4281
  %4426 = vmatpush.bf16.msra.mxu0 %v4275
  %4427 = vmatmul.bf16.gmra.mxu0 %v4125
  %v4428 = vpop.f32.mrf.mxu0
  %v4429 = vadd.f32 0.0, %v4428
  %v4430 = vpop.f32.mrf.mxu0
  %4431 = vdwg.mxu0
  %4432 = vmatpush.bf16.msra.mxu0 %v4318
  %4433 = vmatpush.bf16.msra.mxu0 %v4312
  %4434 = vmatpush.bf16.msra.mxu0 %v4306
  %4435 = vmatpush.bf16.msra.mxu0 %v4300
  %4436 = vmatpush.bf16.msra.mxu0 %v4294
  %4437 = vmatpush.bf16.msra.mxu0 %v4288
  %4438 = vmatpush.bf16.msra.mxu0 %v4282
  %4439 = vmatpush.bf16.msra.mxu0 %v4276
  %4440 = vmatmul.bf16.gmra.mxu0 %v4125
  %v4441 = vpop.f32.mrf.mxu0
  %v4442 = vadd.f32 0.0, %v4441
  %v4443 = vpop.f32.mrf.mxu0
  %4444 = vdwg.mxu0
  %v4445 = vadd.f32 %v4067, %v4377
  %v4446 = vadd.f32 %v4068, %v4390
  %v4447 = vadd.f32 %v4069, %v4403
  %v4448 = vadd.f32 %v4070, %v4416
  %v4449 = vadd.f32 %v4071, %v4429
  %v4450 = vadd.f32 %v4072, %v4442
  %v4451 = vld [vmem:[%s4] sm:$0x3f]
  %v4453 = vperm.slane %v4451, 0
  %v4454 = vperm.slane %v4451, 1
  %v4455 = vperm.slane %v4451, 2
  %v4456 = vperm.slane %v4451, 3
  %v4457 = vperm.slane %v4451, 4
  %v4458 = vperm.slane %v4451, 5
  %v4465 = vadd.f32 %v4445, %v4453
  %v4466 = vadd.f32 %v4446, %v4454
  %v4467 = vadd.f32 %v4447, %v4455
  %v4468 = vadd.f32 %v4448, %v4456
  %v4469 = vadd.f32 %v4449, %v4457
  %v4470 = vadd.f32 %v4450, %v4458
  %v4477 = vrot.slane %v4466, 6
  %v4478 = vrot.slane %v4467, 4
  %v4479 = vrot.slane %v4468, 2
  %v4480 = vrot.slane %v4470, 6
  %vm4481 = vcmask 1041408
  %v4482 = vsel %vm4481, %v4465, %v4477
  %vm4483 = vcmask 1045508
  %v4484 = vsel %vm4483, %v4478, %v4479
  %vm4485 = vcmask 1043456
  %v4486 = vsel %vm4485, %v4482, %v4484
  %v4487 = vsel %vm4481, %v4469, %v4480
  %4490 = vst [vmem:[%s5] sm:$0xff] %v4486
  %4491 = vst [vmem:[%s5 + $0x8] sm:$0xf] %v4487
  // Predicated region
  $region22: #{model_tanh_forward.1} parent=0 // pred_check
    _
  $region23: #{model_tanh_forward.1} parent=0 // pred_check_branch
    %4493 = sbr.rel (0) target = $region25
  $region24: #{model_tanh_forward.1} parent=0 // pred_region
    _
  $region25: #{model_tanh_forward.1} parent=0 // pred_fallthru
    _
  // Predicated region
  $region26: #{model_tanh_forward.1} parent=0 // pred_check
    _
  $region27: #{model_tanh_forward.1} parent=0 // pred_check_branch
    %4495 = sbr.rel (0) target = $region29
  $region28: #{model_tanh_forward.1} parent=0 // pred_region
    _
  $region29: #{model_tanh_forward.1} parent=0 // pred_fallthru
    _

</llo_original>
